<compile_context>
chip_gen: v5e
topology: v5e:2x2
jax: 0.10.0
libtpu: 0.0.40
codegen_flags: <defaults>
</compile_context>

<pallas_src>
import functools

import jax
import jax.numpy as jnp
from jax import lax
from jax.experimental import pallas as pl
from jax.experimental.pallas import tpu as pltpu


# Largest single-shot GEMM footprint here is < 2 MiB (e1/d4 patches ~0.6 MiB
# + output ~0.1 MiB); 16 MiB leaves ample headroom and is far below physical
# VMEM on every generation (v5e/v6e 128 MiB, v7x 64 MiB).
_VMEM_LIMIT_BYTES = 16 * 1024 * 1024
_COMPILER_PARAMS = pltpu.CompilerParams(vmem_limit_bytes=_VMEM_LIMIT_BYTES)

# Static architecture hyper-parameters (fixed by the PyTorch module).
_ENC_CONVS = (("e1", (3, 32), (1, 16), (1, 8)),
              ("e2", (3, 12), (1, 6), (0, 0)),
              ("e3", (3, 3), (2, 2), (1, 1)),
              ("e4", (3, 3), (2, 1), (0, 0)))
_DEC_CONVTS = (("d2", (3, 3), (2, 2), (1, 1), "relu"),
               ("d3", (3, 12), (1, 6), (0, 0), "relu"),
               ("d4", (3, 32), (1, 16), (1, 8), "none"))
_D1_KDIMS = (7, 4)   # d1: ConvTranspose2d(latent, channels, (7,4), 1, 0)


# ---------------------------------------------------------------------------
# Pallas kernels
# ---------------------------------------------------------------------------
def _gemm_bias_act_kernel(a_ref, b_ref, bias_ref, o_ref, *, act):
    """out = act(A @ B + bias).  Operands cast to bf16 (MXU-native) in-kernel;
    accumulation, bias add and the activation epilogue stay in f32."""
    acc = jnp.dot(a_ref[...].astype(jnp.bfloat16),
                  b_ref[...].astype(jnp.bfloat16),
                  preferred_element_type=jnp.float32)
    acc = acc + bias_ref[...]                       # (R,1) or (1,M) broadcast
    if act == "leaky_relu":
        acc = jnp.where(acc >= 0, acc, jnp.float32(0.1) * acc)
    elif act == "relu":
        acc = jnp.maximum(acc, jnp.float32(0.0))
    o_ref[...] = acc


def gemm_bias_act(a, b, bias2d, act="none"):
    """act((R,K) @ (K,M) + bias) as ONE single-invocation Pallas kernel.

    Every layer of this model fits whole in VMEM, so there is no grid and no
    per-step pipeline overhead.  Operands are passed unpadded (Mosaic pads the
    VMEM layout internally); the bf16 cast happens inside the kernel, so no
    pad/cast intermediates are materialised in HBM.
    """
    R, K = a.shape
    K2, M = b.shape
    assert K == K2
    vmem = pl.BlockSpec(memory_space=pltpu.MemorySpace.VMEM)
    return pl.pallas_call(
        functools.partial(_gemm_bias_act_kernel, act=act),
        out_shape=jax.ShapeDtypeStruct((R, M), jnp.float32),
        in_specs=[vmem, vmem, vmem],
        out_specs=vmem,
        compiler_params=_COMPILER_PARAMS,
    )(a, b, bias2d)


def _latent_bottleneck_kernel(h_ref, w_efc_ref, b_efc_ref, w_d1_ref, b_d1_ref,
                              z_ref, d1_ref):
    """Fused encoder Linear (efc) + first decoder layer (d1: ConvTranspose2d on
    a 1x1 spatial input == a plain Linear + ReLU).  The latent z stays in VMEM
    between the two GEMMs and is also written out (it is a model output)."""
    h = h_ref[...].astype(jnp.bfloat16)
    z = jnp.dot(h, w_efc_ref[...], preferred_element_type=jnp.float32)
    z = z + b_efc_ref[...]
    z_ref[...] = z
    d = jnp.dot(z.astype(jnp.bfloat16), w_d1_ref[...],
                preferred_element_type=jnp.float32)
    d = d + b_d1_ref[...]
    d1_ref[...] = jnp.maximum(d, jnp.float32(0.0))


def latent_bottleneck(h_flat, w_efc, b_efc, w_d1, b_d1):
    """h_flat (B, L*6) -> (z (B, L), d1 (B, C*7*4)) in one pallas_call."""
    B = h_flat.shape[0]
    vmem = pl.BlockSpec(memory_space=pltpu.MemorySpace.VMEM)
    return pl.pallas_call(
        _latent_bottleneck_kernel,
        out_shape=(jax.ShapeDtypeStruct((B, w_efc.shape[1]), jnp.float32),
                   jax.ShapeDtypeStruct((B, w_d1.shape[1]), jnp.float32)),
        in_specs=[vmem] * 5,
        out_specs=(vmem, vmem),
        compiler_params=_COMPILER_PARAMS,
    )(h_flat, w_efc, b_efc, w_d1, b_d1)


# ---------------------------------------------------------------------------
# Channel-major im2col (no transposes: rows already in (tap, ci) order)
# ---------------------------------------------------------------------------
def _patches_T_cm(x_cm, kdims, strides, pads):
    """x_cm: (C, N, H, W) -> P of shape (kh*kw*C, N*Ho*Wo) with
    P[(ki,kj,ci), (n,oi,oj)] = xpad[ci, n, oi*sh+ki, oj*sw+kj].
    Built from kh*kw strided slices + one stack + one reshape."""
    C, N, H, W = x_cm.shape
    kh, kw = kdims
    sh, sw = strides
    (pt, pb), (plf, prt) = pads
    xp = jnp.pad(x_cm, ((0, 0), (0, 0), (pt, pb), (plf, prt)))
    Ho = (H + pt + pb - kh) // sh + 1
    Wo = (W + plf + prt - kw) // sw + 1
    taps = []
    for ki in range(kh):
        for kj in range(kw):
            taps.append(xp[:, :, ki:ki + sh * (Ho - 1) + 1:sh,
                               kj:kj + sw * (Wo - 1) + 1:sw])
    p = jnp.stack(taps, axis=0)                 # (kh*kw, C, N, Ho, Wo)
    return p.reshape(kh * kw * C, N * Ho * Wo), Ho, Wo


# ---------------------------------------------------------------------------
# Conv2d / ConvTranspose2d on top of the Pallas GEMM (channel-major layout)
# ---------------------------------------------------------------------------
def conv2d_cm(x_cm, wm, bias_col, kdims, stride, padding, act):
    """Conv2d in channel-major layout.  x_cm:(Ci,N,H,W), wm:(Co, kh*kw*Ci)
    pre-packed bf16 -> (Co, N, Ho, Wo).  GEMM runs transposed so the tiny Co
    sits on sublanes and the big spatial axis M is lane-dense."""
    Ci, N, H, W = x_cm.shape
    ph, pw = padding
    pT, Ho, Wo = _patches_T_cm(x_cm, kdims, stride, ((ph, ph), (pw, pw)))
    yt = gemm_bias_act(wm, pT, bias_col, act)          # (Co, N*Ho*Wo)
    return yt.reshape(yt.shape[0], N, Ho, Wo)


def conv_transpose2d_cm(x_cm, wm, bias_col, kdims, stride, padding, act):
    """ConvTranspose2d in channel-major layout via the subpixel (stride-phase)
    decomposition: for output o, with u=(o+p)//s and r=(o+p)%s,
    y[o] = sum_t x[u-t] * w[r + t*s] (zero-fill out of range).  One stride-1
    GEMM over the un-dilated input computes all sh*sw phases at once."""
    Ci, N, H, W = x_cm.shape
    kh, kw = kdims
    sh, sw = stride
    ph, pw = padding
    Co = wm.shape[0] // (sh * sw)
    Ho = (H - 1) * sh - 2 * ph + kh
    Wo = (W - 1) * sw - 2 * pw + kw
    Th, Tw = -(-kh // sh), -(-kw // sw)                  # taps per phase

    uh_lo, uh_hi = ph // sh, (Ho - 1 + ph) // sh
    uw_lo, uw_hi = pw // sw, (Wo - 1 + pw) // sw
    nuh, nuw = uh_hi - uh_lo + 1, uw_hi - uw_lo + 1
    pad_t, pad_b = max(0, Th - 1 - uh_lo), max(0, uh_hi - (H - 1))
    pad_l, pad_r = max(0, Tw - 1 - uw_lo), max(0, uw_hi - (W - 1))
    off_h = uh_lo - Th + 1 + pad_t
    off_w = uw_lo - Tw + 1 + pad_l
    xp = jnp.pad(x_cm, ((0, 0), (0, 0), (pad_t, pad_b), (pad_l, pad_r)))
    xq = xp[:, :, off_h:off_h + nuh + Th - 1, off_w:off_w + nuw + Tw - 1]
    pT, nuh2, nuw2 = _patches_T_cm(xq, (Th, Tw), (1, 1), ((0, 0), (0, 0)))
    assert (nuh2, nuw2) == (nuh, nuw)

    yt = gemm_bias_act(wm, pT, bias_col, act)            # (sh*sw*Co, N*nuh*nuw)

    y = yt.reshape(sh, sw, Co, N, nuh, nuw)
    y = y.transpose(2, 3, 4, 0, 5, 1).reshape(Co, N, nuh * sh, nuw * sw)
    oh, ow = ph - uh_lo * sh, pw - uw_lo * sw
    return y[:, :, oh:oh + Ho, ow:ow + Wo]


# ---------------------------------------------------------------------------
# Parameters: synthetic init + one-time packing into GEMM layouts
# ---------------------------------------------------------------------------
def init_params(key, channels=16, latent=16, vocab_size=256):
    C, L, V = channels, latent, vocab_size
    shapes = {
        # encoder
        "e1_w": (C, 1, 3, 32), "e1_b": (C,),
        "e2_w": (C, C, 3, 12), "e2_b": (C,),
        "e3_w": (C, C, 3, 3), "e3_b": (C,),
        "e4_w": (L, C, 3, 3), "e4_b": (L,),
        "efc_w": (L, L * 3 * 2), "efc_b": (L,),
        # decoder
        "d1_w": (L, C, 7, 4), "d1_b": (C,),
        "d2_w": (C, C, 3, 3), "d2_b": (C,),
        "d3_w": (C, C, 3, 12), "d3_b": (C,),
        "d4_w": (C, 1, 3, 32), "d4_b": (1,),
        "fc_w": (V, 768), "fc_b": (V,),
    }
    fan_in = {
        "e1": 1 * 3 * 32, "e2": C * 3 * 12, "e3": C * 3 * 3, "e4": C * 3 * 3,
        "efc": L * 3 * 2, "d1": C * 7 * 4, "d2": C * 3 * 3, "d3": C * 3 * 12,
        "d4": 1 * 3 * 32, "fc": 768,
    }
    keys = jax.random.split(key, len(shapes))
    params = {}
    for k, (name, shp) in zip(keys, sorted(shapes.items())):
        scale = 1.0 / float(fan_in[name.split("_")[0]]) ** 0.5
        params[name] = scale * jax.random.normal(k, shp, dtype=jnp.float32)
    return params


def pack_params(params):
    """One-time weight packing (call OUTSIDE the jitted forward): every weight
    is transposed/reshaped into its exact GEMM operand layout and cast to
    bf16; biases are reshaped into their broadcast layout and kept f32."""
    f32 = jnp.float32
    bf16 = jnp.bfloat16
    packed = {}

    # encoder convs: wm columns ordered (ki, kj, ci) to match _patches_T_cm
    for name, _k, _s, _p in _ENC_CONVS:
        w, b = params[name + "_w"], params[name + "_b"]
        Co, Ci, kh, kw = w.shape
        packed[name + "_wm"] = (w.transpose(0, 2, 3, 1)
                                 .reshape(Co, kh * kw * Ci).astype(bf16))
        packed[name + "_b"] = b.reshape(Co, 1).astype(f32)

    # efc linear: y = x @ W^T + b
    packed["efc_wm"] = params["efc_w"].T.astype(bf16)
    packed["efc_b"] = params["efc_b"].reshape(1, -1).astype(f32)

    # d1: ConvTranspose2d on a 1x1 spatial input == Linear(L, C*kh*kw)
    w, b = params["d1_w"], params["d1_b"]
    Ci, Co, kh, kw = w.shape
    packed["d1_wm"] = w.reshape(Ci, Co * kh * kw).astype(bf16)
    packed["d1_b"] = jnp.repeat(b, kh * kw).reshape(1, Co * kh * kw).astype(f32)

    # decoder transposed convs: subpixel weight
    # Wm[(rh,rw,co),(jh,jw,ci)] = wpad[ci, co, rh+(Th-1-jh)*sh, rw+(Tw-1-jw)*sw]
    for name, (kh, kw), (sh, sw), _p, _a in _DEC_CONVTS:
        w, b = params[name + "_w"], params[name + "_b"]
        Ci, Co = w.shape[0], w.shape[1]
        Th, Tw = -(-kh // sh), -(-kw // sw)
        wp = jnp.pad(w, ((0, 0), (0, 0), (0, Th * sh - kh), (0, Tw * sw - kw)))
        w6 = jnp.flip(wp.reshape(Ci, Co, Th, sh, Tw, sw), axis=(2, 4))
        packed[name + "_wm"] = (w6.transpose(3, 5, 1, 2, 4, 0)
                                  .reshape(sh * sw * Co, Th * Tw * Ci)
                                  .astype(bf16))
        packed[name + "_b"] = (jnp.tile(b, sh * sw)
                                  .reshape(sh * sw * Co, 1).astype(f32))

    # decoder_fc linear
    packed["fc_wm"] = params["fc_w"].T.astype(bf16)
    packed["fc_b"] = params["fc_b"].reshape(1, -1).astype(f32)
    return packed


# ---------------------------------------------------------------------------
# Text_VAE (ae_type=0) forward
# ---------------------------------------------------------------------------
def text_vae_forward(packed, embs):
    """embs: (B,15,768) -> (logits (B*15,V), decode_emb (B,15,768), z (B,L))."""
    B = embs.shape[0]

    # encoder: activations stay in channel-major (C, N, H, W) layout
    h = embs[None]                                              # (1, B, 15, 768)
    for name, k, s, p in _ENC_CONVS:
        h = conv2d_cm(h, packed[name + "_wm"], packed[name + "_b"],
                      k, s, p, act="leaky_relu")
    # h: (L, B, 3, 2) -> PyTorch Flatten order (l, i, j) per sample
    h_flat = h.transpose(1, 0, 2, 3).reshape(B, -1)             # (B, L*6)

    # fused latent bottleneck: efc Linear + d1 (ConvTranspose on 1x1) + ReLU
    z, d1 = latent_bottleneck(h_flat, packed["efc_wm"], packed["efc_b"],
                              packed["d1_wm"], packed["d1_b"])
    kh, kw = _D1_KDIMS
    d = d1.reshape(B, -1, kh, kw).transpose(1, 0, 2, 3)         # (C, B, 7, 4)

    # decoder
    for name, k, s, p, act in _DEC_CONVTS:
        d = conv_transpose2d_cm(d, packed[name + "_wm"], packed[name + "_b"],
                                k, s, p, act=act)
    # d: (1, B, 15, 768)
    decode_emb = d.reshape(-1, 15, 768)
    logits = gemm_bias_act(decode_emb.reshape(-1, 768),
                           packed["fc_wm"], packed["fc_b"], act="none")
    return logits, decode_emb, z


# ---------------------------------------------------------------------------
# Pure-XLA reference (used only for the correctness check in __main__)
# ---------------------------------------------------------------------------
def reference_forward(params, embs):
    dn = ("NCHW", "OIHW", "NCHW")
    hp = lax.Precision.HIGHEST

    def conv(x, w, b, s, p):
        y = lax.conv_general_dilated(x, w, window_strides=s,
                                     padding=[(p[0], p[0]), (p[1], p[1])],
                                     dimension_numbers=dn, precision=hp)
        return y + b[None, :, None, None]

    def convT(x, w, b, s, p):
        kh, kw = w.shape[2], w.shape[3]
        wf = jnp.flip(w, (2, 3)).transpose(1, 0, 2, 3)
        y = lax.conv_general_dilated(x, wf, window_strides=(1, 1),
                                     padding=[(kh - 1 - p[0], kh - 1 - p[0]),
                                              (kw - 1 - p[1], kw - 1 - p[1])],
                                     lhs_dilation=s, dimension_numbers=dn,
                                     precision=hp)
        return y + b[None, :, None, None]

    lrelu = lambda t: jnp.where(t >= 0, t, 0.1 * t)
    B = embs.shape[0]
    x = embs.reshape(B, 1, embs.shape[-2], embs.shape[-1])
    h = lrelu(conv(x, params["e1_w"], params["e1_b"], (1, 16), (1, 8)))
    h = lrelu(conv(h, params["e2_w"], params["e2_b"], (1, 6), (0, 0)))
    h = lrelu(conv(h, params["e3_w"], params["e3_b"], (2, 2), (1, 1)))
    h = lrelu(conv(h, params["e4_w"], params["e4_b"], (2, 1), (0, 0)))
    z = jnp.dot(h.reshape(B, -1), params["efc_w"].T, precision=hp) + params["efc_b"]
    d = z.reshape(B, -1, 1, 1)
    d = jax.nn.relu(convT(d, params["d1_w"], params["d1_b"], (1, 1), (0, 0)))
    d = jax.nn.relu(convT(d, params["d2_w"], params["d2_b"], (2, 2), (1, 1)))
    d = jax.nn.relu(convT(d, params["d3_w"], params["d3_b"], (1, 6), (0, 0)))
    d = convT(d, params["d4_w"], params["d4_b"], (1, 16), (1, 8))
    decode_emb = d.reshape(-1, 15, 768)
    logits = jnp.dot(d.reshape(-1, 768), params["fc_w"].T, precision=hp) + params["fc_b"]
    return logits, decode_emb, z


# ---------------------------------------------------------------------------
if __name__ == "__main__":
    key = jax.random.PRNGKey(0)
    k_param, k_in = jax.random.split(key)

    B, SEQ, EMB = 2, 15, 768                 # seq_len=15, emb_size=768 fixed by architecture
    CHANNELS, LATENT, VOCAB = 16, 16, 256    # small constructor params

    params = init_params(k_param, channels=CHANNELS, latent=LATENT, vocab_size=VOCAB)
    embs = 0.1 * jax.random.normal(k_in, (B, SEQ, EMB), dtype=jnp.float32)

    # One-time weight packing, kept OUTSIDE the per-call jitted forward so the
    # per-forward path sees only the already-packed bf16 GEMM operands.
    packed = pack_params(params)

    fwd = jax.jit(text_vae_forward)
    logits, decode_emb, z = jax.block_until_ready(fwd(packed, embs))

    assert logits.shape == (B * SEQ, VOCAB)
    assert decode_emb.shape == (B, SEQ, EMB)
    assert z.shape == (B, LATENT)
    assert bool(jnp.all(jnp.isfinite(logits)))
    assert bool(jnp.all(jnp.isfinite(decode_emb)))
    assert bool(jnp.all(jnp.isfinite(z)))

    # Correctness check vs. pure-XLA f32 reference (loose tolerance: the Pallas
    # GEMMs use bf16 operands with f32 accumulation).
    r_logits, r_demb, r_z = jax.block_until_ready(jax.jit(reference_forward)(params, embs))
    for name, got, ref in (("z", z, r_z),
                           ("decode_emb", decode_emb, r_demb),
                           ("logits", logits, r_logits)):
        scale = float(jnp.max(jnp.abs(ref))) + 1e-12
        err = float(jnp.max(jnp.abs(got - ref)))
        assert err <= 0.1 * scale, f"{name}: max err {err:.3e} vs scale {scale:.3e}"

    print("KERNEL_OK")
</pallas_src>

<mosaic_0001>
module attributes {stable_mosaic.version = 11 : i64} {
  func.func @_gemm_bias_act_kernel(%arg0: memref<16x96xbf16, #tpu.memory_space<vmem>>, %arg1: memref<96x1440xf32, #tpu.memory_space<vmem>>, %arg2: memref<16x1xf32, #tpu.memory_space<vmem>>, %arg3: memref<16x1440xf32, #tpu.memory_space<vmem>>) attributes {dimension_semantics = [], scalar_prefetch = 0 : i64, scratch_operands = 0 : i64, tpu.core_type = #tpu.core_type<tc>} {
    %c0 = arith.constant 0 : index
    %c0_0 = arith.constant 0 : index
    %0 = vector.load %arg0[%c0, %c0_0] : memref<16x96xbf16, #tpu.memory_space<vmem>>, vector<16x96xbf16>
    %c0_1 = arith.constant 0 : index
    %c0_2 = arith.constant 0 : index
    %1 = vector.load %arg1[%c0_1, %c0_2] : memref<96x1440xf32, #tpu.memory_space<vmem>>, vector<96x1440xf32>
    %2 = arith.truncf %1 : vector<96x1440xf32> to vector<96x1440xbf16>
    %cst = arith.constant dense<0.000000e+00> : vector<16x1440xf32>
    %3 = tpu.matmul %0, %2, %cst {dimension_numbers = #tpu.dot_dimension_numbers<[1], [0], [0], [1], [0, 0, 1, 1], [], []>} : vector<16x96xbf16>, vector<96x1440xbf16>, vector<16x1440xf32> -> vector<16x1440xf32>
    %c0_3 = arith.constant 0 : index
    %c0_4 = arith.constant 0 : index
    %4 = vector.load %arg2[%c0_3, %c0_4] : memref<16x1xf32, #tpu.memory_space<vmem>>, vector<16x1xf32>
    %5 = vector.broadcast %4 : vector<16x1xf32> to vector<16x1440xf32>
    %6 = arith.addf %3, %5 : vector<16x1440xf32>
    %cst_5 = arith.constant 0.000000e+00 : f32
    %7 = vector.broadcast %cst_5 : f32 to vector<16x1440xf32>
    %8 = arith.cmpf oge, %6, %7 : vector<16x1440xf32>
    %cst_6 = arith.constant 1.000000e-01 : f32
    %9 = vector.broadcast %cst_6 : f32 to vector<16x1440xf32>
    %10 = arith.mulf %9, %6 : vector<16x1440xf32>
    %11 = arith.select %8, %6, %10 : vector<16x1440xi1>, vector<16x1440xf32>
    %c0_7 = arith.constant 0 : index
    %c0_8 = arith.constant 0 : index
    %12 = vector.load %arg3[%c0_7, %c0_8] : memref<16x1440xf32, #tpu.memory_space<vmem>>, vector<16x1440xf32>
    tpu.vector_store %arg3[%c0_7, %c0_8], %11 {strides = array<i32>} : memref<16x1440xf32, #tpu.memory_space<vmem>>, vector<16x1440xf32>,
    return
  }
}

module attributes {stable_mosaic.version = 11 : i64} {
  func.func @_gemm_bias_act_kernel(%arg0: memref<16x576xbf16, #tpu.memory_space<vmem>>, %arg1: memref<576x182xf32, #tpu.memory_space<vmem>>, %arg2: memref<16x1xf32, #tpu.memory_space<vmem>>, %arg3: memref<16x182xf32, #tpu.memory_space<vmem>>) attributes {dimension_semantics = [], scalar_prefetch = 0 : i64, scratch_operands = 0 : i64, tpu.core_type = #tpu.core_type<tc>} {
    %c0 = arith.constant 0 : index
    %c0_0 = arith.constant 0 : index
    %0 = vector.load %arg0[%c0, %c0_0] : memref<16x576xbf16, #tpu.memory_space<vmem>>, vector<16x576xbf16>
    %c0_1 = arith.constant 0 : index
    %c0_2 = arith.constant 0 : index
    %1 = vector.load %arg1[%c0_1, %c0_2] : memref<576x182xf32, #tpu.memory_space<vmem>>, vector<576x182xf32>
    %2 = arith.truncf %1 : vector<576x182xf32> to vector<576x182xbf16>
    %cst = arith.constant dense<0.000000e+00> : vector<16x182xf32>
    %3 = tpu.matmul %0, %2, %cst {dimension_numbers = #tpu.dot_dimension_numbers<[1], [0], [0], [1], [0, 0, 1, 1], [], []>} : vector<16x576xbf16>, vector<576x182xbf16>, vector<16x182xf32> -> vector<16x182xf32>
    %c0_3 = arith.constant 0 : index
    %c0_4 = arith.constant 0 : index
    %4 = vector.load %arg2[%c0_3, %c0_4] : memref<16x1xf32, #tpu.memory_space<vmem>>, vector<16x1xf32>
    %5 = vector.broadcast %4 : vector<16x1xf32> to vector<16x182xf32>
    %6 = arith.addf %3, %5 : vector<16x182xf32>
    %cst_5 = arith.constant 0.000000e+00 : f32
    %7 = vector.broadcast %cst_5 : f32 to vector<16x182xf32>
    %8 = arith.cmpf oge, %6, %7 : vector<16x182xf32>
    %cst_6 = arith.constant 1.000000e-01 : f32
    %9 = vector.broadcast %cst_6 : f32 to vector<16x182xf32>
    %10 = arith.mulf %9, %6 : vector<16x182xf32>
    %11 = arith.select %8, %6, %10 : vector<16x182xi1>, vector<16x182xf32>
    %c0_7 = arith.constant 0 : index
    %c0_8 = arith.constant 0 : index
    %12 = vector.load %arg3[%c0_7, %c0_8] : memref<16x182xf32, #tpu.memory_space<vmem>>, vector<16x182xf32>
    tpu.vector_store %arg3[%c0_7, %c0_8], %11 {strides = array<i32>} : memref<16x182xf32, #tpu.memory_space<vmem>>, vector<16x182xf32>,
    return
  }
}

module attributes {stable_mosaic.version = 11 : i64} {
  func.func @_gemm_bias_act_kernel(%arg0: memref<16x144xbf16, #tpu.memory_space<vmem>>, %arg1: memref<144x56xf32, #tpu.memory_space<vmem>>, %arg2: memref<16x1xf32, #tpu.memory_space<vmem>>, %arg3: memref<16x56xf32, #tpu.memory_space<vmem>>) attributes {dimension_semantics = [], scalar_prefetch = 0 : i64, scratch_operands = 0 : i64, tpu.core_type = #tpu.core_type<tc>} {
    %c0 = arith.constant 0 : index
    %c0_0 = arith.constant 0 : index
    %0 = vector.load %arg0[%c0, %c0_0] : memref<16x144xbf16, #tpu.memory_space<vmem>>, vector<16x144xbf16>
    %c0_1 = arith.constant 0 : index
    %c0_2 = arith.constant 0 : index
    %1 = vector.load %arg1[%c0_1, %c0_2] : memref<144x56xf32, #tpu.memory_space<vmem>>, vector<144x56xf32>
    %2 = arith.truncf %1 : vector<144x56xf32> to vector<144x56xbf16>
    %cst = arith.constant dense<0.000000e+00> : vector<16x56xf32>
    %3 = tpu.matmul %0, %2, %cst {dimension_numbers = #tpu.dot_dimension_numbers<[1], [0], [0], [1], [0, 0, 1, 1], [], []>} : vector<16x144xbf16>, vector<144x56xbf16>, vector<16x56xf32> -> vector<16x56xf32>
    %c0_3 = arith.constant 0 : index
    %c0_4 = arith.constant 0 : index
    %4 = vector.load %arg2[%c0_3, %c0_4] : memref<16x1xf32, #tpu.memory_space<vmem>>, vector<16x1xf32>
    %5 = vector.broadcast %4 : vector<16x1xf32> to vector<16x56xf32>
    %6 = arith.addf %3, %5 : vector<16x56xf32>
    %cst_5 = arith.constant 0.000000e+00 : f32
    %7 = vector.broadcast %cst_5 : f32 to vector<16x56xf32>
    %8 = arith.cmpf oge, %6, %7 : vector<16x56xf32>
    %cst_6 = arith.constant 1.000000e-01 : f32
    %9 = vector.broadcast %cst_6 : f32 to vector<16x56xf32>
    %10 = arith.mulf %9, %6 : vector<16x56xf32>
    %11 = arith.select %8, %6, %10 : vector<16x56xi1>, vector<16x56xf32>
    %c0_7 = arith.constant 0 : index
    %c0_8 = arith.constant 0 : index
    %12 = vector.load %arg3[%c0_7, %c0_8] : memref<16x56xf32, #tpu.memory_space<vmem>>, vector<16x56xf32>
    tpu.vector_store %arg3[%c0_7, %c0_8], %11 {strides = array<i32>} : memref<16x56xf32, #tpu.memory_space<vmem>>, vector<16x56xf32>,
    return
  }
}

module attributes {stable_mosaic.version = 11 : i64} {
  func.func @_gemm_bias_act_kernel(%arg0: memref<16x144xbf16, #tpu.memory_space<vmem>>, %arg1: memref<144x12xf32, #tpu.memory_space<vmem>>, %arg2: memref<16x1xf32, #tpu.memory_space<vmem>>, %arg3: memref<16x12xf32, #tpu.memory_space<vmem>>) attributes {dimension_semantics = [], scalar_prefetch = 0 : i64, scratch_operands = 0 : i64, tpu.core_type = #tpu.core_type<tc>} {
    %c0 = arith.constant 0 : index
    %c0_0 = arith.constant 0 : index
    %0 = vector.load %arg0[%c0, %c0_0] : memref<16x144xbf16, #tpu.memory_space<vmem>>, vector<16x144xbf16>
    %c0_1 = arith.constant 0 : index
    %c0_2 = arith.constant 0 : index
    %1 = vector.load %arg1[%c0_1, %c0_2] : memref<144x12xf32, #tpu.memory_space<vmem>>, vector<144x12xf32>
    %2 = arith.truncf %1 : vector<144x12xf32> to vector<144x12xbf16>
    %cst = arith.constant dense<0.000000e+00> : vector<16x12xf32>
    %3 = tpu.matmul %0, %2, %cst {dimension_numbers = #tpu.dot_dimension_numbers<[1], [0], [0], [1], [0, 0, 1, 1], [], []>} : vector<16x144xbf16>, vector<144x12xbf16>, vector<16x12xf32> -> vector<16x12xf32>
    %c0_3 = arith.constant 0 : index
    %c0_4 = arith.constant 0 : index
    %4 = vector.load %arg2[%c0_3, %c0_4] : memref<16x1xf32, #tpu.memory_space<vmem>>, vector<16x1xf32>
    %5 = vector.broadcast %4 : vector<16x1xf32> to vector<16x12xf32>
    %6 = arith.addf %3, %5 : vector<16x12xf32>
    %cst_5 = arith.constant 0.000000e+00 : f32
    %7 = vector.broadcast %cst_5 : f32 to vector<16x12xf32>
    %8 = arith.cmpf oge, %6, %7 : vector<16x12xf32>
    %cst_6 = arith.constant 1.000000e-01 : f32
    %9 = vector.broadcast %cst_6 : f32 to vector<16x12xf32>
    %10 = arith.mulf %9, %6 : vector<16x12xf32>
    %11 = arith.select %8, %6, %10 : vector<16x12xi1>, vector<16x12xf32>
    %c0_7 = arith.constant 0 : index
    %c0_8 = arith.constant 0 : index
    %12 = vector.load %arg3[%c0_7, %c0_8] : memref<16x12xf32, #tpu.memory_space<vmem>>, vector<16x12xf32>
    tpu.vector_store %arg3[%c0_7, %c0_8], %11 {strides = array<i32>} : memref<16x12xf32, #tpu.memory_space<vmem>>, vector<16x12xf32>,
    return
  }
}

module attributes {stable_mosaic.version = 11 : i64} {
  func.func @_latent_bottleneck_kernel(%arg0: memref<2x96xf32, #tpu.memory_space<vmem>>, %arg1: memref<96x16xbf16, #tpu.memory_space<vmem>>, %arg2: memref<1x16xf32, #tpu.memory_space<vmem>>, %arg3: memref<16x448xbf16, #tpu.memory_space<vmem>>, %arg4: memref<1x448xf32, #tpu.memory_space<vmem>>, %arg5: memref<2x16xf32, #tpu.memory_space<vmem>>, %arg6: memref<2x448xf32, #tpu.memory_space<vmem>>) attributes {dimension_semantics = [], scalar_prefetch = 0 : i64, scratch_operands = 0 : i64, tpu.core_type = #tpu.core_type<tc>} {
    %c0 = arith.constant 0 : index
    %c0_0 = arith.constant 0 : index
    %0 = vector.load %arg0[%c0, %c0_0] : memref<2x96xf32, #tpu.memory_space<vmem>>, vector<2x96xf32>
    %1 = arith.truncf %0 : vector<2x96xf32> to vector<2x96xbf16>
    %c0_1 = arith.constant 0 : index
    %c0_2 = arith.constant 0 : index
    %2 = vector.load %arg1[%c0_1, %c0_2] : memref<96x16xbf16, #tpu.memory_space<vmem>>, vector<96x16xbf16>
    %cst = arith.constant dense<0.000000e+00> : vector<2x16xf32>
    %3 = tpu.matmul %1, %2, %cst {dimension_numbers = #tpu.dot_dimension_numbers<[1], [0], [0], [1], [0, 0, 1, 1], [], []>} : vector<2x96xbf16>, vector<96x16xbf16>, vector<2x16xf32> -> vector<2x16xf32>
    %c0_3 = arith.constant 0 : index
    %c0_4 = arith.constant 0 : index
    %4 = vector.load %arg2[%c0_3, %c0_4] : memref<1x16xf32, #tpu.memory_space<vmem>>, vector<1x16xf32>
    %5 = vector.broadcast %4 : vector<1x16xf32> to vector<2x16xf32>
    %6 = arith.addf %3, %5 : vector<2x16xf32>
    %c0_5 = arith.constant 0 : index
    %c0_6 = arith.constant 0 : index
    %7 = vector.load %arg5[%c0_5, %c0_6] : memref<2x16xf32, #tpu.memory_space<vmem>>, vector<2x16xf32>
    tpu.vector_store %arg5[%c0_5, %c0_6], %6 {strides = array<i32>} : memref<2x16xf32, #tpu.memory_space<vmem>>, vector<2x16xf32>,
    %8 = arith.truncf %6 : vector<2x16xf32> to vector<2x16xbf16>
    %c0_7 = arith.constant 0 : index
    %c0_8 = arith.constant 0 : index
    %9 = vector.load %arg3[%c0_7, %c0_8] : memref<16x448xbf16, #tpu.memory_space<vmem>>, vector<16x448xbf16>
    %cst_9 = arith.constant dense<0.000000e+00> : vector<2x448xf32>
    %10 = tpu.matmul %8, %9, %cst_9 {dimension_numbers = #tpu.dot_dimension_numbers<[1], [0], [0], [1], [0, 0, 1, 1], [], []>} : vector<2x16xbf16>, vector<16x448xbf16>, vector<2x448xf32> -> vector<2x448xf32>
    %c0_10 = arith.constant 0 : index
    %c0_11 = arith.constant 0 : index
    %11 = vector.load %arg4[%c0_10, %c0_11] : memref<1x448xf32, #tpu.memory_space<vmem>>, vector<1x448xf32>
    %12 = vector.broadcast %11 : vector<1x448xf32> to vector<2x448xf32>
    %13 = arith.addf %10, %12 : vector<2x448xf32>
    %cst_12 = arith.constant 0.000000e+00 : f32
    %14 = vector.broadcast %cst_12 : f32 to vector<2x448xf32>
    %15 = arith.maximumf %13, %14 : vector<2x448xf32>
    %c0_13 = arith.constant 0 : index
    %c0_14 = arith.constant 0 : index
    %16 = vector.load %arg6[%c0_13, %c0_14] : memref<2x448xf32, #tpu.memory_space<vmem>>, vector<2x448xf32>
    tpu.vector_store %arg6[%c0_13, %c0_14], %15 {strides = array<i32>} : memref<2x448xf32, #tpu.memory_space<vmem>>, vector<2x448xf32>,
    return
  }
}

module attributes {stable_mosaic.version = 11 : i64} {
  func.func @_gemm_bias_act_kernel(%arg0: memref<64x64xbf16, #tpu.memory_space<vmem>>, %arg1: memref<64x56xf32, #tpu.memory_space<vmem>>, %arg2: memref<64x1xf32, #tpu.memory_space<vmem>>, %arg3: memref<64x56xf32, #tpu.memory_space<vmem>>) attributes {dimension_semantics = [], scalar_prefetch = 0 : i64, scratch_operands = 0 : i64, tpu.core_type = #tpu.core_type<tc>} {
    %c0 = arith.constant 0 : index
    %c0_0 = arith.constant 0 : index
    %0 = vector.load %arg0[%c0, %c0_0] : memref<64x64xbf16, #tpu.memory_space<vmem>>, vector<64x64xbf16>
    %c0_1 = arith.constant 0 : index
    %c0_2 = arith.constant 0 : index
    %1 = vector.load %arg1[%c0_1, %c0_2] : memref<64x56xf32, #tpu.memory_space<vmem>>, vector<64x56xf32>
    %2 = arith.truncf %1 : vector<64x56xf32> to vector<64x56xbf16>
    %cst = arith.constant dense<0.000000e+00> : vector<64x56xf32>
    %3 = tpu.matmul %0, %2, %cst {dimension_numbers = #tpu.dot_dimension_numbers<[1], [0], [0], [1], [0, 0, 1, 1], [], []>} : vector<64x64xbf16>, vector<64x56xbf16>, vector<64x56xf32> -> vector<64x56xf32>
    %c0_3 = arith.constant 0 : index
    %c0_4 = arith.constant 0 : index
    %4 = vector.load %arg2[%c0_3, %c0_4] : memref<64x1xf32, #tpu.memory_space<vmem>>, vector<64x1xf32>
    %5 = vector.broadcast %4 : vector<64x1xf32> to vector<64x56xf32>
    %6 = arith.addf %3, %5 : vector<64x56xf32>
    %cst_5 = arith.constant 0.000000e+00 : f32
    %7 = vector.broadcast %cst_5 : f32 to vector<64x56xf32>
    %8 = arith.maximumf %6, %7 : vector<64x56xf32>
    %c0_6 = arith.constant 0 : index
    %c0_7 = arith.constant 0 : index
    %9 = vector.load %arg3[%c0_6, %c0_7] : memref<64x56xf32, #tpu.memory_space<vmem>>, vector<64x56xf32>
    tpu.vector_store %arg3[%c0_6, %c0_7], %8 {strides = array<i32>} : memref<64x56xf32, #tpu.memory_space<vmem>>, vector<64x56xf32>,
    return
  }
}

module attributes {stable_mosaic.version = 11 : i64} {
  func.func @_gemm_bias_act_kernel(%arg0: memref<96x96xbf16, #tpu.memory_space<vmem>>, %arg1: memref<96x240xf32, #tpu.memory_space<vmem>>, %arg2: memref<96x1xf32, #tpu.memory_space<vmem>>, %arg3: memref<96x240xf32, #tpu.memory_space<vmem>>) attributes {dimension_semantics = [], scalar_prefetch = 0 : i64, scratch_operands = 0 : i64, tpu.core_type = #tpu.core_type<tc>} {
    %c0 = arith.constant 0 : index
    %c0_0 = arith.constant 0 : index
    %0 = vector.load %arg0[%c0, %c0_0] : memref<96x96xbf16, #tpu.memory_space<vmem>>, vector<96x96xbf16>
    %c0_1 = arith.constant 0 : index
    %c0_2 = arith.constant 0 : index
    %1 = vector.load %arg1[%c0_1, %c0_2] : memref<96x240xf32, #tpu.memory_space<vmem>>, vector<96x240xf32>
    %2 = arith.truncf %1 : vector<96x240xf32> to vector<96x240xbf16>
    %cst = arith.constant dense<0.000000e+00> : vector<96x240xf32>
    %3 = tpu.matmul %0, %2, %cst {dimension_numbers = #tpu.dot_dimension_numbers<[1], [0], [0], [1], [0, 0, 1, 1], [], []>} : vector<96x96xbf16>, vector<96x240xbf16>, vector<96x240xf32> -> vector<96x240xf32>
    %c0_3 = arith.constant 0 : index
    %c0_4 = arith.constant 0 : index
    %4 = vector.load %arg2[%c0_3, %c0_4] : memref<96x1xf32, #tpu.memory_space<vmem>>, vector<96x1xf32>
    %5 = vector.broadcast %4 : vector<96x1xf32> to vector<96x240xf32>
    %6 = arith.addf %3, %5 : vector<96x240xf32>
    %cst_5 = arith.constant 0.000000e+00 : f32
    %7 = vector.broadcast %cst_5 : f32 to vector<96x240xf32>
    %8 = arith.maximumf %6, %7 : vector<96x240xf32>
    %c0_6 = arith.constant 0 : index
    %c0_7 = arith.constant 0 : index
    %9 = vector.load %arg3[%c0_6, %c0_7] : memref<96x240xf32, #tpu.memory_space<vmem>>, vector<96x240xf32>
    tpu.vector_store %arg3[%c0_6, %c0_7], %8 {strides = array<i32>} : memref<96x240xf32, #tpu.memory_space<vmem>>, vector<96x240xf32>,
    return
  }
}

module attributes {stable_mosaic.version = 11 : i64} {
  func.func @_gemm_bias_act_kernel(%arg0: memref<16x96xbf16, #tpu.memory_space<vmem>>, %arg1: memref<96x1470xf32, #tpu.memory_space<vmem>>, %arg2: memref<16x1xf32, #tpu.memory_space<vmem>>, %arg3: memref<16x1470xf32, #tpu.memory_space<vmem>>) attributes {dimension_semantics = [], scalar_prefetch = 0 : i64, scratch_operands = 0 : i64, tpu.core_type = #tpu.core_type<tc>} {
    %c0 = arith.constant 0 : index
    %c0_0 = arith.constant 0 : index
    %0 = vector.load %arg0[%c0, %c0_0] : memref<16x96xbf16, #tpu.memory_space<vmem>>, vector<16x96xbf16>
    %c0_1 = arith.constant 0 : index
    %c0_2 = arith.constant 0 : index
    %1 = vector.load %arg1[%c0_1, %c0_2] : memref<96x1470xf32, #tpu.memory_space<vmem>>, vector<96x1470xf32>
    %2 = arith.truncf %1 : vector<96x1470xf32> to vector<96x1470xbf16>
    %cst = arith.constant dense<0.000000e+00> : vector<16x1470xf32>
    %3 = tpu.matmul %0, %2, %cst {dimension_numbers = #tpu.dot_dimension_numbers<[1], [0], [0], [1], [0, 0, 1, 1], [], []>} : vector<16x96xbf16>, vector<96x1470xbf16>, vector<16x1470xf32> -> vector<16x1470xf32>
    %c0_3 = arith.constant 0 : index
    %c0_4 = arith.constant 0 : index
    %4 = vector.load %arg2[%c0_3, %c0_4] : memref<16x1xf32, #tpu.memory_space<vmem>>, vector<16x1xf32>
    %5 = vector.broadcast %4 : vector<16x1xf32> to vector<16x1470xf32>
    %6 = arith.addf %3, %5 : vector<16x1470xf32>
    %c0_5 = arith.constant 0 : index
    %c0_6 = arith.constant 0 : index
    %7 = vector.load %arg3[%c0_5, %c0_6] : memref<16x1470xf32, #tpu.memory_space<vmem>>, vector<16x1470xf32>
    tpu.vector_store %arg3[%c0_5, %c0_6], %6 {strides = array<i32>} : memref<16x1470xf32, #tpu.memory_space<vmem>>, vector<16x1470xf32>,
    return
  }
}

module attributes {stable_mosaic.version = 11 : i64} {
  func.func @_gemm_bias_act_kernel(%arg0: memref<30x768xf32, #tpu.memory_space<vmem>>, %arg1: memref<768x256xbf16, #tpu.memory_space<vmem>>, %arg2: memref<1x256xf32, #tpu.memory_space<vmem>>, %arg3: memref<30x256xf32, #tpu.memory_space<vmem>>) attributes {dimension_semantics = [], scalar_prefetch = 0 : i64, scratch_operands = 0 : i64, tpu.core_type = #tpu.core_type<tc>} {
    %c0 = arith.constant 0 : index
    %c0_0 = arith.constant 0 : index
    %0 = vector.load %arg0[%c0, %c0_0] : memref<30x768xf32, #tpu.memory_space<vmem>>, vector<30x768xf32>
    %1 = arith.truncf %0 : vector<30x768xf32> to vector<30x768xbf16>
    %c0_1 = arith.constant 0 : index
    %c0_2 = arith.constant 0 : index
    %2 = vector.load %arg1[%c0_1, %c0_2] : memref<768x256xbf16, #tpu.memory_space<vmem>>, vector<768x256xbf16>
    %cst = arith.constant dense<0.000000e+00> : vector<30x256xf32>
    %3 = tpu.matmul %1, %2, %cst {dimension_numbers = #tpu.dot_dimension_numbers<[1], [0], [0], [1], [0, 0, 1, 1], [], []>} : vector<30x768xbf16>, vector<768x256xbf16>, vector<30x256xf32> -> vector<30x256xf32>
    %c0_3 = arith.constant 0 : index
    %c0_4 = arith.constant 0 : index
    %4 = vector.load %arg2[%c0_3, %c0_4] : memref<1x256xf32, #tpu.memory_space<vmem>>, vector<1x256xf32>
    %5 = vector.broadcast %4 : vector<1x256xf32> to vector<30x256xf32>
    %6 = arith.addf %3, %5 : vector<30x256xf32>
    %c0_5 = arith.constant 0 : index
    %c0_6 = arith.constant 0 : index
    %7 = vector.load %arg3[%c0_5, %c0_6] : memref<30x256xf32, #tpu.memory_space<vmem>>, vector<30x256xf32>
    tpu.vector_store %arg3[%c0_5, %c0_6], %6 {strides = array<i32>} : memref<30x256xf32, #tpu.memory_space<vmem>>, vector<30x256xf32>,
    return
  }
}

</mosaic_0001>

<llo_original>
// kernel: text_vae_forward.9
$region0: #{text_vae_forward.9}
  #allocation0 [shape = 'u32[]', space=smem, size = 0x4, offset = 0x4, fixed_abs, tag = 'smem constant byte address 0x4 - core index']
  #allocation1 [shape = 'u32[72,128]{1,0:T(1,128)}', space=vmem, size = 0x9000, scoped, tag = 'internal scratch']
  %s0 = inlined_call_operand.vmem [shape: bf16[16,96], index: 0, kind: input, shape index: {}]
  %s1 = inlined_call_operand.vmem [shape: f32[96,1440], index: 1, kind: input, shape index: {}]
  %s2 = inlined_call_operand.vmem [shape: f32[16,1], index: 2, kind: input, shape index: {}]
  %s3 = inlined_call_operand.vmem [shape: f32[16,1440], index: 3, kind: output, shape index: {}]
  %s4 = sld [smem:[#allocation0]]
  $region22: #{text_vae_forward.9} parent=0
    _
  %s6 = ssub.s32 1, %s4
  %s7 = scalar_select 0, %s6, %s4
  // Predicated region
  $region2: #{text_vae_forward.9} parent=0 // pred_check
    _
  $region3: #{text_vae_forward.9} parent=0 // pred_check_branch
    %9 = sbr.rel (0) target = $region5
  $region4: #{text_vae_forward.9} parent=0 // pred_region
    _
  $region5: #{text_vae_forward.9} parent=0 // pred_fallthru
    _
  // Predicated region
  $region6: #{text_vae_forward.9} parent=0 // pred_check
    _
  $region7: #{text_vae_forward.9} parent=0 // pred_check_branch
    %11 = sbr.rel (0) target = $region9
  $region8: #{text_vae_forward.9} parent=0 // pred_region
    _
  $region9: #{text_vae_forward.9} parent=0 // pred_fallthru
    _
  // Predicated region
  $region10: #{text_vae_forward.9} parent=0 // pred_check
    _
  $region11: #{text_vae_forward.9} parent=0 // pred_check_branch
    %13 = sbr.rel (0) target = $region13
  $region12: #{text_vae_forward.9} parent=0 // pred_region
    _
  $region13: #{text_vae_forward.9} parent=0 // pred_fallthru
    _
  %v15 = vld [vmem:[%s0] sm:$0xf]
  %v16 = vld [vmem:[%s0 + $0x4] sm:$0xf]
  %v17 = vld [vmem:[%s1] sm:$0xff]
  %v18 = vld [vmem:[%s1 + $0x8] sm:$0xff]
  %v19 = vld [vmem:[%s1 + $0x10] sm:$0xff]
  %v20 = vld [vmem:[%s1 + $0x18] sm:$0xff]
  %v21 = vld [vmem:[%s1 + $0x20] sm:$0xff]
  %v22 = vld [vmem:[%s1 + $0x28] sm:$0xff]
  %v23 = vld [vmem:[%s1 + $0x30] sm:$0xff]
  %v24 = vld [vmem:[%s1 + $0x38] sm:$0xff]
  %v25 = vld [vmem:[%s1 + $0x40] sm:$0xff]
  %v26 = vld [vmem:[%s1 + $0x48] sm:$0xff]
  %v27 = vld [vmem:[%s1 + $0x50] sm:$0xff]
  %v28 = vld [vmem:[%s1 + $0x58] sm:$0xff]
  %v29 = vld [vmem:[%s1 + $0x60] sm:$0xff]
  %v30 = vld [vmem:[%s1 + $0x68] sm:$0xff]
  %v31 = vld [vmem:[%s1 + $0x70] sm:$0xff]
  %v32 = vld [vmem:[%s1 + $0x78] sm:$0xff]
  %v33 = vld [vmem:[%s1 + $0x80] sm:$0xff]
  %v34 = vld [vmem:[%s1 + $0x88] sm:$0xff]
  %v35 = vld [vmem:[%s1 + $0x90] sm:$0xff]
  %v36 = vld [vmem:[%s1 + $0x98] sm:$0xff]
  %v37 = vld [vmem:[%s1 + $0xa0] sm:$0xff]
  %v38 = vld [vmem:[%s1 + $0xa8] sm:$0xff]
  %v39 = vld [vmem:[%s1 + $0xb0] sm:$0xff]
  %v40 = vld [vmem:[%s1 + $0xb8] sm:$0xff]
  %v41 = vld [vmem:[%s1 + $0xc0] sm:$0xff]
  %v42 = vld [vmem:[%s1 + $0xc8] sm:$0xff]
  %v43 = vld [vmem:[%s1 + $0xd0] sm:$0xff]
  %v44 = vld [vmem:[%s1 + $0xd8] sm:$0xff]
  %v45 = vld [vmem:[%s1 + $0xe0] sm:$0xff]
  %v46 = vld [vmem:[%s1 + $0xe8] sm:$0xff]
  %v47 = vld [vmem:[%s1 + $0xf0] sm:$0xff]
  %v48 = vld [vmem:[%s1 + $0xf8] sm:$0xff]
  %v49 = vld [vmem:[%s1 + $0x100] sm:$0xff]
  %v50 = vld [vmem:[%s1 + $0x108] sm:$0xff]
  %v51 = vld [vmem:[%s1 + $0x110] sm:$0xff]
  %v52 = vld [vmem:[%s1 + $0x118] sm:$0xff]
  %v53 = vld [vmem:[%s1 + $0x120] sm:$0xff]
  %v54 = vld [vmem:[%s1 + $0x128] sm:$0xff]
  %v55 = vld [vmem:[%s1 + $0x130] sm:$0xff]
  %v56 = vld [vmem:[%s1 + $0x138] sm:$0xff]
  %v57 = vld [vmem:[%s1 + $0x140] sm:$0xff]
  %v58 = vld [vmem:[%s1 + $0x148] sm:$0xff]
  %v59 = vld [vmem:[%s1 + $0x150] sm:$0xff]
  %v60 = vld [vmem:[%s1 + $0x158] sm:$0xff]
  %v61 = vld [vmem:[%s1 + $0x160] sm:$0xff]
  %v62 = vld [vmem:[%s1 + $0x168] sm:$0xff]
  %v63 = vld [vmem:[%s1 + $0x170] sm:$0xff]
  %v64 = vld [vmem:[%s1 + $0x178] sm:$0xff]
  %v65 = vld [vmem:[%s1 + $0x180] sm:$0xff]
  %v66 = vld [vmem:[%s1 + $0x188] sm:$0xff]
  %v67 = vld [vmem:[%s1 + $0x190] sm:$0xff]
  %v68 = vld [vmem:[%s1 + $0x198] sm:$0xff]
  %v69 = vld [vmem:[%s1 + $0x1a0] sm:$0xff]
  %v70 = vld [vmem:[%s1 + $0x1a8] sm:$0xff]
  %v71 = vld [vmem:[%s1 + $0x1b0] sm:$0xff]
  %v72 = vld [vmem:[%s1 + $0x1b8] sm:$0xff]
  %v73 = vld [vmem:[%s1 + $0x1c0] sm:$0xff]
  %v74 = vld [vmem:[%s1 + $0x1c8] sm:$0xff]
  %v75 = vld [vmem:[%s1 + $0x1d0] sm:$0xff]
  %v76 = vld [vmem:[%s1 + $0x1d8] sm:$0xff]
  %v77 = vld [vmem:[%s1 + $0x1e0] sm:$0xff]
  %v78 = vld [vmem:[%s1 + $0x1e8] sm:$0xff]
  %v79 = vld [vmem:[%s1 + $0x1f0] sm:$0xff]
  %v80 = vld [vmem:[%s1 + $0x1f8] sm:$0xff]
  %v81 = vld [vmem:[%s1 + $0x200] sm:$0xff]
  %v82 = vld [vmem:[%s1 + $0x208] sm:$0xff]
  %v83 = vld [vmem:[%s1 + $0x210] sm:$0xff]
  %v84 = vld [vmem:[%s1 + $0x218] sm:$0xff]
  %v85 = vld [vmem:[%s1 + $0x220] sm:$0xff]
  %v86 = vld [vmem:[%s1 + $0x228] sm:$0xff]
  %v87 = vld [vmem:[%s1 + $0x230] sm:$0xff]
  %v88 = vld [vmem:[%s1 + $0x238] sm:$0xff]
  %v89 = vld [vmem:[%s1 + $0x240] sm:$0xff]
  %v90 = vld [vmem:[%s1 + $0x248] sm:$0xff]
  %v91 = vld [vmem:[%s1 + $0x250] sm:$0xff]
  %v92 = vld [vmem:[%s1 + $0x258] sm:$0xff]
  %v93 = vld [vmem:[%s1 + $0x260] sm:$0xff]
  %v94 = vld [vmem:[%s1 + $0x268] sm:$0xff]
  %v95 = vld [vmem:[%s1 + $0x270] sm:$0xff]
  %v96 = vld [vmem:[%s1 + $0x278] sm:$0xff]
  %v97 = vld [vmem:[%s1 + $0x280] sm:$0xff]
  %v98 = vld [vmem:[%s1 + $0x288] sm:$0xff]
  %v99 = vld [vmem:[%s1 + $0x290] sm:$0xff]
  %v100 = vld [vmem:[%s1 + $0x298] sm:$0xff]
  %v101 = vld [vmem:[%s1 + $0x2a0] sm:$0xff]
  %v102 = vld [vmem:[%s1 + $0x2a8] sm:$0xff]
  %v103 = vld [vmem:[%s1 + $0x2b0] sm:$0xff]
  %v104 = vld [vmem:[%s1 + $0x2b8] sm:$0xff]
  %v105 = vld [vmem:[%s1 + $0x2c0] sm:$0xff]
  %v106 = vld [vmem:[%s1 + $0x2c8] sm:$0xff]
  %v107 = vld [vmem:[%s1 + $0x2d0] sm:$0xff]
  %v108 = vld [vmem:[%s1 + $0x2d8] sm:$0xff]
  %v109 = vld [vmem:[%s1 + $0x2e0] sm:$0xff]
  %v110 = vld [vmem:[%s1 + $0x2e8] sm:$0xff]
  %v111 = vld [vmem:[%s1 + $0x2f0] sm:$0xff]
  %v112 = vld [vmem:[%s1 + $0x2f8] sm:$0xff]
  %v113 = vld [vmem:[%s1 + $0x300] sm:$0xff]
  %v114 = vld [vmem:[%s1 + $0x308] sm:$0xff]
  %v115 = vld [vmem:[%s1 + $0x310] sm:$0xff]
  %v116 = vld [vmem:[%s1 + $0x318] sm:$0xff]
  %v117 = vld [vmem:[%s1 + $0x320] sm:$0xff]
  %v118 = vld [vmem:[%s1 + $0x328] sm:$0xff]
  %v119 = vld [vmem:[%s1 + $0x330] sm:$0xff]
  %v120 = vld [vmem:[%s1 + $0x338] sm:$0xff]
  %v121 = vld [vmem:[%s1 + $0x340] sm:$0xff]
  %v122 = vld [vmem:[%s1 + $0x348] sm:$0xff]
  %v123 = vld [vmem:[%s1 + $0x350] sm:$0xff]
  %v124 = vld [vmem:[%s1 + $0x358] sm:$0xff]
  %v125 = vld [vmem:[%s1 + $0x360] sm:$0xff]
  %v126 = vld [vmem:[%s1 + $0x368] sm:$0xff]
  %v127 = vld [vmem:[%s1 + $0x370] sm:$0xff]
  %v128 = vld [vmem:[%s1 + $0x378] sm:$0xff]
  %v129 = vld [vmem:[%s1 + $0x380] sm:$0xff]
  %v130 = vld [vmem:[%s1 + $0x388] sm:$0xff]
  %v131 = vld [vmem:[%s1 + $0x390] sm:$0xff]
  %v132 = vld [vmem:[%s1 + $0x398] sm:$0xff]
  %v133 = vld [vmem:[%s1 + $0x3a0] sm:$0xff]
  %v134 = vld [vmem:[%s1 + $0x3a8] sm:$0xff]
  %v135 = vld [vmem:[%s1 + $0x3b0] sm:$0xff]
  %v136 = vld [vmem:[%s1 + $0x3b8] sm:$0xff]
  %v137 = vld [vmem:[%s1 + $0x3c0] sm:$0xff]
  %v138 = vld [vmem:[%s1 + $0x3c8] sm:$0xff]
  %v139 = vld [vmem:[%s1 + $0x3d0] sm:$0xff]
  %v140 = vld [vmem:[%s1 + $0x3d8] sm:$0xff]
  %v141 = vld [vmem:[%s1 + $0x3e0] sm:$0xff]
  %v142 = vld [vmem:[%s1 + $0x3e8] sm:$0xff]
  %v143 = vld [vmem:[%s1 + $0x3f0] sm:$0xff]
  %v144 = vld [vmem:[%s1 + $0x3f8] sm:$0xff]
  %v145 = vld [vmem:[%s1 + $0x400] sm:$0xff]
  %v146 = vld [vmem:[%s1 + $0x408] sm:$0xff]
  %v147 = vld [vmem:[%s1 + $0x410] sm:$0xff]
  %v148 = vld [vmem:[%s1 + $0x418] sm:$0xff]
  %v149 = vld [vmem:[%s1 + $0x420] sm:$0xff]
  %v150 = vld [vmem:[%s1 + $0x428] sm:$0xff]
  %v151 = vld [vmem:[%s1 + $0x430] sm:$0xff]
  %v152 = vld [vmem:[%s1 + $0x438] sm:$0xff]
  %v153 = vld [vmem:[%s1 + $0x440] sm:$0xff]
  %v154 = vld [vmem:[%s1 + $0x448] sm:$0xff]
  %v155 = vld [vmem:[%s1 + $0x450] sm:$0xff]
  %v156 = vld [vmem:[%s1 + $0x458] sm:$0xff]
  %v157 = vld [vmem:[%s1 + $0x460] sm:$0xff]
  %v158 = vld [vmem:[%s1 + $0x468] sm:$0xff]
  %v159 = vld [vmem:[%s1 + $0x470] sm:$0xff]
  %v160 = vld [vmem:[%s1 + $0x478] sm:$0xff]
  %v161 = vpack.c.bf16 %v29, %v17
  %v162 = vpack.c.bf16 %v30, %v18
  %v163 = vpack.c.bf16 %v31, %v19
  %v164 = vpack.c.bf16 %v32, %v20
  %v165 = vpack.c.bf16 %v33, %v21
  %v166 = vpack.c.bf16 %v34, %v22
  %v167 = vpack.c.bf16 %v35, %v23
  %v168 = vpack.c.bf16 %v36, %v24
  %v169 = vpack.c.bf16 %v37, %v25
  %v170 = vpack.c.bf16 %v38, %v26
  %v171 = vpack.c.bf16 %v39, %v27
  %v172 = vpack.c.bf16 %v40, %v28
  %v173 = vpack.c.bf16 %v53, %v41
  %v174 = vpack.c.bf16 %v54, %v42
  %v175 = vpack.c.bf16 %v55, %v43
  %v176 = vpack.c.bf16 %v56, %v44
  %v177 = vpack.c.bf16 %v57, %v45
  %v178 = vpack.c.bf16 %v58, %v46
  %v179 = vpack.c.bf16 %v59, %v47
  %v180 = vpack.c.bf16 %v60, %v48
  %v181 = vpack.c.bf16 %v61, %v49
  %v182 = vpack.c.bf16 %v62, %v50
  %v183 = vpack.c.bf16 %v63, %v51
  %v184 = vpack.c.bf16 %v64, %v52
  %v185 = vpack.c.bf16 %v77, %v65
  %v186 = vpack.c.bf16 %v78, %v66
  %v187 = vpack.c.bf16 %v79, %v67
  %v188 = vpack.c.bf16 %v80, %v68
  %v189 = vpack.c.bf16 %v81, %v69
  %v190 = vpack.c.bf16 %v82, %v70
  %v191 = vpack.c.bf16 %v83, %v71
  %v192 = vpack.c.bf16 %v84, %v72
  %v193 = vpack.c.bf16 %v85, %v73
  %v194 = vpack.c.bf16 %v86, %v74
  %v195 = vpack.c.bf16 %v87, %v75
  %v196 = vpack.c.bf16 %v88, %v76
  %v197 = vpack.c.bf16 %v101, %v89
  %v198 = vpack.c.bf16 %v102, %v90
  %v199 = vpack.c.bf16 %v103, %v91
  %v200 = vpack.c.bf16 %v104, %v92
  %v201 = vpack.c.bf16 %v105, %v93
  %v202 = vpack.c.bf16 %v106, %v94
  %v203 = vpack.c.bf16 %v107, %v95
  %v204 = vpack.c.bf16 %v108, %v96
  %v205 = vpack.c.bf16 %v109, %v97
  %v206 = vpack.c.bf16 %v110, %v98
  %v207 = vpack.c.bf16 %v111, %v99
  %v208 = vpack.c.bf16 %v112, %v100
  %v209 = vpack.c.bf16 %v125, %v113
  %v210 = vpack.c.bf16 %v126, %v114
  %v211 = vpack.c.bf16 %v127, %v115
  %v212 = vpack.c.bf16 %v128, %v116
  %v213 = vpack.c.bf16 %v129, %v117
  %v214 = vpack.c.bf16 %v130, %v118
  %v215 = vpack.c.bf16 %v131, %v119
  %v216 = vpack.c.bf16 %v132, %v120
  %v217 = vpack.c.bf16 %v133, %v121
  %v218 = vpack.c.bf16 %v134, %v122
  %v219 = vpack.c.bf16 %v135, %v123
  %v220 = vpack.c.bf16 %v136, %v124
  %v221 = vpack.c.bf16 %v149, %v137
  %v222 = vpack.c.bf16 %v150, %v138
  %v223 = vpack.c.bf16 %v151, %v139
  %v224 = vpack.c.bf16 %v152, %v140
  %v225 = vpack.c.bf16 %v153, %v141
  %v226 = vpack.c.bf16 %v154, %v142
  %v227 = vpack.c.bf16 %v155, %v143
  %v228 = vpack.c.bf16 %v156, %v144
  %v229 = vpack.c.bf16 %v157, %v145
  %v230 = vpack.c.bf16 %v158, %v146
  %v231 = vpack.c.bf16 %v159, %v147
  %v232 = vpack.c.bf16 %v160, %v148
  %v233 = vld [vmem:[%s2] sm:$0xff]
  %v234 = vld [vmem:[%s2 + $0x8] sm:$0xff]
  %236 = vset.pattern.permute.xlu0 0
  %237 = vperm.xlu0 %236, %v233
  %v238 = vpop.permute.xlu0 %237
  %241 = vset.pattern.permute.xlu0 0
  %242 = vperm.xlu0 %241, %v234
  %v243 = vpop.permute.xlu0 %242
  %v247 = vunpack.c.l.b16 %v15
  %v248 = vunpack.c.l.b16 %v16
  %v249 = vpack.c.b16 %v248, %v247
  %vm250 = vcmask 785408
  %v252 = vsel %vm250, %v249, 0
  %254 = vmatpush.bf16.msra.mxu0 0
  %255 = vmatpush.bf16.msra.mxu0 0
  %256 = vmatpush.bf16.msra.mxu0 %v221
  %257 = vmatpush.bf16.msra.mxu0 %v209
  %258 = vmatpush.bf16.msra.mxu0 %v197
  %259 = vmatpush.bf16.msra.mxu0 %v185
  %260 = vmatpush.bf16.msra.mxu0 %v173
  %261 = vmatpush.bf16.msra.mxu0 %v161
  %262 = vmatmul.bf16.gmra.mxu0 %v252
  %v263 = vpop.f32.mrf.mxu0
  %v264 = vadd.f32 %v238, %v263
  %v265 = vpop.f32.mrf.mxu0
  %v266 = vadd.f32 %v243, %v265
  %267 = vdwg.mxu0
  %268 = vmatpush.bf16.msra.mxu0 0
  %269 = vmatpush.bf16.msra.mxu0 0
  %270 = vmatpush.bf16.msra.mxu0 %v222
  %271 = vmatpush.bf16.msra.mxu0 %v210
  %272 = vmatpush.bf16.msra.mxu0 %v198
  %273 = vmatpush.bf16.msra.mxu0 %v186
  %274 = vmatpush.bf16.msra.mxu0 %v174
  %275 = vmatpush.bf16.msra.mxu0 %v162
  %276 = vmatmul.bf16.gmra.mxu0 %v252
  %v277 = vpop.f32.mrf.mxu0
  %v278 = vadd.f32 %v238, %v277
  %v279 = vpop.f32.mrf.mxu0
  %v280 = vadd.f32 %v243, %v279
  %281 = vdwg.mxu0
  %282 = vmatpush.bf16.msra.mxu0 0
  %283 = vmatpush.bf16.msra.mxu0 0
  %284 = vmatpush.bf16.msra.mxu0 %v223
  %285 = vmatpush.bf16.msra.mxu0 %v211
  %286 = vmatpush.bf16.msra.mxu0 %v199
  %287 = vmatpush.bf16.msra.mxu0 %v187
  %288 = vmatpush.bf16.msra.mxu0 %v175
  %289 = vmatpush.bf16.msra.mxu0 %v163
  %290 = vmatmul.bf16.gmra.mxu0 %v252
  %v291 = vpop.f32.mrf.mxu0
  %v292 = vadd.f32 %v238, %v291
  %v293 = vpop.f32.mrf.mxu0
  %v294 = vadd.f32 %v243, %v293
  %295 = vdwg.mxu0
  %296 = vmatpush.bf16.msra.mxu0 0
  %297 = vmatpush.bf16.msra.mxu0 0
  %298 = vmatpush.bf16.msra.mxu0 %v224
  %299 = vmatpush.bf16.msra.mxu0 %v212
  %300 = vmatpush.bf16.msra.mxu0 %v200
  %301 = vmatpush.bf16.msra.mxu0 %v188
  %302 = vmatpush.bf16.msra.mxu0 %v176
  %303 = vmatpush.bf16.msra.mxu0 %v164
  %304 = vmatmul.bf16.gmra.mxu0 %v252
  %v305 = vpop.f32.mrf.mxu0
  %v306 = vadd.f32 %v238, %v305
  %v307 = vpop.f32.mrf.mxu0
  %v308 = vadd.f32 %v243, %v307
  %309 = vdwg.mxu0
  %310 = vmatpush.bf16.msra.mxu0 0
  %311 = vmatpush.bf16.msra.mxu0 0
  %312 = vmatpush.bf16.msra.mxu0 %v225
  %313 = vmatpush.bf16.msra.mxu0 %v213
  %314 = vmatpush.bf16.msra.mxu0 %v201
  %315 = vmatpush.bf16.msra.mxu0 %v189
  %316 = vmatpush.bf16.msra.mxu0 %v177
  %317 = vmatpush.bf16.msra.mxu0 %v165
  %318 = vmatmul.bf16.gmra.mxu0 %v252
  %v319 = vpop.f32.mrf.mxu0
  %v320 = vadd.f32 %v238, %v319
  %v321 = vpop.f32.mrf.mxu0
  %v322 = vadd.f32 %v243, %v321
  %323 = vdwg.mxu0
  %324 = vmatpush.bf16.msra.mxu0 0
  %325 = vmatpush.bf16.msra.mxu0 0
  %326 = vmatpush.bf16.msra.mxu0 %v226
  %327 = vmatpush.bf16.msra.mxu0 %v214
  %328 = vmatpush.bf16.msra.mxu0 %v202
  %329 = vmatpush.bf16.msra.mxu0 %v190
  %330 = vmatpush.bf16.msra.mxu0 %v178
  %331 = vmatpush.bf16.msra.mxu0 %v166
  %332 = vmatmul.bf16.gmra.mxu0 %v252
  %v333 = vpop.f32.mrf.mxu0
  %v334 = vadd.f32 %v238, %v333
  %v335 = vpop.f32.mrf.mxu0
  %v336 = vadd.f32 %v243, %v335
  %337 = vdwg.mxu0
  %338 = vmatpush.bf16.msra.mxu0 0
  %339 = vmatpush.bf16.msra.mxu0 0
  %340 = vmatpush.bf16.msra.mxu0 %v227
  %341 = vmatpush.bf16.msra.mxu0 %v215
  %342 = vmatpush.bf16.msra.mxu0 %v203
  %343 = vmatpush.bf16.msra.mxu0 %v191
  %344 = vmatpush.bf16.msra.mxu0 %v179
  %345 = vmatpush.bf16.msra.mxu0 %v167
  %346 = vmatmul.bf16.gmra.mxu0 %v252
  %v347 = vpop.f32.mrf.mxu0
  %v348 = vadd.f32 %v238, %v347
  %v349 = vpop.f32.mrf.mxu0
  %v350 = vadd.f32 %v243, %v349
  %351 = vdwg.mxu0
  %352 = vmatpush.bf16.msra.mxu0 0
  %353 = vmatpush.bf16.msra.mxu0 0
  %354 = vmatpush.bf16.msra.mxu0 %v228
  %355 = vmatpush.bf16.msra.mxu0 %v216
  %356 = vmatpush.bf16.msra.mxu0 %v204
  %357 = vmatpush.bf16.msra.mxu0 %v192
  %358 = vmatpush.bf16.msra.mxu0 %v180
  %359 = vmatpush.bf16.msra.mxu0 %v168
  %360 = vmatmul.bf16.gmra.mxu0 %v252
  %v361 = vpop.f32.mrf.mxu0
  %v362 = vadd.f32 %v238, %v361
  %v363 = vpop.f32.mrf.mxu0
  %v364 = vadd.f32 %v243, %v363
  %365 = vdwg.mxu0
  %366 = vmatpush.bf16.msra.mxu0 0
  %367 = vmatpush.bf16.msra.mxu0 0
  %368 = vmatpush.bf16.msra.mxu0 %v229
  %369 = vmatpush.bf16.msra.mxu0 %v217
  %370 = vmatpush.bf16.msra.mxu0 %v205
  %371 = vmatpush.bf16.msra.mxu0 %v193
  %372 = vmatpush.bf16.msra.mxu0 %v181
  %373 = vmatpush.bf16.msra.mxu0 %v169
  %374 = vmatmul.bf16.gmra.mxu0 %v252
  %v375 = vpop.f32.mrf.mxu0
  %v376 = vadd.f32 %v238, %v375
  %v377 = vpop.f32.mrf.mxu0
  %v378 = vadd.f32 %v243, %v377
  %379 = vdwg.mxu0
  %380 = vmatpush.bf16.msra.mxu0 0
  %381 = vmatpush.bf16.msra.mxu0 0
  %382 = vmatpush.bf16.msra.mxu0 %v230
  %383 = vmatpush.bf16.msra.mxu0 %v218
  %384 = vmatpush.bf16.msra.mxu0 %v206
  %385 = vmatpush.bf16.msra.mxu0 %v194
  %386 = vmatpush.bf16.msra.mxu0 %v182
  %387 = vmatpush.bf16.msra.mxu0 %v170
  %388 = vmatmul.bf16.gmra.mxu0 %v252
  %v389 = vpop.f32.mrf.mxu0
  %v390 = vadd.f32 %v238, %v389
  %v391 = vpop.f32.mrf.mxu0
  %v392 = vadd.f32 %v243, %v391
  %393 = vdwg.mxu0
  %394 = vmatpush.bf16.msra.mxu0 0
  %395 = vmatpush.bf16.msra.mxu0 0
  %396 = vmatpush.bf16.msra.mxu0 %v231
  %397 = vmatpush.bf16.msra.mxu0 %v219
  %398 = vmatpush.bf16.msra.mxu0 %v207
  %399 = vmatpush.bf16.msra.mxu0 %v195
  %400 = vmatpush.bf16.msra.mxu0 %v183
  %401 = vmatpush.bf16.msra.mxu0 %v171
  %402 = vmatmul.bf16.gmra.mxu0 %v252
  %v403 = vpop.f32.mrf.mxu0
  %v404 = vadd.f32 %v238, %v403
  %v405 = vpop.f32.mrf.mxu0
  %v406 = vadd.f32 %v243, %v405
  %407 = vdwg.mxu0
  %408 = vmatpush.bf16.msra.mxu0 0
  %409 = vmatpush.bf16.msra.mxu0 0
  %410 = vmatpush.bf16.msra.mxu0 %v232
  %411 = vmatpush.bf16.msra.mxu0 %v220
  %412 = vmatpush.bf16.msra.mxu0 %v208
  %413 = vmatpush.bf16.msra.mxu0 %v196
  %414 = vmatpush.bf16.msra.mxu0 %v184
  %415 = vmatpush.bf16.msra.mxu0 %v172
  %416 = vmatmul.bf16.gmra.mxu0 %v252
  %v417 = vpop.f32.mrf.mxu0
  %v418 = vadd.f32 %v238, %v417
  %v419 = vpop.f32.mrf.mxu0
  %v420 = vadd.f32 %v243, %v419
  %421 = vdwg.mxu0
  %vm422 = vcmp.ge.f32.partialorder %v264, 0.0
  %vm423 = vcmp.ge.f32.partialorder %v278, 0.0
  %vm424 = vcmp.ge.f32.partialorder %v292, 0.0
  %vm425 = vcmp.ge.f32.partialorder %v306, 0.0
  %vm426 = vcmp.ge.f32.partialorder %v320, 0.0
  %vm427 = vcmp.ge.f32.partialorder %v334, 0.0
  %vm428 = vcmp.ge.f32.partialorder %v348, 0.0
  %vm429 = vcmp.ge.f32.partialorder %v362, 0.0
  %vm430 = vcmp.ge.f32.partialorder %v376, 0.0
  %vm431 = vcmp.ge.f32.partialorder %v390, 0.0
  %vm432 = vcmp.ge.f32.partialorder %v404, 0.0
  %vm433 = vcmp.ge.f32.partialorder %v418, 0.0
  %vm434 = vcmp.ge.f32.partialorder %v266, 0.0
  %vm435 = vcmp.ge.f32.partialorder %v280, 0.0
  %vm436 = vcmp.ge.f32.partialorder %v294, 0.0
  %vm437 = vcmp.ge.f32.partialorder %v308, 0.0
  %vm438 = vcmp.ge.f32.partialorder %v322, 0.0
  %vm439 = vcmp.ge.f32.partialorder %v336, 0.0
  %vm440 = vcmp.ge.f32.partialorder %v350, 0.0
  %vm441 = vcmp.ge.f32.partialorder %v364, 0.0
  %vm442 = vcmp.ge.f32.partialorder %v378, 0.0
  %vm443 = vcmp.ge.f32.partialorder %v392, 0.0
  %vm444 = vcmp.ge.f32.partialorder %v406, 0.0
  %vm445 = vcmp.ge.f32.partialorder %v420, 0.0
  %v446 = vmul.f32 %v264, 0.1
  %v447 = vmul.f32 %v278, 0.1
  %v448 = vmul.f32 %v292, 0.1
  %v449 = vmul.f32 %v306, 0.1
  %v450 = vmul.f32 %v320, 0.1
  %v451 = vmul.f32 %v334, 0.1
  %v452 = vmul.f32 %v348, 0.1
  %v453 = vmul.f32 %v362, 0.1
  %v454 = vmul.f32 %v376, 0.1
  %v455 = vmul.f32 %v390, 0.1
  %v456 = vmul.f32 %v404, 0.1
  %v457 = vmul.f32 %v418, 0.1
  %v458 = vmul.f32 %v266, 0.1
  %v459 = vmul.f32 %v280, 0.1
  %v460 = vmul.f32 %v294, 0.1
  %v461 = vmul.f32 %v308, 0.1
  %v462 = vmul.f32 %v322, 0.1
  %v463 = vmul.f32 %v336, 0.1
  %v464 = vmul.f32 %v350, 0.1
  %v465 = vmul.f32 %v364, 0.1
  %v466 = vmul.f32 %v378, 0.1
  %v467 = vmul.f32 %v392, 0.1
  %v468 = vmul.f32 %v406, 0.1
  %v469 = vmul.f32 %v420, 0.1
  %v470 = vsel %vm422, %v264, %v446
  %v471 = vsel %vm423, %v278, %v447
  %v472 = vsel %vm424, %v292, %v448
  %v473 = vsel %vm425, %v306, %v449
  %v474 = vsel %vm426, %v320, %v450
  %v475 = vsel %vm427, %v334, %v451
  %v476 = vsel %vm428, %v348, %v452
  %v477 = vsel %vm429, %v362, %v453
  %v478 = vsel %vm430, %v376, %v454
  %v479 = vsel %vm431, %v390, %v455
  %v480 = vsel %vm432, %v404, %v456
  %v481 = vsel %vm433, %v418, %v457
  %v482 = vsel %vm434, %v266, %v458
  %v483 = vsel %vm435, %v280, %v459
  %v484 = vsel %vm436, %v294, %v460
  %v485 = vsel %vm437, %v308, %v461
  %v486 = vsel %vm438, %v322, %v462
  %v487 = vsel %vm439, %v336, %v463
  %v488 = vsel %vm440, %v350, %v464
  %v489 = vsel %vm441, %v364, %v465
  %v490 = vsel %vm442, %v378, %v466
  %v491 = vsel %vm443, %v392, %v467
  %v492 = vsel %vm444, %v406, %v468
  %v493 = vsel %vm445, %v420, %v469
  %494 = vst [vmem:[%s3] sm:$0xff] %v470
  %495 = vst [vmem:[%s3 + $0x8] sm:$0xff] %v471
  %496 = vst [vmem:[%s3 + $0x10] sm:$0xff] %v472
  %497 = vst [vmem:[%s3 + $0x18] sm:$0xff] %v473
  %498 = vst [vmem:[%s3 + $0x20] sm:$0xff] %v474
  %499 = vst [vmem:[%s3 + $0x28] sm:$0xff] %v475
  %500 = vst [vmem:[%s3 + $0x30] sm:$0xff] %v476
  %501 = vst [vmem:[%s3 + $0x38] sm:$0xff] %v477
  %502 = vst [vmem:[%s3 + $0x40] sm:$0xff] %v478
  %503 = vst [vmem:[%s3 + $0x48] sm:$0xff] %v479
  %504 = vst [vmem:[%s3 + $0x50] sm:$0xff] %v480
  %vm505 = vcmask 261120
  %506 = vst.msk [vmem:[%s3 + $0x58] sm:$0xff] %vm505, %v481
  %507 = vst [vmem:[%s3 + $0x60] sm:$0xff] %v482
  %508 = vst [vmem:[%s3 + $0x68] sm:$0xff] %v483
  %509 = vst [vmem:[%s3 + $0x70] sm:$0xff] %v484
  %510 = vst [vmem:[%s3 + $0x78] sm:$0xff] %v485
  %511 = vst [vmem:[%s3 + $0x80] sm:$0xff] %v486
  %512 = vst [vmem:[%s3 + $0x88] sm:$0xff] %v487
  %513 = vst [vmem:[%s3 + $0x90] sm:$0xff] %v488
  %514 = vst [vmem:[%s3 + $0x98] sm:$0xff] %v489
  %515 = vst [vmem:[%s3 + $0xa0] sm:$0xff] %v490
  %516 = vst [vmem:[%s3 + $0xa8] sm:$0xff] %v491
  %517 = vst [vmem:[%s3 + $0xb0] sm:$0xff] %v492
  %518 = vst.msk [vmem:[%s3 + $0xb8] sm:$0xff] %vm505, %v493
  // Predicated region
  $region14: #{text_vae_forward.9} parent=0 // pred_check
    _
  $region15: #{text_vae_forward.9} parent=0 // pred_check_branch
    %520 = sbr.rel (0) target = $region17
  $region16: #{text_vae_forward.9} parent=0 // pred_region
    _
  $region17: #{text_vae_forward.9} parent=0 // pred_fallthru
    _
  // Predicated region
  $region18: #{text_vae_forward.9} parent=0 // pred_check
    _
  $region19: #{text_vae_forward.9} parent=0 // pred_check_branch
    %522 = sbr.rel (0) target = $region21
  $region20: #{text_vae_forward.9} parent=0 // pred_region
    _
  $region21: #{text_vae_forward.9} parent=0 // pred_fallthru
    _

// kernel: text_vae_forward.10
$region0: #{text_vae_forward.10}
  #allocation0 [shape = 'u32[]', space=smem, size = 0x4, offset = 0x4, fixed_abs, tag = 'smem constant byte address 0x4 - core index']
  #allocation1 [shape = 'u32[72,128]{1,0:T(1,128)}', space=vmem, size = 0x9000, scoped, tag = 'internal scratch']
  %s0 = inlined_call_operand.vmem [shape: bf16[16,576], index: 0, kind: input, shape index: {}]
  %s1 = inlined_call_operand.vmem [shape: f32[576,182], index: 1, kind: input, shape index: {}]
  %s2 = inlined_call_operand.vmem [shape: f32[16,1], index: 2, kind: input, shape index: {}]
  %s3 = inlined_call_operand.vmem [shape: f32[16,182], index: 3, kind: output, shape index: {}]
  %s4 = sld [smem:[#allocation0]]
  $region22: #{text_vae_forward.10} parent=0
    _
  %s6 = ssub.s32 1, %s4
  %s7 = scalar_select 0, %s6, %s4
  // Predicated region
  $region2: #{text_vae_forward.10} parent=0 // pred_check
    _
  $region3: #{text_vae_forward.10} parent=0 // pred_check_branch
    %9 = sbr.rel (0) target = $region5
  $region4: #{text_vae_forward.10} parent=0 // pred_region
    _
  $region5: #{text_vae_forward.10} parent=0 // pred_fallthru
    _
  // Predicated region
  $region6: #{text_vae_forward.10} parent=0 // pred_check
    _
  $region7: #{text_vae_forward.10} parent=0 // pred_check_branch
    %11 = sbr.rel (0) target = $region9
  $region8: #{text_vae_forward.10} parent=0 // pred_region
    _
  $region9: #{text_vae_forward.10} parent=0 // pred_fallthru
    _
  // Predicated region
  $region10: #{text_vae_forward.10} parent=0 // pred_check
    _
  $region11: #{text_vae_forward.10} parent=0 // pred_check_branch
    %13 = sbr.rel (0) target = $region13
  $region12: #{text_vae_forward.10} parent=0 // pred_region
    _
  $region13: #{text_vae_forward.10} parent=0 // pred_fallthru
    _
  %v15 = vld [vmem:[%s0] sm:$0xff]
  %v16 = vld [vmem:[%s0 + $0x8] sm:$0xff]
  %v17 = vld [vmem:[%s0 + $0x10] sm:$0xf]
  %v18 = vld [vmem:[%s0 + $0x14] sm:$0xff]
  %v19 = vld [vmem:[%s0 + $0x1c] sm:$0xff]
  %v20 = vld [vmem:[%s0 + $0x24] sm:$0xf]
  %v21 = vld [vmem:[%s1] sm:$0xff]
  %v22 = vld [vmem:[%s1 + $0x8] sm:$0xff]
  %v23 = vld [vmem:[%s1 + $0x10] sm:$0xff]
  %v24 = vld [vmem:[%s1 + $0x18] sm:$0xff]
  %v25 = vld [vmem:[%s1 + $0x20] sm:$0xff]
  %v26 = vld [vmem:[%s1 + $0x28] sm:$0xff]
  %v27 = vld [vmem:[%s1 + $0x30] sm:$0xff]
  %v28 = vld [vmem:[%s1 + $0x38] sm:$0xff]
  %v29 = vld [vmem:[%s1 + $0x40] sm:$0xff]
  %v30 = vld [vmem:[%s1 + $0x48] sm:$0xff]
  %v31 = vld [vmem:[%s1 + $0x50] sm:$0xff]
  %v32 = vld [vmem:[%s1 + $0x58] sm:$0xff]
  %v33 = vld [vmem:[%s1 + $0x60] sm:$0xff]
  %v34 = vld [vmem:[%s1 + $0x68] sm:$0xff]
  %v35 = vld [vmem:[%s1 + $0x70] sm:$0xff]
  %v36 = vld [vmem:[%s1 + $0x78] sm:$0xff]
  %v37 = vld [vmem:[%s1 + $0x80] sm:$0xff]
  %v38 = vld [vmem:[%s1 + $0x88] sm:$0xff]
  %v39 = vld [vmem:[%s1 + $0x90] sm:$0xff]
  %v40 = vld [vmem:[%s1 + $0x98] sm:$0xff]
  %v41 = vld [vmem:[%s1 + $0xa0] sm:$0xff]
  %v42 = vld [vmem:[%s1 + $0xa8] sm:$0xff]
  %v43 = vld [vmem:[%s1 + $0xb0] sm:$0xff]
  %v44 = vld [vmem:[%s1 + $0xb8] sm:$0xff]
  %v45 = vld [vmem:[%s1 + $0xc0] sm:$0xff]
  %v46 = vld [vmem:[%s1 + $0xc8] sm:$0xff]
  %v47 = vld [vmem:[%s1 + $0xd0] sm:$0xff]
  %v48 = vld [vmem:[%s1 + $0xd8] sm:$0xff]
  %v49 = vld [vmem:[%s1 + $0xe0] sm:$0xff]
  %v50 = vld [vmem:[%s1 + $0xe8] sm:$0xff]
  %v51 = vld [vmem:[%s1 + $0xf0] sm:$0xff]
  %v52 = vld [vmem:[%s1 + $0xf8] sm:$0xff]
  %v53 = vld [vmem:[%s1 + $0x100] sm:$0xff]
  %v54 = vld [vmem:[%s1 + $0x108] sm:$0xff]
  %v55 = vld [vmem:[%s1 + $0x110] sm:$0xff]
  %v56 = vld [vmem:[%s1 + $0x118] sm:$0xff]
  %v57 = vld [vmem:[%s1 + $0x120] sm:$0xff]
  %v58 = vld [vmem:[%s1 + $0x128] sm:$0xff]
  %v59 = vld [vmem:[%s1 + $0x130] sm:$0xff]
  %v60 = vld [vmem:[%s1 + $0x138] sm:$0xff]
  %v61 = vld [vmem:[%s1 + $0x140] sm:$0xff]
  %v62 = vld [vmem:[%s1 + $0x148] sm:$0xff]
  %v63 = vld [vmem:[%s1 + $0x150] sm:$0xff]
  %v64 = vld [vmem:[%s1 + $0x158] sm:$0xff]
  %v65 = vld [vmem:[%s1 + $0x160] sm:$0xff]
  %v66 = vld [vmem:[%s1 + $0x168] sm:$0xff]
  %v67 = vld [vmem:[%s1 + $0x170] sm:$0xff]
  %v68 = vld [vmem:[%s1 + $0x178] sm:$0xff]
  %v69 = vld [vmem:[%s1 + $0x180] sm:$0xff]
  %v70 = vld [vmem:[%s1 + $0x188] sm:$0xff]
  %v71 = vld [vmem:[%s1 + $0x190] sm:$0xff]
  %v72 = vld [vmem:[%s1 + $0x198] sm:$0xff]
  %v73 = vld [vmem:[%s1 + $0x1a0] sm:$0xff]
  %v74 = vld [vmem:[%s1 + $0x1a8] sm:$0xff]
  %v75 = vld [vmem:[%s1 + $0x1b0] sm:$0xff]
  %v76 = vld [vmem:[%s1 + $0x1b8] sm:$0xff]
  %v77 = vld [vmem:[%s1 + $0x1c0] sm:$0xff]
  %v78 = vld [vmem:[%s1 + $0x1c8] sm:$0xff]
  %v79 = vld [vmem:[%s1 + $0x1d0] sm:$0xff]
  %v80 = vld [vmem:[%s1 + $0x1d8] sm:$0xff]
  %v81 = vld [vmem:[%s1 + $0x1e0] sm:$0xff]
  %v82 = vld [vmem:[%s1 + $0x1e8] sm:$0xff]
  %v83 = vld [vmem:[%s1 + $0x1f0] sm:$0xff]
  %v84 = vld [vmem:[%s1 + $0x1f8] sm:$0xff]
  %v85 = vld [vmem:[%s1 + $0x200] sm:$0xff]
  %v86 = vld [vmem:[%s1 + $0x208] sm:$0xff]
  %v87 = vld [vmem:[%s1 + $0x210] sm:$0xff]
  %v88 = vld [vmem:[%s1 + $0x218] sm:$0xff]
  %v89 = vld [vmem:[%s1 + $0x220] sm:$0xff]
  %v90 = vld [vmem:[%s1 + $0x228] sm:$0xff]
  %v91 = vld [vmem:[%s1 + $0x230] sm:$0xff]
  %v92 = vld [vmem:[%s1 + $0x238] sm:$0xff]
  %v93 = vld [vmem:[%s1 + $0x240] sm:$0xff]
  %v94 = vld [vmem:[%s1 + $0x248] sm:$0xff]
  %v95 = vld [vmem:[%s1 + $0x250] sm:$0xff]
  %v96 = vld [vmem:[%s1 + $0x258] sm:$0xff]
  %v97 = vld [vmem:[%s1 + $0x260] sm:$0xff]
  %v98 = vld [vmem:[%s1 + $0x268] sm:$0xff]
  %v99 = vld [vmem:[%s1 + $0x270] sm:$0xff]
  %v100 = vld [vmem:[%s1 + $0x278] sm:$0xff]
  %v101 = vld [vmem:[%s1 + $0x280] sm:$0xff]
  %v102 = vld [vmem:[%s1 + $0x288] sm:$0xff]
  %v103 = vld [vmem:[%s1 + $0x290] sm:$0xff]
  %v104 = vld [vmem:[%s1 + $0x298] sm:$0xff]
  %v105 = vld [vmem:[%s1 + $0x2a0] sm:$0xff]
  %v106 = vld [vmem:[%s1 + $0x2a8] sm:$0xff]
  %v107 = vld [vmem:[%s1 + $0x2b0] sm:$0xff]
  %v108 = vld [vmem:[%s1 + $0x2b8] sm:$0xff]
  %v109 = vld [vmem:[%s1 + $0x2c0] sm:$0xff]
  %v110 = vld [vmem:[%s1 + $0x2c8] sm:$0xff]
  %v111 = vld [vmem:[%s1 + $0x2d0] sm:$0xff]
  %v112 = vld [vmem:[%s1 + $0x2d8] sm:$0xff]
  %v113 = vld [vmem:[%s1 + $0x2e0] sm:$0xff]
  %v114 = vld [vmem:[%s1 + $0x2e8] sm:$0xff]
  %v115 = vld [vmem:[%s1 + $0x2f0] sm:$0xff]
  %v116 = vld [vmem:[%s1 + $0x2f8] sm:$0xff]
  %v117 = vld [vmem:[%s1 + $0x300] sm:$0xff]
  %v118 = vld [vmem:[%s1 + $0x308] sm:$0xff]
  %v119 = vld [vmem:[%s1 + $0x310] sm:$0xff]
  %v120 = vld [vmem:[%s1 + $0x318] sm:$0xff]
  %v121 = vld [vmem:[%s1 + $0x320] sm:$0xff]
  %v122 = vld [vmem:[%s1 + $0x328] sm:$0xff]
  %v123 = vld [vmem:[%s1 + $0x330] sm:$0xff]
  %v124 = vld [vmem:[%s1 + $0x338] sm:$0xff]
  %v125 = vld [vmem:[%s1 + $0x340] sm:$0xff]
  %v126 = vld [vmem:[%s1 + $0x348] sm:$0xff]
  %v127 = vld [vmem:[%s1 + $0x350] sm:$0xff]
  %v128 = vld [vmem:[%s1 + $0x358] sm:$0xff]
  %v129 = vld [vmem:[%s1 + $0x360] sm:$0xff]
  %v130 = vld [vmem:[%s1 + $0x368] sm:$0xff]
  %v131 = vld [vmem:[%s1 + $0x370] sm:$0xff]
  %v132 = vld [vmem:[%s1 + $0x378] sm:$0xff]
  %v133 = vld [vmem:[%s1 + $0x380] sm:$0xff]
  %v134 = vld [vmem:[%s1 + $0x388] sm:$0xff]
  %v135 = vld [vmem:[%s1 + $0x390] sm:$0xff]
  %v136 = vld [vmem:[%s1 + $0x398] sm:$0xff]
  %v137 = vld [vmem:[%s1 + $0x3a0] sm:$0xff]
  %v138 = vld [vmem:[%s1 + $0x3a8] sm:$0xff]
  %v139 = vld [vmem:[%s1 + $0x3b0] sm:$0xff]
  %v140 = vld [vmem:[%s1 + $0x3b8] sm:$0xff]
  %v141 = vld [vmem:[%s1 + $0x3c0] sm:$0xff]
  %v142 = vld [vmem:[%s1 + $0x3c8] sm:$0xff]
  %v143 = vld [vmem:[%s1 + $0x3d0] sm:$0xff]
  %v144 = vld [vmem:[%s1 + $0x3d8] sm:$0xff]
  %v145 = vld [vmem:[%s1 + $0x3e0] sm:$0xff]
  %v146 = vld [vmem:[%s1 + $0x3e8] sm:$0xff]
  %v147 = vld [vmem:[%s1 + $0x3f0] sm:$0xff]
  %v148 = vld [vmem:[%s1 + $0x3f8] sm:$0xff]
  %v149 = vld [vmem:[%s1 + $0x400] sm:$0xff]
  %v150 = vld [vmem:[%s1 + $0x408] sm:$0xff]
  %v151 = vld [vmem:[%s1 + $0x410] sm:$0xff]
  %v152 = vld [vmem:[%s1 + $0x418] sm:$0xff]
  %v153 = vld [vmem:[%s1 + $0x420] sm:$0xff]
  %v154 = vld [vmem:[%s1 + $0x428] sm:$0xff]
  %v155 = vld [vmem:[%s1 + $0x430] sm:$0xff]
  %v156 = vld [vmem:[%s1 + $0x438] sm:$0xff]
  %v157 = vld [vmem:[%s1 + $0x440] sm:$0xff]
  %v158 = vld [vmem:[%s1 + $0x448] sm:$0xff]
  %v159 = vld [vmem:[%s1 + $0x450] sm:$0xff]
  %v160 = vld [vmem:[%s1 + $0x458] sm:$0xff]
  %v161 = vld [vmem:[%s1 + $0x460] sm:$0xff]
  %v162 = vld [vmem:[%s1 + $0x468] sm:$0xff]
  %v163 = vld [vmem:[%s1 + $0x470] sm:$0xff]
  %v164 = vld [vmem:[%s1 + $0x478] sm:$0xff]
  %v165 = vpack.c.bf16 %v23, %v21
  %v166 = vpack.c.bf16 %v24, %v22
  %v167 = vpack.c.bf16 %v27, %v25
  %v168 = vpack.c.bf16 %v28, %v26
  %v169 = vpack.c.bf16 %v31, %v29
  %v170 = vpack.c.bf16 %v32, %v30
  %v171 = vpack.c.bf16 %v35, %v33
  %v172 = vpack.c.bf16 %v36, %v34
  %v173 = vpack.c.bf16 %v39, %v37
  %v174 = vpack.c.bf16 %v40, %v38
  %v175 = vpack.c.bf16 %v43, %v41
  %v176 = vpack.c.bf16 %v44, %v42
  %v177 = vpack.c.bf16 %v47, %v45
  %v178 = vpack.c.bf16 %v48, %v46
  %v179 = vpack.c.bf16 %v51, %v49
  %v180 = vpack.c.bf16 %v52, %v50
  %v181 = vpack.c.bf16 %v55, %v53
  %v182 = vpack.c.bf16 %v56, %v54
  %v183 = vpack.c.bf16 %v59, %v57
  %v184 = vpack.c.bf16 %v60, %v58
  %v185 = vpack.c.bf16 %v63, %v61
  %v186 = vpack.c.bf16 %v64, %v62
  %v187 = vpack.c.bf16 %v67, %v65
  %v188 = vpack.c.bf16 %v68, %v66
  %v189 = vpack.c.bf16 %v71, %v69
  %v190 = vpack.c.bf16 %v72, %v70
  %v191 = vpack.c.bf16 %v75, %v73
  %v192 = vpack.c.bf16 %v76, %v74
  %v193 = vpack.c.bf16 %v79, %v77
  %v194 = vpack.c.bf16 %v80, %v78
  %v195 = vpack.c.bf16 %v83, %v81
  %v196 = vpack.c.bf16 %v84, %v82
  %v197 = vpack.c.bf16 %v87, %v85
  %v198 = vpack.c.bf16 %v88, %v86
  %v199 = vpack.c.bf16 %v91, %v89
  %v200 = vpack.c.bf16 %v92, %v90
  %v201 = vpack.c.bf16 %v95, %v93
  %v202 = vpack.c.bf16 %v96, %v94
  %v203 = vpack.c.bf16 %v99, %v97
  %v204 = vpack.c.bf16 %v100, %v98
  %v205 = vpack.c.bf16 %v103, %v101
  %v206 = vpack.c.bf16 %v104, %v102
  %v207 = vpack.c.bf16 %v107, %v105
  %v208 = vpack.c.bf16 %v108, %v106
  %v209 = vpack.c.bf16 %v111, %v109
  %v210 = vpack.c.bf16 %v112, %v110
  %v211 = vpack.c.bf16 %v115, %v113
  %v212 = vpack.c.bf16 %v116, %v114
  %v213 = vpack.c.bf16 %v119, %v117
  %v214 = vpack.c.bf16 %v120, %v118
  %v215 = vpack.c.bf16 %v123, %v121
  %v216 = vpack.c.bf16 %v124, %v122
  %v217 = vpack.c.bf16 %v127, %v125
  %v218 = vpack.c.bf16 %v128, %v126
  %v219 = vpack.c.bf16 %v131, %v129
  %v220 = vpack.c.bf16 %v132, %v130
  %v221 = vpack.c.bf16 %v135, %v133
  %v222 = vpack.c.bf16 %v136, %v134
  %v223 = vpack.c.bf16 %v139, %v137
  %v224 = vpack.c.bf16 %v140, %v138
  %v225 = vpack.c.bf16 %v143, %v141
  %v226 = vpack.c.bf16 %v144, %v142
  %v227 = vpack.c.bf16 %v147, %v145
  %v228 = vpack.c.bf16 %v148, %v146
  %v229 = vpack.c.bf16 %v151, %v149
  %v230 = vpack.c.bf16 %v152, %v150
  %v231 = vpack.c.bf16 %v155, %v153
  %v232 = vpack.c.bf16 %v156, %v154
  %v233 = vpack.c.bf16 %v159, %v157
  %v234 = vpack.c.bf16 %v160, %v158
  %v235 = vpack.c.bf16 %v163, %v161
  %v236 = vpack.c.bf16 %v164, %v162
  %v237 = vld [vmem:[%s2] sm:$0xff]
  %v238 = vld [vmem:[%s2 + $0x8] sm:$0xff]
  %240 = vset.pattern.permute.xlu0 0
  %241 = vperm.xlu0 %240, %v237
  %v242 = vpop.permute.xlu0 %241
  %245 = vset.pattern.permute.xlu0 0
  %246 = vperm.xlu0 %245, %v238
  %v247 = vpop.permute.xlu0 %246
  %v255 = vunpack.c.l.b16 %v15
  %v256 = vunpack.c.h.b16 %v15
  %v257 = vunpack.c.l.b16 %v16
  %v258 = vunpack.c.h.b16 %v16
  %v259 = vunpack.c.l.b16 %v17
  %v260 = vunpack.c.l.b16 %v18
  %v261 = vunpack.c.h.b16 %v18
  %v262 = vunpack.c.l.b16 %v19
  %v263 = vunpack.c.h.b16 %v19
  %v264 = vunpack.c.l.b16 %v20
  %v265 = vpack.c.b16 %v260, %v255
  %v266 = vpack.c.b16 %v261, %v256
  %v267 = vpack.c.b16 %v262, %v257
  %v268 = vpack.c.b16 %v263, %v258
  %v269 = vpack.c.b16 %v264, %v259
  %vm274 = vcmask 523264
  %v276 = vsel %vm274, %v269, 0
  %278 = vmatpush.bf16.msra.mxu0 %v179
  %279 = vmatpush.bf16.msra.mxu0 %v177
  %280 = vmatpush.bf16.msra.mxu0 %v175
  %281 = vmatpush.bf16.msra.mxu0 %v173
  %282 = vmatpush.bf16.msra.mxu0 %v171
  %283 = vmatpush.bf16.msra.mxu0 %v169
  %284 = vmatpush.bf16.msra.mxu0 %v167
  %285 = vmatpush.bf16.msra.mxu0 %v165
  %286 = vmatmul.bf16.gmra.mxu0 %v265
  %v287 = vpop.f32.mrf.mxu0
  %v288 = vadd.f32 %v242, %v287
  %v289 = vpop.f32.mrf.mxu0
  %v290 = vadd.f32 %v247, %v289
  %291 = vdwg.mxu0
  %292 = vmatpush.bf16.msra.mxu0 %v195
  %293 = vmatpush.bf16.msra.mxu0 %v193
  %294 = vmatpush.bf16.msra.mxu0 %v191
  %295 = vmatpush.bf16.msra.mxu0 %v189
  %296 = vmatpush.bf16.msra.mxu0 %v187
  %297 = vmatpush.bf16.msra.mxu0 %v185
  %298 = vmatpush.bf16.msra.mxu0 %v183
  %299 = vmatpush.bf16.msra.mxu0 %v181
  %300 = vmatmul.bf16.gmra.mxu0 %v266
  %v301 = vpop.f32.mrf.mxu0
  %v302 = vadd.f32 %v288, %v301
  %v303 = vpop.f32.mrf.mxu0
  %v304 = vadd.f32 %v290, %v303
  %305 = vdwg.mxu0
  %306 = vmatpush.bf16.msra.mxu0 %v211
  %307 = vmatpush.bf16.msra.mxu0 %v209
  %308 = vmatpush.bf16.msra.mxu0 %v207
  %309 = vmatpush.bf16.msra.mxu0 %v205
  %310 = vmatpush.bf16.msra.mxu0 %v203
  %311 = vmatpush.bf16.msra.mxu0 %v201
  %312 = vmatpush.bf16.msra.mxu0 %v199
  %313 = vmatpush.bf16.msra.mxu0 %v197
  %314 = vmatmul.bf16.gmra.mxu0 %v267
  %v315 = vpop.f32.mrf.mxu0
  %v316 = vadd.f32 %v302, %v315
  %v317 = vpop.f32.mrf.mxu0
  %v318 = vadd.f32 %v304, %v317
  %319 = vdwg.mxu0
  %320 = vmatpush.bf16.msra.mxu0 %v227
  %321 = vmatpush.bf16.msra.mxu0 %v225
  %322 = vmatpush.bf16.msra.mxu0 %v223
  %323 = vmatpush.bf16.msra.mxu0 %v221
  %324 = vmatpush.bf16.msra.mxu0 %v219
  %325 = vmatpush.bf16.msra.mxu0 %v217
  %326 = vmatpush.bf16.msra.mxu0 %v215
  %327 = vmatpush.bf16.msra.mxu0 %v213
  %328 = vmatmul.bf16.gmra.mxu0 %v268
  %v329 = vpop.f32.mrf.mxu0
  %v330 = vadd.f32 %v316, %v329
  %v331 = vpop.f32.mrf.mxu0
  %v332 = vadd.f32 %v318, %v331
  %333 = vdwg.mxu0
  %334 = vmatpush.bf16.msra.mxu0 0
  %335 = vmatpush.bf16.msra.mxu0 0
  %336 = vmatpush.bf16.msra.mxu0 0
  %337 = vmatpush.bf16.msra.mxu0 0
  %338 = vmatpush.bf16.msra.mxu0 %v235
  %339 = vmatpush.bf16.msra.mxu0 %v233
  %340 = vmatpush.bf16.msra.mxu0 %v231
  %341 = vmatpush.bf16.msra.mxu0 %v229
  %342 = vmatmul.bf16.gmra.mxu0 %v276
  %v343 = vpop.f32.mrf.mxu0
  %v344 = vadd.f32 %v330, %v343
  %v345 = vpop.f32.mrf.mxu0
  %v346 = vadd.f32 %v332, %v345
  %347 = vdwg.mxu0
  %348 = vmatpush.bf16.msra.mxu0 %v180
  %349 = vmatpush.bf16.msra.mxu0 %v178
  %350 = vmatpush.bf16.msra.mxu0 %v176
  %351 = vmatpush.bf16.msra.mxu0 %v174
  %352 = vmatpush.bf16.msra.mxu0 %v172
  %353 = vmatpush.bf16.msra.mxu0 %v170
  %354 = vmatpush.bf16.msra.mxu0 %v168
  %355 = vmatpush.bf16.msra.mxu0 %v166
  %356 = vmatmul.bf16.gmra.mxu0 %v265
  %v357 = vpop.f32.mrf.mxu0
  %v358 = vadd.f32 %v242, %v357
  %v359 = vpop.f32.mrf.mxu0
  %v360 = vadd.f32 %v247, %v359
  %361 = vdwg.mxu0
  %362 = vmatpush.bf16.msra.mxu0 %v196
  %363 = vmatpush.bf16.msra.mxu0 %v194
  %364 = vmatpush.bf16.msra.mxu0 %v192
  %365 = vmatpush.bf16.msra.mxu0 %v190
  %366 = vmatpush.bf16.msra.mxu0 %v188
  %367 = vmatpush.bf16.msra.mxu0 %v186
  %368 = vmatpush.bf16.msra.mxu0 %v184
  %369 = vmatpush.bf16.msra.mxu0 %v182
  %370 = vmatmul.bf16.gmra.mxu0 %v266
  %v371 = vpop.f32.mrf.mxu0
  %v372 = vadd.f32 %v358, %v371
  %v373 = vpop.f32.mrf.mxu0
  %v374 = vadd.f32 %v360, %v373
  %375 = vdwg.mxu0
  %376 = vmatpush.bf16.msra.mxu0 %v212
  %377 = vmatpush.bf16.msra.mxu0 %v210
  %378 = vmatpush.bf16.msra.mxu0 %v208
  %379 = vmatpush.bf16.msra.mxu0 %v206
  %380 = vmatpush.bf16.msra.mxu0 %v204
  %381 = vmatpush.bf16.msra.mxu0 %v202
  %382 = vmatpush.bf16.msra.mxu0 %v200
  %383 = vmatpush.bf16.msra.mxu0 %v198
  %384 = vmatmul.bf16.gmra.mxu0 %v267
  %v385 = vpop.f32.mrf.mxu0
  %v386 = vadd.f32 %v372, %v385
  %v387 = vpop.f32.mrf.mxu0
  %v388 = vadd.f32 %v374, %v387
  %389 = vdwg.mxu0
  %390 = vmatpush.bf16.msra.mxu0 %v228
  %391 = vmatpush.bf16.msra.mxu0 %v226
  %392 = vmatpush.bf16.msra.mxu0 %v224
  %393 = vmatpush.bf16.msra.mxu0 %v222
  %394 = vmatpush.bf16.msra.mxu0 %v220
  %395 = vmatpush.bf16.msra.mxu0 %v218
  %396 = vmatpush.bf16.msra.mxu0 %v216
  %397 = vmatpush.bf16.msra.mxu0 %v214
  %398 = vmatmul.bf16.gmra.mxu0 %v268
  %v399 = vpop.f32.mrf.mxu0
  %v400 = vadd.f32 %v386, %v399
  %v401 = vpop.f32.mrf.mxu0
  %v402 = vadd.f32 %v388, %v401
  %403 = vdwg.mxu0
  %404 = vmatpush.bf16.msra.mxu0 0
  %405 = vmatpush.bf16.msra.mxu0 0
  %406 = vmatpush.bf16.msra.mxu0 0
  %407 = vmatpush.bf16.msra.mxu0 0
  %408 = vmatpush.bf16.msra.mxu0 %v236
  %409 = vmatpush.bf16.msra.mxu0 %v234
  %410 = vmatpush.bf16.msra.mxu0 %v232
  %411 = vmatpush.bf16.msra.mxu0 %v230
  %412 = vmatmul.bf16.gmra.mxu0 %v276
  %v413 = vpop.f32.mrf.mxu0
  %v414 = vadd.f32 %v400, %v413
  %v415 = vpop.f32.mrf.mxu0
  %v416 = vadd.f32 %v402, %v415
  %417 = vdwg.mxu0
  %vm418 = vcmp.ge.f32.partialorder %v344, 0.0
  %vm419 = vcmp.ge.f32.partialorder %v414, 0.0
  %vm420 = vcmp.ge.f32.partialorder %v346, 0.0
  %vm421 = vcmp.ge.f32.partialorder %v416, 0.0
  %v422 = vmul.f32 %v344, 0.1
  %v423 = vmul.f32 %v414, 0.1
  %v424 = vmul.f32 %v346, 0.1
  %v425 = vmul.f32 %v416, 0.1
  %v426 = vsel %vm418, %v344, %v422
  %v427 = vsel %vm419, %v414, %v423
  %v428 = vsel %vm420, %v346, %v424
  %v429 = vsel %vm421, %v416, %v425
  %430 = vst [vmem:[%s3] sm:$0xff] %v426
  %vm431 = vcmask 441344
  %432 = vst.msk [vmem:[%s3 + $0x8] sm:$0xff] %vm431, %v427
  %433 = vst [vmem:[%s3 + $0x10] sm:$0xff] %v428
  %434 = vst.msk [vmem:[%s3 + $0x18] sm:$0xff] %vm431, %v429
  // Predicated region
  $region14: #{text_vae_forward.10} parent=0 // pred_check
    _
  $region15: #{text_vae_forward.10} parent=0 // pred_check_branch
    %436 = sbr.rel (0) target = $region17
  $region16: #{text_vae_forward.10} parent=0 // pred_region
    _
  $region17: #{text_vae_forward.10} parent=0 // pred_fallthru
    _
  // Predicated region
  $region18: #{text_vae_forward.10} parent=0 // pred_check
    _
  $region19: #{text_vae_forward.10} parent=0 // pred_check_branch
    %438 = sbr.rel (0) target = $region21
  $region20: #{text_vae_forward.10} parent=0 // pred_region
    _
  $region21: #{text_vae_forward.10} parent=0 // pred_fallthru
    _

// kernel: text_vae_forward.11
$region0: #{text_vae_forward.11}
  #allocation0 [shape = 'u32[]', space=smem, size = 0x4, offset = 0x4, fixed_abs, tag = 'smem constant byte address 0x4 - core index']
  #allocation1 [shape = 'u32[72,128]{1,0:T(1,128)}', space=vmem, size = 0x9000, scoped, tag = 'internal scratch']
  %s0 = inlined_call_operand.vmem [shape: bf16[16,144], index: 0, kind: input, shape index: {}]
  %s1 = inlined_call_operand.vmem [shape: f32[144,56], index: 1, kind: input, shape index: {}]
  %s2 = inlined_call_operand.vmem [shape: f32[16,1], index: 2, kind: input, shape index: {}]
  %s3 = inlined_call_operand.vmem [shape: f32[16,56], index: 3, kind: output, shape index: {}]
  %s4 = sld [smem:[#allocation0]]
  $region22: #{text_vae_forward.11} parent=0
    _
  %s6 = ssub.s32 1, %s4
  %s7 = scalar_select 0, %s6, %s4
  // Predicated region
  $region2: #{text_vae_forward.11} parent=0 // pred_check
    _
  $region3: #{text_vae_forward.11} parent=0 // pred_check_branch
    %9 = sbr.rel (0) target = $region5
  $region4: #{text_vae_forward.11} parent=0 // pred_region
    _
  $region5: #{text_vae_forward.11} parent=0 // pred_fallthru
    _
  // Predicated region
  $region6: #{text_vae_forward.11} parent=0 // pred_check
    _
  $region7: #{text_vae_forward.11} parent=0 // pred_check_branch
    %11 = sbr.rel (0) target = $region9
  $region8: #{text_vae_forward.11} parent=0 // pred_region
    _
  $region9: #{text_vae_forward.11} parent=0 // pred_fallthru
    _
  // Predicated region
  $region10: #{text_vae_forward.11} parent=0 // pred_check
    _
  $region11: #{text_vae_forward.11} parent=0 // pred_check_branch
    %13 = sbr.rel (0) target = $region13
  $region12: #{text_vae_forward.11} parent=0 // pred_region
    _
  $region13: #{text_vae_forward.11} parent=0 // pred_fallthru
    _
  %v15 = vld [vmem:[%s0] sm:$0xff]
  %v16 = vld [vmem:[%s0 + $0x8] sm:$0xff]
  %v17 = vld [vmem:[%s1] sm:$0xff]
  %v18 = vld [vmem:[%s1 + $0x8] sm:$0xff]
  %v19 = vld [vmem:[%s1 + $0x10] sm:$0xff]
  %v20 = vld [vmem:[%s1 + $0x18] sm:$0xff]
  %v21 = vld [vmem:[%s1 + $0x20] sm:$0xff]
  %v22 = vld [vmem:[%s1 + $0x28] sm:$0xff]
  %v23 = vld [vmem:[%s1 + $0x30] sm:$0xff]
  %v24 = vld [vmem:[%s1 + $0x38] sm:$0xff]
  %v25 = vld [vmem:[%s1 + $0x40] sm:$0xff]
  %v26 = vld [vmem:[%s1 + $0x48] sm:$0xff]
  %v27 = vld [vmem:[%s1 + $0x50] sm:$0xff]
  %v28 = vld [vmem:[%s1 + $0x58] sm:$0xff]
  %v29 = vld [vmem:[%s1 + $0x60] sm:$0xff]
  %v30 = vld [vmem:[%s1 + $0x68] sm:$0xff]
  %v31 = vld [vmem:[%s1 + $0x70] sm:$0xff]
  %v32 = vld [vmem:[%s1 + $0x78] sm:$0xff]
  %v33 = vld [vmem:[%s1 + $0x80] sm:$0xff]
  %v34 = vld [vmem:[%s1 + $0x88] sm:$0xff]
  %v35 = vpack.c.bf16 %v18, %v17
  %v36 = vpack.c.bf16 %v20, %v19
  %v37 = vpack.c.bf16 %v22, %v21
  %v38 = vpack.c.bf16 %v24, %v23
  %v39 = vpack.c.bf16 %v26, %v25
  %v40 = vpack.c.bf16 %v28, %v27
  %v41 = vpack.c.bf16 %v30, %v29
  %v42 = vpack.c.bf16 %v32, %v31
  %v43 = vpack.c.bf16 %v34, %v33
  %v44 = vld [vmem:[%s2] sm:$0xff]
  %v45 = vld [vmem:[%s2 + $0x8] sm:$0xff]
  %47 = vset.pattern.permute.xlu0 0
  %48 = vperm.xlu0 %47, %v44
  %v49 = vpop.permute.xlu0 %48
  %52 = vset.pattern.permute.xlu0 0
  %53 = vperm.xlu0 %52, %v45
  %v54 = vpop.permute.xlu0 %53
  %v58 = vunpack.c.l.b16 %v15
  %v59 = vunpack.c.h.b16 %v15
  %v60 = vunpack.c.l.b16 %v16
  %v61 = vunpack.c.h.b16 %v16
  %v62 = vpack.c.b16 %v60, %v58
  %v63 = vpack.c.b16 %v61, %v59
  %vm65 = vcmask 130048
  %v67 = vsel %vm65, %v63, 0
  %69 = vmatpush.bf16.msra.mxu0 %v42
  %70 = vmatpush.bf16.msra.mxu0 %v41
  %71 = vmatpush.bf16.msra.mxu0 %v40
  %72 = vmatpush.bf16.msra.mxu0 %v39
  %73 = vmatpush.bf16.msra.mxu0 %v38
  %74 = vmatpush.bf16.msra.mxu0 %v37
  %75 = vmatpush.bf16.msra.mxu0 %v36
  %76 = vmatpush.bf16.msra.mxu0 %v35
  %77 = vmatmul.bf16.gmra.mxu0 %v62
  %v78 = vpop.f32.mrf.mxu0
  %v79 = vadd.f32 %v49, %v78
  %v80 = vpop.f32.mrf.mxu0
  %v81 = vadd.f32 %v54, %v80
  %82 = vdwg.mxu0
  %83 = vmatpush.bf16.msra.mxu0 0
  %84 = vmatpush.bf16.msra.mxu0 0
  %85 = vmatpush.bf16.msra.mxu0 0
  %86 = vmatpush.bf16.msra.mxu0 0
  %87 = vmatpush.bf16.msra.mxu0 0
  %88 = vmatpush.bf16.msra.mxu0 0
  %89 = vmatpush.bf16.msra.mxu0 0
  %90 = vmatpush.bf16.msra.mxu0 %v43
  %91 = vmatmul.bf16.gmra.mxu0 %v67
  %v92 = vpop.f32.mrf.mxu0
  %v93 = vadd.f32 %v79, %v92
  %v94 = vpop.f32.mrf.mxu0
  %v95 = vadd.f32 %v81, %v94
  %96 = vdwg.mxu0
  %vm97 = vcmp.ge.f32.partialorder %v93, 0.0
  %vm98 = vcmp.ge.f32.partialorder %v95, 0.0
  %v99 = vmul.f32 %v93, 0.1
  %v100 = vmul.f32 %v95, 0.1
  %v101 = vsel %vm97, %v93, %v99
  %v102 = vsel %vm98, %v95, %v100
  %vm103 = vcmask 457728
  %104 = vst.msk [vmem:[%s3] sm:$0xff] %vm103, %v101
  %105 = vst.msk [vmem:[%s3 + $0x8] sm:$0xff] %vm103, %v102
  // Predicated region
  $region14: #{text_vae_forward.11} parent=0 // pred_check
    _
  $region15: #{text_vae_forward.11} parent=0 // pred_check_branch
    %107 = sbr.rel (0) target = $region17
  $region16: #{text_vae_forward.11} parent=0 // pred_region
    _
  $region17: #{text_vae_forward.11} parent=0 // pred_fallthru
    _
  // Predicated region
  $region18: #{text_vae_forward.11} parent=0 // pred_check
    _
  $region19: #{text_vae_forward.11} parent=0 // pred_check_branch
    %109 = sbr.rel (0) target = $region21
  $region20: #{text_vae_forward.11} parent=0 // pred_region
    _
  $region21: #{text_vae_forward.11} parent=0 // pred_fallthru
    _

// kernel: text_vae_forward.12
$region0: #{text_vae_forward.12}
  #allocation0 [shape = 'u32[]', space=smem, size = 0x4, offset = 0x4, fixed_abs, tag = 'smem constant byte address 0x4 - core index']
  #allocation1 [shape = 'u32[72,128]{1,0:T(1,128)}', space=vmem, size = 0x9000, scoped, tag = 'internal scratch']
  %s0 = inlined_call_operand.vmem [shape: bf16[16,144], index: 0, kind: input, shape index: {}]
  %s1 = inlined_call_operand.vmem [shape: f32[144,12], index: 1, kind: input, shape index: {}]
  %s2 = inlined_call_operand.vmem [shape: f32[16,1], index: 2, kind: input, shape index: {}]
  %s3 = inlined_call_operand.vmem [shape: f32[16,12], index: 3, kind: output, shape index: {}]
  %s4 = sld [smem:[#allocation0]]
  $region22: #{text_vae_forward.12} parent=0
    _
  %s6 = ssub.s32 1, %s4
  %s7 = scalar_select 0, %s6, %s4
  // Predicated region
  $region2: #{text_vae_forward.12} parent=0 // pred_check
    _
  $region3: #{text_vae_forward.12} parent=0 // pred_check_branch
    %9 = sbr.rel (0) target = $region5
  $region4: #{text_vae_forward.12} parent=0 // pred_region
    _
  $region5: #{text_vae_forward.12} parent=0 // pred_fallthru
    _
  // Predicated region
  $region6: #{text_vae_forward.12} parent=0 // pred_check
    _
  $region7: #{text_vae_forward.12} parent=0 // pred_check_branch
    %11 = sbr.rel (0) target = $region9
  $region8: #{text_vae_forward.12} parent=0 // pred_region
    _
  $region9: #{text_vae_forward.12} parent=0 // pred_fallthru
    _
  // Predicated region
  $region10: #{text_vae_forward.12} parent=0 // pred_check
    _
  $region11: #{text_vae_forward.12} parent=0 // pred_check_branch
    %13 = sbr.rel (0) target = $region13
  $region12: #{text_vae_forward.12} parent=0 // pred_region
    _
  $region13: #{text_vae_forward.12} parent=0 // pred_fallthru
    _
  %v15 = vld [vmem:[%s0] sm:$0xff]
  %v16 = vld [vmem:[%s0 + $0x8] sm:$0xff]
  %v17 = vld [vmem:[%s1] sm:$0xff]
  %v18 = vld [vmem:[%s1 + $0x8] sm:$0xff]
  %v19 = vld [vmem:[%s1 + $0x10] sm:$0xff]
  %v20 = vld [vmem:[%s1 + $0x18] sm:$0xff]
  %v21 = vld [vmem:[%s1 + $0x20] sm:$0xff]
  %v22 = vld [vmem:[%s1 + $0x28] sm:$0xff]
  %v23 = vld [vmem:[%s1 + $0x30] sm:$0xff]
  %v24 = vld [vmem:[%s1 + $0x38] sm:$0xff]
  %v25 = vld [vmem:[%s1 + $0x40] sm:$0xff]
  %v26 = vld [vmem:[%s1 + $0x48] sm:$0xff]
  %v27 = vld [vmem:[%s1 + $0x50] sm:$0xff]
  %v28 = vld [vmem:[%s1 + $0x58] sm:$0xff]
  %v29 = vld [vmem:[%s1 + $0x60] sm:$0xff]
  %v30 = vld [vmem:[%s1 + $0x68] sm:$0xff]
  %v31 = vld [vmem:[%s1 + $0x70] sm:$0xff]
  %v32 = vld [vmem:[%s1 + $0x78] sm:$0xff]
  %v33 = vld [vmem:[%s1 + $0x80] sm:$0xff]
  %v34 = vld [vmem:[%s1 + $0x88] sm:$0xff]
  %v35 = vpack.c.bf16 %v18, %v17
  %v36 = vpack.c.bf16 %v20, %v19
  %v37 = vpack.c.bf16 %v22, %v21
  %v38 = vpack.c.bf16 %v24, %v23
  %v39 = vpack.c.bf16 %v26, %v25
  %v40 = vpack.c.bf16 %v28, %v27
  %v41 = vpack.c.bf16 %v30, %v29
  %v42 = vpack.c.bf16 %v32, %v31
  %v43 = vpack.c.bf16 %v34, %v33
  %v44 = vld [vmem:[%s2] sm:$0xff]
  %v45 = vld [vmem:[%s2 + $0x8] sm:$0xff]
  %47 = vset.pattern.permute.xlu0 0
  %48 = vperm.xlu0 %47, %v44
  %v49 = vpop.permute.xlu0 %48
  %52 = vset.pattern.permute.xlu0 0
  %53 = vperm.xlu0 %52, %v45
  %v54 = vpop.permute.xlu0 %53
  %v58 = vunpack.c.l.b16 %v15
  %v59 = vunpack.c.h.b16 %v15
  %v60 = vunpack.c.l.b16 %v16
  %v61 = vunpack.c.h.b16 %v16
  %v62 = vpack.c.b16 %v60, %v58
  %v63 = vpack.c.b16 %v61, %v59
  %vm65 = vcmask 130048
  %v67 = vsel %vm65, %v63, 0
  %69 = vmatpush.bf16.msra.mxu0 %v42
  %70 = vmatpush.bf16.msra.mxu0 %v41
  %71 = vmatpush.bf16.msra.mxu0 %v40
  %72 = vmatpush.bf16.msra.mxu0 %v39
  %73 = vmatpush.bf16.msra.mxu0 %v38
  %74 = vmatpush.bf16.msra.mxu0 %v37
  %75 = vmatpush.bf16.msra.mxu0 %v36
  %76 = vmatpush.bf16.msra.mxu0 %v35
  %77 = vmatmul.bf16.gmra.mxu0 %v62
  %v78 = vpop.f32.mrf.mxu0
  %v79 = vadd.f32 %v49, %v78
  %v80 = vpop.f32.mrf.mxu0
  %v81 = vadd.f32 %v54, %v80
  %82 = vdwg.mxu0
  %83 = vmatpush.bf16.msra.mxu0 0
  %84 = vmatpush.bf16.msra.mxu0 0
  %85 = vmatpush.bf16.msra.mxu0 0
  %86 = vmatpush.bf16.msra.mxu0 0
  %87 = vmatpush.bf16.msra.mxu0 0
  %88 = vmatpush.bf16.msra.mxu0 0
  %89 = vmatpush.bf16.msra.mxu0 0
  %90 = vmatpush.bf16.msra.mxu0 %v43
  %91 = vmatmul.bf16.gmra.mxu0 %v67
  %v92 = vpop.f32.mrf.mxu0
  %v93 = vadd.f32 %v79, %v92
  %v94 = vpop.f32.mrf.mxu0
  %v95 = vadd.f32 %v81, %v94
  %96 = vdwg.mxu0
  %vm97 = vcmp.ge.f32.partialorder %v93, 0.0
  %vm98 = vcmp.ge.f32.partialorder %v95, 0.0
  %v99 = vmul.f32 %v93, 0.1
  %v100 = vmul.f32 %v95, 0.1
  %v101 = vsel %vm97, %v93, %v99
  %v102 = vsel %vm98, %v95, %v100
  %vm103 = vcmask 97280
  %104 = vst.msk [vmem:[%s3] sm:$0xff] %vm103, %v101
  %105 = vst.msk [vmem:[%s3 + $0x8] sm:$0xff] %vm103, %v102
  // Predicated region
  $region14: #{text_vae_forward.12} parent=0 // pred_check
    _
  $region15: #{text_vae_forward.12} parent=0 // pred_check_branch
    %107 = sbr.rel (0) target = $region17
  $region16: #{text_vae_forward.12} parent=0 // pred_region
    _
  $region17: #{text_vae_forward.12} parent=0 // pred_fallthru
    _
  // Predicated region
  $region18: #{text_vae_forward.12} parent=0 // pred_check
    _
  $region19: #{text_vae_forward.12} parent=0 // pred_check_branch
    %109 = sbr.rel (0) target = $region21
  $region20: #{text_vae_forward.12} parent=0 // pred_region
    _
  $region21: #{text_vae_forward.12} parent=0 // pred_fallthru
    _

// kernel: text_vae_forward.13
$region0: #{text_vae_forward.13}
  #allocation0 [shape = 'u32[]', space=smem, size = 0x4, offset = 0x4, fixed_abs, tag = 'smem constant byte address 0x4 - core index']
  #allocation1 [shape = 'u32[72,128]{1,0:T(1,128)}', space=vmem, size = 0x9000, scoped, tag = 'internal scratch']
  %s0 = inlined_call_operand.vmem [shape: f32[2,96], index: 0, kind: input, shape index: {}]
  %s1 = inlined_call_operand.vmem [shape: bf16[96,16], index: 1, kind: input, shape index: {}]
  %s2 = inlined_call_operand.vmem [shape: f32[1,16], index: 2, kind: input, shape index: {}]
  %s3 = inlined_call_operand.vmem [shape: bf16[16,448], index: 3, kind: input, shape index: {}]
  %s4 = inlined_call_operand.vmem [shape: f32[1,448], index: 4, kind: input, shape index: {}]
  %s5 = inlined_call_operand.hbm [shape: f32[2,16], index: 5, kind: output, shape index: {0}]
  %s6 = inlined_call_operand.vmem [shape: f32[2,448], index: 6, kind: output, shape index: {1}]
  %7 = xla_tuple %s5, %s6
  %s8 = sld [smem:[#allocation0]]
  $region38: #{text_vae_forward.13} parent=0
    _
  %s10 = ssub.s32 1, %s8
  %s11 = scalar_select 0, %s10, %s8
  $region1: #{text_vae_forward.13} parent=0
    #allocation2 [shape = 'u8[1024]{0}', space=vmem, size = 0x400, scoped, tag = 'output window, operand 0, single buffered']
    #allocation3 [shape = 's32[1]{0}', space=sflag, size = 0x4, scoped, tag = 'scoped memory for text_vae_forward.13']
    %12 = vsyncpa [#allocation3], 0
    // Predicated region
    $region2: #{text_vae_forward.13} parent=1 // pred_check
      _
    $region3: #{text_vae_forward.13} parent=1 // pred_check_branch
      %14 = sbr.rel (0) target = $region5
    $region4: #{text_vae_forward.13} parent=1 // pred_region
      _
    $region5: #{text_vae_forward.13} parent=1 // pred_fallthru
      _
    // Predicated region
    $region6: #{text_vae_forward.13} parent=1 // pred_check
      _
    $region7: #{text_vae_forward.13} parent=1 // pred_check_branch
      %16 = sbr.rel (0) target = $region9
    $region8: #{text_vae_forward.13} parent=1 // pred_region
      _
    $region9: #{text_vae_forward.13} parent=1 // pred_fallthru
      _
    // Predicated region
    $region10: #{text_vae_forward.13} parent=1 // pred_check
      _
    $region11: #{text_vae_forward.13} parent=1 // pred_check_branch
      %18 = sbr.rel (0) target = $region13
    $region12: #{text_vae_forward.13} parent=1 // pred_region
      _
    $region13: #{text_vae_forward.13} parent=1 // pred_fallthru
      _
    // Predicated region
    $region14: #{text_vae_forward.13} parent=1 // pred_check
      _
    $region15: #{text_vae_forward.13} parent=1 // pred_check_branch
      %20 = sbr.rel (0) target = $region17
    $region16: #{text_vae_forward.13} parent=1 // pred_region
      _
    $region17: #{text_vae_forward.13} parent=1 // pred_fallthru
      _
    // Predicated region
    $region18: #{text_vae_forward.13} parent=1 // pred_check
      _
    $region19: #{text_vae_forward.13} parent=1 // pred_check_branch
      %22 = sbr.rel (0) target = $region21
    $region20: #{text_vae_forward.13} parent=1 // pred_region
      _
    $region21: #{text_vae_forward.13} parent=1 // pred_fallthru
      _
    %v24 = vld [vmem:[%s0] sm:$0x3]
    %v25 = vpack.c.bf16 %v24, %v24
    %v26 = vld [vmem:[%s1] sm:$0xf]
    %v27 = vld [vmem:[%s1 + $0x4] sm:$0xf]
    %v28 = vld [vmem:[%s1 + $0x8] sm:$0xf]
    %v29 = vld [vmem:[%s1 + $0xc] sm:$0xf]
    %v30 = vld [vmem:[%s1 + $0x10] sm:$0xf]
    %v31 = vld [vmem:[%s1 + $0x14] sm:$0xf]
    %v32 = vld [vmem:[%s1 + $0x18] sm:$0xf]
    %v33 = vld [vmem:[%s1 + $0x1c] sm:$0xf]
    %v34 = vld [vmem:[%s1 + $0x20] sm:$0xf]
    %v35 = vld [vmem:[%s1 + $0x24] sm:$0xf]
    %v36 = vld [vmem:[%s1 + $0x28] sm:$0xf]
    %v37 = vld [vmem:[%s1 + $0x2c] sm:$0xf]
    %v38 = vld [vmem:[%s2] sm:$0x1]
    %v40 = vperm.slane %v38, 0
    %v54 = vunpack.c.l.b16 %v26
    %v55 = vunpack.c.l.b16 %v27
    %v56 = vunpack.c.l.b16 %v28
    %v57 = vunpack.c.l.b16 %v29
    %v58 = vunpack.c.l.b16 %v30
    %v59 = vunpack.c.l.b16 %v31
    %v60 = vunpack.c.l.b16 %v32
    %v61 = vunpack.c.l.b16 %v33
    %v62 = vunpack.c.l.b16 %v34
    %v63 = vunpack.c.l.b16 %v35
    %v64 = vunpack.c.l.b16 %v36
    %v65 = vunpack.c.l.b16 %v37
    %v66 = vpack.c.b16 %v55, %v54
    %v67 = vpack.c.b16 %v57, %v56
    %v68 = vpack.c.b16 %v59, %v58
    %v69 = vpack.c.b16 %v61, %v60
    %v70 = vpack.c.b16 %v63, %v62
    %v71 = vpack.c.b16 %v65, %v64
    %vm78 = vcmask 785408
    %v80 = vsel %vm78, %v25, 0
    %82 = vmatpush.bf16.msra.mxu0 0
    %83 = vmatpush.bf16.msra.mxu0 0
    %84 = vmatpush.bf16.msra.mxu0 %v71
    %85 = vmatpush.bf16.msra.mxu0 %v70
    %86 = vmatpush.bf16.msra.mxu0 %v69
    %87 = vmatpush.bf16.msra.mxu0 %v68
    %88 = vmatpush.bf16.msra.mxu0 %v67
    %89 = vmatpush.bf16.msra.mxu0 %v66
    %90 = vmatmul.bf16.gmra.mxu0 %v80
    %v91 = vpop.f32.mrf.mxu0
    %v92 = vadd.f32 %v40, %v91
    %v93 = vpop.f32.mrf.mxu0
    %94 = vdwg.mxu0
    %vm95 = vcmask 123904
    %96 = vst.msk [vmem:[#allocation2] sm:$0x3] %vm95, %v92
    %v97 = vpack.c.bf16 %v92, %v92
    %v98 = vld [vmem:[%s3] sm:$0xff]
    %v99 = vld [vmem:[%s3 + $0x8] sm:$0xff]
    %v100 = vld [vmem:[%s3 + $0x10] sm:$0xff]
    %v101 = vld [vmem:[%s3 + $0x18] sm:$0xff]
    %v102 = vld [vmem:[%s4] sm:$0xf]
    %v104 = vperm.slane %v102, 0
    %v105 = vperm.slane %v102, 1
    %v106 = vperm.slane %v102, 2
    %v107 = vperm.slane %v102, 3
    %v116 = vunpack.c.l.b16 %v98
    %v117 = vunpack.c.h.b16 %v98
    %v118 = vunpack.c.l.b16 %v99
    %v119 = vunpack.c.h.b16 %v99
    %v120 = vunpack.c.l.b16 %v100
    %v121 = vunpack.c.h.b16 %v100
    %v122 = vunpack.c.l.b16 %v101
    %v123 = vunpack.c.h.b16 %v101
    %v124 = vpack.c.b16 %v120, %v116
    %v125 = vpack.c.b16 %v121, %v117
    %v126 = vpack.c.b16 %v122, %v118
    %v127 = vpack.c.b16 %v123, %v119
    %vm132 = vcmask 130048
    %v134 = vsel %vm132, %v97, 0
    %136 = vmatpush.bf16.msra.mxu0 0
    %137 = vmatpush.bf16.msra.mxu0 0
    %138 = vmatpush.bf16.msra.mxu0 0
    %139 = vmatpush.bf16.msra.mxu0 0
    %140 = vmatpush.bf16.msra.mxu0 0
    %141 = vmatpush.bf16.msra.mxu0 0
    %142 = vmatpush.bf16.msra.mxu0 0
    %143 = vmatpush.bf16.msra.mxu0 %v124
    %144 = vmatmul.bf16.gmra.mxu0 %v134
    %v145 = vpop.f32.mrf.mxu0
    %v146 = vadd.f32 %v104, %v145
    %v147 = vpop.f32.mrf.mxu0
    %148 = vdwg.mxu0
    %149 = vmatpush.bf16.msra.mxu0 0
    %150 = vmatpush.bf16.msra.mxu0 0
    %151 = vmatpush.bf16.msra.mxu0 0
    %152 = vmatpush.bf16.msra.mxu0 0
    %153 = vmatpush.bf16.msra.mxu0 0
    %154 = vmatpush.bf16.msra.mxu0 0
    %155 = vmatpush.bf16.msra.mxu0 0
    %156 = vmatpush.bf16.msra.mxu0 %v125
    %157 = vmatmul.bf16.gmra.mxu0 %v134
    %v158 = vpop.f32.mrf.mxu0
    %v159 = vadd.f32 %v105, %v158
    %v160 = vpop.f32.mrf.mxu0
    %161 = vdwg.mxu0
    %162 = vmatpush.bf16.msra.mxu0 0
    %163 = vmatpush.bf16.msra.mxu0 0
    %164 = vmatpush.bf16.msra.mxu0 0
    %165 = vmatpush.bf16.msra.mxu0 0
    %166 = vmatpush.bf16.msra.mxu0 0
    %167 = vmatpush.bf16.msra.mxu0 0
    %168 = vmatpush.bf16.msra.mxu0 0
    %169 = vmatpush.bf16.msra.mxu0 %v126
    %170 = vmatmul.bf16.gmra.mxu0 %v134
    %v171 = vpop.f32.mrf.mxu0
    %v172 = vadd.f32 %v106, %v171
    %v173 = vpop.f32.mrf.mxu0
    %174 = vdwg.mxu0
    %175 = vmatpush.bf16.msra.mxu0 0
    %176 = vmatpush.bf16.msra.mxu0 0
    %177 = vmatpush.bf16.msra.mxu0 0
    %178 = vmatpush.bf16.msra.mxu0 0
    %179 = vmatpush.bf16.msra.mxu0 0
    %180 = vmatpush.bf16.msra.mxu0 0
    %181 = vmatpush.bf16.msra.mxu0 0
    %182 = vmatpush.bf16.msra.mxu0 %v127
    %183 = vmatmul.bf16.gmra.mxu0 %v134
    %v184 = vpop.f32.mrf.mxu0
    %v185 = vadd.f32 %v107, %v184
    %v186 = vpop.f32.mrf.mxu0
    %187 = vdwg.mxu0
    %v188 = vmax.f32 %v146, 0.0
    %v189 = vmax.f32 %v159, 0.0
    %v190 = vmax.f32 %v172, 0.0
    %v191 = vmax.f32 %v185, 0.0
    %v196 = vrot.slane %v189, 6
    %v197 = vrot.slane %v190, 4
    %v198 = vrot.slane %v191, 2
    %vm199 = vcmask 1041408
    %v200 = vsel %vm199, %v188, %v196
    %vm201 = vcmask 1045508
    %v202 = vsel %vm201, %v197, %v198
    %vm203 = vcmask 1043456
    %v204 = vsel %vm203, %v200, %v202
    %vm206 = vcmask 1043458
    %vm207 = vmor %vm206, %vm199
    %vm208 = vmor %vm201, %vm207
    %vm209 = vcmask 523270
    %vm210 = vmor %vm209, %vm208
    %211 = vst.msk [vmem:[%s6] sm:$0xff] %vm210, %v204
    // Predicated region
    $region22: #{text_vae_forward.13} parent=1 // pred_check
      _
    $region23: #{text_vae_forward.13} parent=1 // pred_check_branch
      %213 = sbr.rel (0) target = $region25
    $region24: #{text_vae_forward.13} parent=1 // pred_region
      %215 = vsyncadd [#allocation3], 0
      %s217 = sshll.u32 [#allocation2], 4
      %s218 = int_to_ptr.vmem [resolvable:$true] %s217
      %s219 = sshll.u32 %s5, 4
      %s220 = int_to_ptr.hbm [resolvable:$true] %s219
      %222 = dma.vmem_to_hbm [thread:$0]  %s218, 32, %s220, [#allocation3]
    $region25: #{text_vae_forward.13} parent=1 // pred_fallthru
      _
    // Predicated region
    $region26: #{text_vae_forward.13} parent=1 // pred_check
      _
    $region27: #{text_vae_forward.13} parent=1 // pred_check_branch
      %224 = sbr.rel (0) target = $region29
    $region28: #{text_vae_forward.13} parent=1 // pred_region
      _
    $region29: #{text_vae_forward.13} parent=1 // pred_fallthru
      _
    // Predicated region
    $region30: #{text_vae_forward.13} parent=1 // pred_check
      _
    $region31: #{text_vae_forward.13} parent=1 // pred_check_branch
      %226 = sbr.rel (0) target = $region33
    $region32: #{text_vae_forward.13} parent=1 // pred_region
      %228 = dma.done [#allocation3], 32
    $region33: #{text_vae_forward.13} parent=1 // pred_fallthru
      _
    // Predicated region
    $region34: #{text_vae_forward.13} parent=1 // pred_check
      _
    $region35: #{text_vae_forward.13} parent=1 // pred_check_branch
      %230 = sbr.rel (0) target = $region37
    $region36: #{text_vae_forward.13} parent=1 // pred_region
      _
    $region37: #{text_vae_forward.13} parent=1 // pred_fallthru
      _
    %231 = vsyncpa [#allocation3], 1

// kernel: text_vae_forward.14
$region0: #{text_vae_forward.14}
  #allocation0 [shape = 'u32[]', space=smem, size = 0x4, offset = 0x4, fixed_abs, tag = 'smem constant byte address 0x4 - core index']
  #allocation1 [shape = 'u32[72,128]{1,0:T(1,128)}', space=vmem, size = 0x9000, scoped, tag = 'internal scratch']
  %s0 = inlined_call_operand.vmem [shape: bf16[64,64], index: 0, kind: input, shape index: {}]
  %s1 = inlined_call_operand.vmem [shape: f32[64,56], index: 1, kind: input, shape index: {}]
  %s2 = inlined_call_operand.vmem [shape: f32[64,1], index: 2, kind: input, shape index: {}]
  %s3 = inlined_call_operand.vmem [shape: f32[64,56], index: 3, kind: output, shape index: {}]
  %s4 = sld [smem:[#allocation0]]
  $region22: #{text_vae_forward.14} parent=0
    _
  %s6 = ssub.s32 1, %s4
  %s7 = scalar_select 0, %s6, %s4
  // Predicated region
  $region2: #{text_vae_forward.14} parent=0 // pred_check
    _
  $region3: #{text_vae_forward.14} parent=0 // pred_check_branch
    %9 = sbr.rel (0) target = $region5
  $region4: #{text_vae_forward.14} parent=0 // pred_region
    _
  $region5: #{text_vae_forward.14} parent=0 // pred_fallthru
    _
  // Predicated region
  $region6: #{text_vae_forward.14} parent=0 // pred_check
    _
  $region7: #{text_vae_forward.14} parent=0 // pred_check_branch
    %11 = sbr.rel (0) target = $region9
  $region8: #{text_vae_forward.14} parent=0 // pred_region
    _
  $region9: #{text_vae_forward.14} parent=0 // pred_fallthru
    _
  // Predicated region
  $region10: #{text_vae_forward.14} parent=0 // pred_check
    _
  $region11: #{text_vae_forward.14} parent=0 // pred_check_branch
    %13 = sbr.rel (0) target = $region13
  $region12: #{text_vae_forward.14} parent=0 // pred_region
    _
  $region13: #{text_vae_forward.14} parent=0 // pred_fallthru
    _
  %v15 = vld [vmem:[%s0] sm:$0xf]
  %v16 = vld [vmem:[%s0 + $0x4] sm:$0xf]
  %v17 = vld [vmem:[%s0 + $0x8] sm:$0xf]
  %v18 = vld [vmem:[%s0 + $0xc] sm:$0xf]
  %v19 = vld [vmem:[%s0 + $0x10] sm:$0xf]
  %v20 = vld [vmem:[%s0 + $0x14] sm:$0xf]
  %v21 = vld [vmem:[%s0 + $0x18] sm:$0xf]
  %v22 = vld [vmem:[%s0 + $0x1c] sm:$0xf]
  %v23 = vld [vmem:[%s1] sm:$0xff]
  %v24 = vld [vmem:[%s1 + $0x8] sm:$0xff]
  %v25 = vld [vmem:[%s1 + $0x10] sm:$0xff]
  %v26 = vld [vmem:[%s1 + $0x18] sm:$0xff]
  %v27 = vld [vmem:[%s1 + $0x20] sm:$0xff]
  %v28 = vld [vmem:[%s1 + $0x28] sm:$0xff]
  %v29 = vld [vmem:[%s1 + $0x30] sm:$0xff]
  %v30 = vld [vmem:[%s1 + $0x38] sm:$0xff]
  %v31 = vpack.c.bf16 %v24, %v23
  %v32 = vpack.c.bf16 %v26, %v25
  %v33 = vpack.c.bf16 %v28, %v27
  %v34 = vpack.c.bf16 %v30, %v29
  %v35 = vld [vmem:[%s2] sm:$0xff]
  %v36 = vld [vmem:[%s2 + $0x8] sm:$0xff]
  %v37 = vld [vmem:[%s2 + $0x10] sm:$0xff]
  %v38 = vld [vmem:[%s2 + $0x18] sm:$0xff]
  %v39 = vld [vmem:[%s2 + $0x20] sm:$0xff]
  %v40 = vld [vmem:[%s2 + $0x28] sm:$0xff]
  %v41 = vld [vmem:[%s2 + $0x30] sm:$0xff]
  %v42 = vld [vmem:[%s2 + $0x38] sm:$0xff]
  %44 = vset.pattern.permute.xlu0 0
  %45 = vperm.xlu0 %44, %v35
  %v46 = vpop.permute.xlu0 %45
  %49 = vset.pattern.permute.xlu0 0
  %50 = vperm.xlu0 %49, %v36
  %v51 = vpop.permute.xlu0 %50
  %54 = vset.pattern.permute.xlu0 0
  %55 = vperm.xlu0 %54, %v37
  %v56 = vpop.permute.xlu0 %55
  %59 = vset.pattern.permute.xlu0 0
  %60 = vperm.xlu0 %59, %v38
  %v61 = vpop.permute.xlu0 %60
  %64 = vset.pattern.permute.xlu0 0
  %65 = vperm.xlu0 %64, %v39
  %v66 = vpop.permute.xlu0 %65
  %69 = vset.pattern.permute.xlu0 0
  %70 = vperm.xlu0 %69, %v40
  %v71 = vpop.permute.xlu0 %70
  %74 = vset.pattern.permute.xlu0 0
  %75 = vperm.xlu0 %74, %v41
  %v76 = vpop.permute.xlu0 %75
  %79 = vset.pattern.permute.xlu0 0
  %80 = vperm.xlu0 %79, %v42
  %v81 = vpop.permute.xlu0 %80
  %v91 = vunpack.c.l.b16 %v15
  %v92 = vunpack.c.l.b16 %v16
  %v93 = vunpack.c.l.b16 %v17
  %v94 = vunpack.c.l.b16 %v18
  %v95 = vunpack.c.l.b16 %v19
  %v96 = vunpack.c.l.b16 %v20
  %v97 = vunpack.c.l.b16 %v21
  %v98 = vunpack.c.l.b16 %v22
  %v99 = vpack.c.b16 %v92, %v91
  %v100 = vpack.c.b16 %v94, %v93
  %v101 = vpack.c.b16 %v96, %v95
  %v102 = vpack.c.b16 %v98, %v97
  %vm103 = vcmask 523264
  %v105 = vsel %vm103, %v99, 0
  %v108 = vsel %vm103, %v100, 0
  %v111 = vsel %vm103, %v101, 0
  %v114 = vsel %vm103, %v102, 0
  %116 = vmatpush.bf16.msra.mxu0 0
  %117 = vmatpush.bf16.msra.mxu0 0
  %118 = vmatpush.bf16.msra.mxu0 0
  %119 = vmatpush.bf16.msra.mxu0 0
  %120 = vmatpush.bf16.msra.mxu0 %v34
  %121 = vmatpush.bf16.msra.mxu0 %v33
  %122 = vmatpush.bf16.msra.mxu0 %v32
  %123 = vmatpush.bf16.msra.mxu0 %v31
  %124 = vmatmul.bf16.gmra.mxu0 %v105
  %v125 = vpop.f32.mrf.mxu0
  %v126 = vadd.f32 %v46, %v125
  %v127 = vpop.f32.mrf.mxu0
  %v128 = vadd.f32 %v51, %v127
  %129 = vmatmul.bf16.gmra.mxu0 %v108
  %v130 = vpop.f32.mrf.mxu0
  %v131 = vadd.f32 %v56, %v130
  %v132 = vpop.f32.mrf.mxu0
  %v133 = vadd.f32 %v61, %v132
  %134 = vmatmul.bf16.gmra.mxu0 %v111
  %v135 = vpop.f32.mrf.mxu0
  %v136 = vadd.f32 %v66, %v135
  %v137 = vpop.f32.mrf.mxu0
  %v138 = vadd.f32 %v71, %v137
  %139 = vmatmul.bf16.gmra.mxu0 %v114
  %v140 = vpop.f32.mrf.mxu0
  %v141 = vadd.f32 %v76, %v140
  %v142 = vpop.f32.mrf.mxu0
  %v143 = vadd.f32 %v81, %v142
  %144 = vdwg.mxu0
  %v145 = vmax.f32 %v126, 0.0
  %v146 = vmax.f32 %v128, 0.0
  %v147 = vmax.f32 %v131, 0.0
  %v148 = vmax.f32 %v133, 0.0
  %v149 = vmax.f32 %v136, 0.0
  %v150 = vmax.f32 %v138, 0.0
  %v151 = vmax.f32 %v141, 0.0
  %v152 = vmax.f32 %v143, 0.0
  %vm153 = vcmask 457728
  %154 = vst.msk [vmem:[%s3] sm:$0xff] %vm153, %v145
  %155 = vst.msk [vmem:[%s3 + $0x8] sm:$0xff] %vm153, %v146
  %156 = vst.msk [vmem:[%s3 + $0x10] sm:$0xff] %vm153, %v147
  %157 = vst.msk [vmem:[%s3 + $0x18] sm:$0xff] %vm153, %v148
  %158 = vst.msk [vmem:[%s3 + $0x20] sm:$0xff] %vm153, %v149
  %159 = vst.msk [vmem:[%s3 + $0x28] sm:$0xff] %vm153, %v150
  %160 = vst.msk [vmem:[%s3 + $0x30] sm:$0xff] %vm153, %v151
  %161 = vst.msk [vmem:[%s3 + $0x38] sm:$0xff] %vm153, %v152
  // Predicated region
  $region14: #{text_vae_forward.14} parent=0 // pred_check
    _
  $region15: #{text_vae_forward.14} parent=0 // pred_check_branch
    %163 = sbr.rel (0) target = $region17
  $region16: #{text_vae_forward.14} parent=0 // pred_region
    _
  $region17: #{text_vae_forward.14} parent=0 // pred_fallthru
    _
  // Predicated region
  $region18: #{text_vae_forward.14} parent=0 // pred_check
    _
  $region19: #{text_vae_forward.14} parent=0 // pred_check_branch
    %165 = sbr.rel (0) target = $region21
  $region20: #{text_vae_forward.14} parent=0 // pred_region
    _
  $region21: #{text_vae_forward.14} parent=0 // pred_fallthru
    _

// kernel: text_vae_forward.15
$region0: #{text_vae_forward.15}
  #allocation0 [shape = 'u32[]', space=smem, size = 0x4, offset = 0x4, fixed_abs, tag = 'smem constant byte address 0x4 - core index']
  #allocation1 [shape = 'u32[72,128]{1,0:T(1,128)}', space=vmem, size = 0x9000, scoped, tag = 'internal scratch']
  %s0 = inlined_call_operand.vmem [shape: bf16[96,96], index: 0, kind: input, shape index: {}]
  %s1 = inlined_call_operand.vmem [shape: f32[96,240], index: 1, kind: input, shape index: {}]
  %s2 = inlined_call_operand.vmem [shape: f32[96,1], index: 2, kind: input, shape index: {}]
  %s3 = inlined_call_operand.vmem [shape: f32[96,240], index: 3, kind: output, shape index: {}]
  %s4 = sld [smem:[#allocation0]]
  $region22: #{text_vae_forward.15} parent=0
    _
  %s6 = ssub.s32 1, %s4
  %s7 = scalar_select 0, %s6, %s4
  // Predicated region
  $region2: #{text_vae_forward.15} parent=0 // pred_check
    _
  $region3: #{text_vae_forward.15} parent=0 // pred_check_branch
    %9 = sbr.rel (0) target = $region5
  $region4: #{text_vae_forward.15} parent=0 // pred_region
    _
  $region5: #{text_vae_forward.15} parent=0 // pred_fallthru
    _
  // Predicated region
  $region6: #{text_vae_forward.15} parent=0 // pred_check
    _
  $region7: #{text_vae_forward.15} parent=0 // pred_check_branch
    %11 = sbr.rel (0) target = $region9
  $region8: #{text_vae_forward.15} parent=0 // pred_region
    _
  $region9: #{text_vae_forward.15} parent=0 // pred_fallthru
    _
  // Predicated region
  $region10: #{text_vae_forward.15} parent=0 // pred_check
    _
  $region11: #{text_vae_forward.15} parent=0 // pred_check_branch
    %13 = sbr.rel (0) target = $region13
  $region12: #{text_vae_forward.15} parent=0 // pred_region
    _
  $region13: #{text_vae_forward.15} parent=0 // pred_fallthru
    _
  %v15 = vld [vmem:[%s0] sm:$0xf]
  %v16 = vld [vmem:[%s0 + $0x4] sm:$0xf]
  %v17 = vld [vmem:[%s0 + $0x8] sm:$0xf]
  %v18 = vld [vmem:[%s0 + $0xc] sm:$0xf]
  %v19 = vld [vmem:[%s0 + $0x10] sm:$0xf]
  %v20 = vld [vmem:[%s0 + $0x14] sm:$0xf]
  %v21 = vld [vmem:[%s0 + $0x18] sm:$0xf]
  %v22 = vld [vmem:[%s0 + $0x1c] sm:$0xf]
  %v23 = vld [vmem:[%s0 + $0x20] sm:$0xf]
  %v24 = vld [vmem:[%s0 + $0x24] sm:$0xf]
  %v25 = vld [vmem:[%s0 + $0x28] sm:$0xf]
  %v26 = vld [vmem:[%s0 + $0x2c] sm:$0xf]
  %v27 = vld [vmem:[%s1] sm:$0xff]
  %v28 = vld [vmem:[%s1 + $0x8] sm:$0xff]
  %v29 = vld [vmem:[%s1 + $0x10] sm:$0xff]
  %v30 = vld [vmem:[%s1 + $0x18] sm:$0xff]
  %v31 = vld [vmem:[%s1 + $0x20] sm:$0xff]
  %v32 = vld [vmem:[%s1 + $0x28] sm:$0xff]
  %v33 = vld [vmem:[%s1 + $0x30] sm:$0xff]
  %v34 = vld [vmem:[%s1 + $0x38] sm:$0xff]
  %v35 = vld [vmem:[%s1 + $0x40] sm:$0xff]
  %v36 = vld [vmem:[%s1 + $0x48] sm:$0xff]
  %v37 = vld [vmem:[%s1 + $0x50] sm:$0xff]
  %v38 = vld [vmem:[%s1 + $0x58] sm:$0xff]
  %v39 = vld [vmem:[%s1 + $0x60] sm:$0xff]
  %v40 = vld [vmem:[%s1 + $0x68] sm:$0xff]
  %v41 = vld [vmem:[%s1 + $0x70] sm:$0xff]
  %v42 = vld [vmem:[%s1 + $0x78] sm:$0xff]
  %v43 = vld [vmem:[%s1 + $0x80] sm:$0xff]
  %v44 = vld [vmem:[%s1 + $0x88] sm:$0xff]
  %v45 = vld [vmem:[%s1 + $0x90] sm:$0xff]
  %v46 = vld [vmem:[%s1 + $0x98] sm:$0xff]
  %v47 = vld [vmem:[%s1 + $0xa0] sm:$0xff]
  %v48 = vld [vmem:[%s1 + $0xa8] sm:$0xff]
  %v49 = vld [vmem:[%s1 + $0xb0] sm:$0xff]
  %v50 = vld [vmem:[%s1 + $0xb8] sm:$0xff]
  %v51 = vpack.c.bf16 %v29, %v27
  %v52 = vpack.c.bf16 %v30, %v28
  %v53 = vpack.c.bf16 %v33, %v31
  %v54 = vpack.c.bf16 %v34, %v32
  %v55 = vpack.c.bf16 %v37, %v35
  %v56 = vpack.c.bf16 %v38, %v36
  %v57 = vpack.c.bf16 %v41, %v39
  %v58 = vpack.c.bf16 %v42, %v40
  %v59 = vpack.c.bf16 %v45, %v43
  %v60 = vpack.c.bf16 %v46, %v44
  %v61 = vpack.c.bf16 %v49, %v47
  %v62 = vpack.c.bf16 %v50, %v48
  %v63 = vld [vmem:[%s2] sm:$0xff]
  %v64 = vld [vmem:[%s2 + $0x8] sm:$0xff]
  %v65 = vld [vmem:[%s2 + $0x10] sm:$0xff]
  %v66 = vld [vmem:[%s2 + $0x18] sm:$0xff]
  %v67 = vld [vmem:[%s2 + $0x20] sm:$0xff]
  %v68 = vld [vmem:[%s2 + $0x28] sm:$0xff]
  %v69 = vld [vmem:[%s2 + $0x30] sm:$0xff]
  %v70 = vld [vmem:[%s2 + $0x38] sm:$0xff]
  %v71 = vld [vmem:[%s2 + $0x40] sm:$0xff]
  %v72 = vld [vmem:[%s2 + $0x48] sm:$0xff]
  %v73 = vld [vmem:[%s2 + $0x50] sm:$0xff]
  %v74 = vld [vmem:[%s2 + $0x58] sm:$0xff]
  %76 = vset.pattern.permute.xlu0 0
  %77 = vperm.xlu0 %76, %v63
  %v78 = vpop.permute.xlu0 %77
  %81 = vset.pattern.permute.xlu0 0
  %82 = vperm.xlu0 %81, %v64
  %v83 = vpop.permute.xlu0 %82
  %86 = vset.pattern.permute.xlu0 0
  %87 = vperm.xlu0 %86, %v65
  %v88 = vpop.permute.xlu0 %87
  %91 = vset.pattern.permute.xlu0 0
  %92 = vperm.xlu0 %91, %v66
  %v93 = vpop.permute.xlu0 %92
  %96 = vset.pattern.permute.xlu0 0
  %97 = vperm.xlu0 %96, %v67
  %v98 = vpop.permute.xlu0 %97
  %101 = vset.pattern.permute.xlu0 0
  %102 = vperm.xlu0 %101, %v68
  %v103 = vpop.permute.xlu0 %102
  %106 = vset.pattern.permute.xlu0 0
  %107 = vperm.xlu0 %106, %v69
  %v108 = vpop.permute.xlu0 %107
  %111 = vset.pattern.permute.xlu0 0
  %112 = vperm.xlu0 %111, %v70
  %v113 = vpop.permute.xlu0 %112
  %116 = vset.pattern.permute.xlu0 0
  %117 = vperm.xlu0 %116, %v71
  %v118 = vpop.permute.xlu0 %117
  %121 = vset.pattern.permute.xlu0 0
  %122 = vperm.xlu0 %121, %v72
  %v123 = vpop.permute.xlu0 %122
  %126 = vset.pattern.permute.xlu0 0
  %127 = vperm.xlu0 %126, %v73
  %v128 = vpop.permute.xlu0 %127
  %131 = vset.pattern.permute.xlu0 0
  %132 = vperm.xlu0 %131, %v74
  %v133 = vpop.permute.xlu0 %132
  %v147 = vunpack.c.l.b16 %v15
  %v148 = vunpack.c.l.b16 %v16
  %v149 = vunpack.c.l.b16 %v17
  %v150 = vunpack.c.l.b16 %v18
  %v151 = vunpack.c.l.b16 %v19
  %v152 = vunpack.c.l.b16 %v20
  %v153 = vunpack.c.l.b16 %v21
  %v154 = vunpack.c.l.b16 %v22
  %v155 = vunpack.c.l.b16 %v23
  %v156 = vunpack.c.l.b16 %v24
  %v157 = vunpack.c.l.b16 %v25
  %v158 = vunpack.c.l.b16 %v26
  %v159 = vpack.c.b16 %v148, %v147
  %v160 = vpack.c.b16 %v150, %v149
  %v161 = vpack.c.b16 %v152, %v151
  %v162 = vpack.c.b16 %v154, %v153
  %v163 = vpack.c.b16 %v156, %v155
  %v164 = vpack.c.b16 %v158, %v157
  %vm165 = vcmask 785408
  %v167 = vsel %vm165, %v159, 0
  %v170 = vsel %vm165, %v160, 0
  %v173 = vsel %vm165, %v161, 0
  %v176 = vsel %vm165, %v162, 0
  %v179 = vsel %vm165, %v163, 0
  %v182 = vsel %vm165, %v164, 0
  %184 = vmatpush.bf16.msra.mxu0 0
  %185 = vmatpush.bf16.msra.mxu0 0
  %186 = vmatpush.bf16.msra.mxu0 %v61
  %187 = vmatpush.bf16.msra.mxu0 %v59
  %188 = vmatpush.bf16.msra.mxu0 %v57
  %189 = vmatpush.bf16.msra.mxu0 %v55
  %190 = vmatpush.bf16.msra.mxu0 %v53
  %191 = vmatpush.bf16.msra.mxu0 %v51
  %192 = vmatmul.bf16.gmra.mxu0 %v167
  %v193 = vpop.f32.mrf.mxu0
  %v194 = vadd.f32 %v78, %v193
  %v195 = vpop.f32.mrf.mxu0
  %v196 = vadd.f32 %v83, %v195
  %197 = vmatmul.bf16.gmra.mxu0 %v170
  %v198 = vpop.f32.mrf.mxu0
  %v199 = vadd.f32 %v88, %v198
  %v200 = vpop.f32.mrf.mxu0
  %v201 = vadd.f32 %v93, %v200
  %202 = vmatmul.bf16.gmra.mxu0 %v173
  %v203 = vpop.f32.mrf.mxu0
  %v204 = vadd.f32 %v98, %v203
  %v205 = vpop.f32.mrf.mxu0
  %v206 = vadd.f32 %v103, %v205
  %207 = vmatmul.bf16.gmra.mxu0 %v176
  %v208 = vpop.f32.mrf.mxu0
  %v209 = vadd.f32 %v108, %v208
  %v210 = vpop.f32.mrf.mxu0
  %v211 = vadd.f32 %v113, %v210
  %212 = vmatmul.bf16.gmra.mxu0 %v179
  %v213 = vpop.f32.mrf.mxu0
  %v214 = vadd.f32 %v118, %v213
  %v215 = vpop.f32.mrf.mxu0
  %v216 = vadd.f32 %v123, %v215
  %217 = vmatmul.bf16.gmra.mxu0 %v182
  %v218 = vpop.f32.mrf.mxu0
  %v219 = vadd.f32 %v128, %v218
  %v220 = vpop.f32.mrf.mxu0
  %v221 = vadd.f32 %v133, %v220
  %222 = vdwg.mxu0
  %223 = vmatpush.bf16.msra.mxu0 0
  %224 = vmatpush.bf16.msra.mxu0 0
  %225 = vmatpush.bf16.msra.mxu0 %v62
  %226 = vmatpush.bf16.msra.mxu0 %v60
  %227 = vmatpush.bf16.msra.mxu0 %v58
  %228 = vmatpush.bf16.msra.mxu0 %v56
  %229 = vmatpush.bf16.msra.mxu0 %v54
  %230 = vmatpush.bf16.msra.mxu0 %v52
  %231 = vmatmul.bf16.gmra.mxu0 %v167
  %v232 = vpop.f32.mrf.mxu0
  %v233 = vadd.f32 %v78, %v232
  %v234 = vpop.f32.mrf.mxu0
  %v235 = vadd.f32 %v83, %v234
  %236 = vmatmul.bf16.gmra.mxu0 %v170
  %v237 = vpop.f32.mrf.mxu0
  %v238 = vadd.f32 %v88, %v237
  %v239 = vpop.f32.mrf.mxu0
  %v240 = vadd.f32 %v93, %v239
  %241 = vmatmul.bf16.gmra.mxu0 %v173
  %v242 = vpop.f32.mrf.mxu0
  %v243 = vadd.f32 %v98, %v242
  %v244 = vpop.f32.mrf.mxu0
  %v245 = vadd.f32 %v103, %v244
  %246 = vmatmul.bf16.gmra.mxu0 %v176
  %v247 = vpop.f32.mrf.mxu0
  %v248 = vadd.f32 %v108, %v247
  %v249 = vpop.f32.mrf.mxu0
  %v250 = vadd.f32 %v113, %v249
  %251 = vmatmul.bf16.gmra.mxu0 %v179
  %v252 = vpop.f32.mrf.mxu0
  %v253 = vadd.f32 %v118, %v252
  %v254 = vpop.f32.mrf.mxu0
  %v255 = vadd.f32 %v123, %v254
  %256 = vmatmul.bf16.gmra.mxu0 %v182
  %v257 = vpop.f32.mrf.mxu0
  %v258 = vadd.f32 %v128, %v257
  %v259 = vpop.f32.mrf.mxu0
  %v260 = vadd.f32 %v133, %v259
  %261 = vdwg.mxu0
  %v262 = vmax.f32 %v194, 0.0
  %v263 = vmax.f32 %v233, 0.0
  %v264 = vmax.f32 %v196, 0.0
  %v265 = vmax.f32 %v235, 0.0
  %v266 = vmax.f32 %v199, 0.0
  %v267 = vmax.f32 %v238, 0.0
  %v268 = vmax.f32 %v201, 0.0
  %v269 = vmax.f32 %v240, 0.0
  %v270 = vmax.f32 %v204, 0.0
  %v271 = vmax.f32 %v243, 0.0
  %v272 = vmax.f32 %v206, 0.0
  %v273 = vmax.f32 %v245, 0.0
  %v274 = vmax.f32 %v209, 0.0
  %v275 = vmax.f32 %v248, 0.0
  %v276 = vmax.f32 %v211, 0.0
  %v277 = vmax.f32 %v250, 0.0
  %v278 = vmax.f32 %v214, 0.0
  %v279 = vmax.f32 %v253, 0.0
  %v280 = vmax.f32 %v216, 0.0
  %v281 = vmax.f32 %v255, 0.0
  %v282 = vmax.f32 %v219, 0.0
  %v283 = vmax.f32 %v258, 0.0
  %v284 = vmax.f32 %v221, 0.0
  %v285 = vmax.f32 %v260, 0.0
  %286 = vst [vmem:[%s3] sm:$0xff] %v262
  %vm287 = vcmask 916480
  %288 = vst.msk [vmem:[%s3 + $0x8] sm:$0xff] %vm287, %v263
  %289 = vst [vmem:[%s3 + $0x10] sm:$0xff] %v264
  %290 = vst.msk [vmem:[%s3 + $0x18] sm:$0xff] %vm287, %v265
  %291 = vst [vmem:[%s3 + $0x20] sm:$0xff] %v266
  %292 = vst.msk [vmem:[%s3 + $0x28] sm:$0xff] %vm287, %v267
  %293 = vst [vmem:[%s3 + $0x30] sm:$0xff] %v268
  %294 = vst.msk [vmem:[%s3 + $0x38] sm:$0xff] %vm287, %v269
  %295 = vst [vmem:[%s3 + $0x40] sm:$0xff] %v270
  %296 = vst.msk [vmem:[%s3 + $0x48] sm:$0xff] %vm287, %v271
  %297 = vst [vmem:[%s3 + $0x50] sm:$0xff] %v272
  %298 = vst.msk [vmem:[%s3 + $0x58] sm:$0xff] %vm287, %v273
  %299 = vst [vmem:[%s3 + $0x60] sm:$0xff] %v274
  %300 = vst.msk [vmem:[%s3 + $0x68] sm:$0xff] %vm287, %v275
  %301 = vst [vmem:[%s3 + $0x70] sm:$0xff] %v276
  %302 = vst.msk [vmem:[%s3 + $0x78] sm:$0xff] %vm287, %v277
  %303 = vst [vmem:[%s3 + $0x80] sm:$0xff] %v278
  %304 = vst.msk [vmem:[%s3 + $0x88] sm:$0xff] %vm287, %v279
  %305 = vst [vmem:[%s3 + $0x90] sm:$0xff] %v280
  %306 = vst.msk [vmem:[%s3 + $0x98] sm:$0xff] %vm287, %v281
  %307 = vst [vmem:[%s3 + $0xa0] sm:$0xff] %v282
  %308 = vst.msk [vmem:[%s3 + $0xa8] sm:$0xff] %vm287, %v283
  %309 = vst [vmem:[%s3 + $0xb0] sm:$0xff] %v284
  %310 = vst.msk [vmem:[%s3 + $0xb8] sm:$0xff] %vm287, %v285
  // Predicated region
  $region14: #{text_vae_forward.15} parent=0 // pred_check
    _
  $region15: #{text_vae_forward.15} parent=0 // pred_check_branch
    %312 = sbr.rel (0) target = $region17
  $region16: #{text_vae_forward.15} parent=0 // pred_region
    _
  $region17: #{text_vae_forward.15} parent=0 // pred_fallthru
    _
  // Predicated region
  $region18: #{text_vae_forward.15} parent=0 // pred_check
    _
  $region19: #{text_vae_forward.15} parent=0 // pred_check_branch
    %314 = sbr.rel (0) target = $region21
  $region20: #{text_vae_forward.15} parent=0 // pred_region
    _
  $region21: #{text_vae_forward.15} parent=0 // pred_fallthru
    _

// kernel: text_vae_forward.16
$region0: #{text_vae_forward.16}
  #allocation0 [shape = 'u32[]', space=smem, size = 0x4, offset = 0x4, fixed_abs, tag = 'smem constant byte address 0x4 - core index']
  #allocation1 [shape = 'u32[72,128]{1,0:T(1,128)}', space=vmem, size = 0x9000, scoped, tag = 'internal scratch']
  %s0 = inlined_call_operand.vmem [shape: bf16[16,96], index: 0, kind: input, shape index: {}]
  %s1 = inlined_call_operand.vmem [shape: f32[96,1470], index: 1, kind: input, shape index: {}]
  %s2 = inlined_call_operand.vmem [shape: f32[16,1], index: 2, kind: input, shape index: {}]
  %s3 = inlined_call_operand.vmem [shape: f32[16,1470], index: 3, kind: output, shape index: {}]
  %s4 = sld [smem:[#allocation0]]
  $region22: #{text_vae_forward.16} parent=0
    _
  %s6 = ssub.s32 1, %s4
  %s7 = scalar_select 0, %s6, %s4
  // Predicated region
  $region2: #{text_vae_forward.16} parent=0 // pred_check
    _
  $region3: #{text_vae_forward.16} parent=0 // pred_check_branch
    %9 = sbr.rel (0) target = $region5
  $region4: #{text_vae_forward.16} parent=0 // pred_region
    _
  $region5: #{text_vae_forward.16} parent=0 // pred_fallthru
    _
  // Predicated region
  $region6: #{text_vae_forward.16} parent=0 // pred_check
    _
  $region7: #{text_vae_forward.16} parent=0 // pred_check_branch
    %11 = sbr.rel (0) target = $region9
  $region8: #{text_vae_forward.16} parent=0 // pred_region
    _
  $region9: #{text_vae_forward.16} parent=0 // pred_fallthru
    _
  // Predicated region
  $region10: #{text_vae_forward.16} parent=0 // pred_check
    _
  $region11: #{text_vae_forward.16} parent=0 // pred_check_branch
    %13 = sbr.rel (0) target = $region13
  $region12: #{text_vae_forward.16} parent=0 // pred_region
    _
  $region13: #{text_vae_forward.16} parent=0 // pred_fallthru
    _
  %v15 = vld [vmem:[%s0] sm:$0xf]
  %v16 = vld [vmem:[%s0 + $0x4] sm:$0xf]
  %v17 = vld [vmem:[%s1] sm:$0xff]
  %v18 = vld [vmem:[%s1 + $0x8] sm:$0xff]
  %v19 = vld [vmem:[%s1 + $0x10] sm:$0xff]
  %v20 = vld [vmem:[%s1 + $0x18] sm:$0xff]
  %v21 = vld [vmem:[%s1 + $0x20] sm:$0xff]
  %v22 = vld [vmem:[%s1 + $0x28] sm:$0xff]
  %v23 = vld [vmem:[%s1 + $0x30] sm:$0xff]
  %v24 = vld [vmem:[%s1 + $0x38] sm:$0xff]
  %v25 = vld [vmem:[%s1 + $0x40] sm:$0xff]
  %v26 = vld [vmem:[%s1 + $0x48] sm:$0xff]
  %v27 = vld [vmem:[%s1 + $0x50] sm:$0xff]
  %v28 = vld [vmem:[%s1 + $0x58] sm:$0xff]
  %v29 = vld [vmem:[%s1 + $0x60] sm:$0xff]
  %v30 = vld [vmem:[%s1 + $0x68] sm:$0xff]
  %v31 = vld [vmem:[%s1 + $0x70] sm:$0xff]
  %v32 = vld [vmem:[%s1 + $0x78] sm:$0xff]
  %v33 = vld [vmem:[%s1 + $0x80] sm:$0xff]
  %v34 = vld [vmem:[%s1 + $0x88] sm:$0xff]
  %v35 = vld [vmem:[%s1 + $0x90] sm:$0xff]
  %v36 = vld [vmem:[%s1 + $0x98] sm:$0xff]
  %v37 = vld [vmem:[%s1 + $0xa0] sm:$0xff]
  %v38 = vld [vmem:[%s1 + $0xa8] sm:$0xff]
  %v39 = vld [vmem:[%s1 + $0xb0] sm:$0xff]
  %v40 = vld [vmem:[%s1 + $0xb8] sm:$0xff]
  %v41 = vld [vmem:[%s1 + $0xc0] sm:$0xff]
  %v42 = vld [vmem:[%s1 + $0xc8] sm:$0xff]
  %v43 = vld [vmem:[%s1 + $0xd0] sm:$0xff]
  %v44 = vld [vmem:[%s1 + $0xd8] sm:$0xff]
  %v45 = vld [vmem:[%s1 + $0xe0] sm:$0xff]
  %v46 = vld [vmem:[%s1 + $0xe8] sm:$0xff]
  %v47 = vld [vmem:[%s1 + $0xf0] sm:$0xff]
  %v48 = vld [vmem:[%s1 + $0xf8] sm:$0xff]
  %v49 = vld [vmem:[%s1 + $0x100] sm:$0xff]
  %v50 = vld [vmem:[%s1 + $0x108] sm:$0xff]
  %v51 = vld [vmem:[%s1 + $0x110] sm:$0xff]
  %v52 = vld [vmem:[%s1 + $0x118] sm:$0xff]
  %v53 = vld [vmem:[%s1 + $0x120] sm:$0xff]
  %v54 = vld [vmem:[%s1 + $0x128] sm:$0xff]
  %v55 = vld [vmem:[%s1 + $0x130] sm:$0xff]
  %v56 = vld [vmem:[%s1 + $0x138] sm:$0xff]
  %v57 = vld [vmem:[%s1 + $0x140] sm:$0xff]
  %v58 = vld [vmem:[%s1 + $0x148] sm:$0xff]
  %v59 = vld [vmem:[%s1 + $0x150] sm:$0xff]
  %v60 = vld [vmem:[%s1 + $0x158] sm:$0xff]
  %v61 = vld [vmem:[%s1 + $0x160] sm:$0xff]
  %v62 = vld [vmem:[%s1 + $0x168] sm:$0xff]
  %v63 = vld [vmem:[%s1 + $0x170] sm:$0xff]
  %v64 = vld [vmem:[%s1 + $0x178] sm:$0xff]
  %v65 = vld [vmem:[%s1 + $0x180] sm:$0xff]
  %v66 = vld [vmem:[%s1 + $0x188] sm:$0xff]
  %v67 = vld [vmem:[%s1 + $0x190] sm:$0xff]
  %v68 = vld [vmem:[%s1 + $0x198] sm:$0xff]
  %v69 = vld [vmem:[%s1 + $0x1a0] sm:$0xff]
  %v70 = vld [vmem:[%s1 + $0x1a8] sm:$0xff]
  %v71 = vld [vmem:[%s1 + $0x1b0] sm:$0xff]
  %v72 = vld [vmem:[%s1 + $0x1b8] sm:$0xff]
  %v73 = vld [vmem:[%s1 + $0x1c0] sm:$0xff]
  %v74 = vld [vmem:[%s1 + $0x1c8] sm:$0xff]
  %v75 = vld [vmem:[%s1 + $0x1d0] sm:$0xff]
  %v76 = vld [vmem:[%s1 + $0x1d8] sm:$0xff]
  %v77 = vld [vmem:[%s1 + $0x1e0] sm:$0xff]
  %v78 = vld [vmem:[%s1 + $0x1e8] sm:$0xff]
  %v79 = vld [vmem:[%s1 + $0x1f0] sm:$0xff]
  %v80 = vld [vmem:[%s1 + $0x1f8] sm:$0xff]
  %v81 = vld [vmem:[%s1 + $0x200] sm:$0xff]
  %v82 = vld [vmem:[%s1 + $0x208] sm:$0xff]
  %v83 = vld [vmem:[%s1 + $0x210] sm:$0xff]
  %v84 = vld [vmem:[%s1 + $0x218] sm:$0xff]
  %v85 = vld [vmem:[%s1 + $0x220] sm:$0xff]
  %v86 = vld [vmem:[%s1 + $0x228] sm:$0xff]
  %v87 = vld [vmem:[%s1 + $0x230] sm:$0xff]
  %v88 = vld [vmem:[%s1 + $0x238] sm:$0xff]
  %v89 = vld [vmem:[%s1 + $0x240] sm:$0xff]
  %v90 = vld [vmem:[%s1 + $0x248] sm:$0xff]
  %v91 = vld [vmem:[%s1 + $0x250] sm:$0xff]
  %v92 = vld [vmem:[%s1 + $0x258] sm:$0xff]
  %v93 = vld [vmem:[%s1 + $0x260] sm:$0xff]
  %v94 = vld [vmem:[%s1 + $0x268] sm:$0xff]
  %v95 = vld [vmem:[%s1 + $0x270] sm:$0xff]
  %v96 = vld [vmem:[%s1 + $0x278] sm:$0xff]
  %v97 = vld [vmem:[%s1 + $0x280] sm:$0xff]
  %v98 = vld [vmem:[%s1 + $0x288] sm:$0xff]
  %v99 = vld [vmem:[%s1 + $0x290] sm:$0xff]
  %v100 = vld [vmem:[%s1 + $0x298] sm:$0xff]
  %v101 = vld [vmem:[%s1 + $0x2a0] sm:$0xff]
  %v102 = vld [vmem:[%s1 + $0x2a8] sm:$0xff]
  %v103 = vld [vmem:[%s1 + $0x2b0] sm:$0xff]
  %v104 = vld [vmem:[%s1 + $0x2b8] sm:$0xff]
  %v105 = vld [vmem:[%s1 + $0x2c0] sm:$0xff]
  %v106 = vld [vmem:[%s1 + $0x2c8] sm:$0xff]
  %v107 = vld [vmem:[%s1 + $0x2d0] sm:$0xff]
  %v108 = vld [vmem:[%s1 + $0x2d8] sm:$0xff]
  %v109 = vld [vmem:[%s1 + $0x2e0] sm:$0xff]
  %v110 = vld [vmem:[%s1 + $0x2e8] sm:$0xff]
  %v111 = vld [vmem:[%s1 + $0x2f0] sm:$0xff]
  %v112 = vld [vmem:[%s1 + $0x2f8] sm:$0xff]
  %v113 = vld [vmem:[%s1 + $0x300] sm:$0xff]
  %v114 = vld [vmem:[%s1 + $0x308] sm:$0xff]
  %v115 = vld [vmem:[%s1 + $0x310] sm:$0xff]
  %v116 = vld [vmem:[%s1 + $0x318] sm:$0xff]
  %v117 = vld [vmem:[%s1 + $0x320] sm:$0xff]
  %v118 = vld [vmem:[%s1 + $0x328] sm:$0xff]
  %v119 = vld [vmem:[%s1 + $0x330] sm:$0xff]
  %v120 = vld [vmem:[%s1 + $0x338] sm:$0xff]
  %v121 = vld [vmem:[%s1 + $0x340] sm:$0xff]
  %v122 = vld [vmem:[%s1 + $0x348] sm:$0xff]
  %v123 = vld [vmem:[%s1 + $0x350] sm:$0xff]
  %v124 = vld [vmem:[%s1 + $0x358] sm:$0xff]
  %v125 = vld [vmem:[%s1 + $0x360] sm:$0xff]
  %v126 = vld [vmem:[%s1 + $0x368] sm:$0xff]
  %v127 = vld [vmem:[%s1 + $0x370] sm:$0xff]
  %v128 = vld [vmem:[%s1 + $0x378] sm:$0xff]
  %v129 = vld [vmem:[%s1 + $0x380] sm:$0xff]
  %v130 = vld [vmem:[%s1 + $0x388] sm:$0xff]
  %v131 = vld [vmem:[%s1 + $0x390] sm:$0xff]
  %v132 = vld [vmem:[%s1 + $0x398] sm:$0xff]
  %v133 = vld [vmem:[%s1 + $0x3a0] sm:$0xff]
  %v134 = vld [vmem:[%s1 + $0x3a8] sm:$0xff]
  %v135 = vld [vmem:[%s1 + $0x3b0] sm:$0xff]
  %v136 = vld [vmem:[%s1 + $0x3b8] sm:$0xff]
  %v137 = vld [vmem:[%s1 + $0x3c0] sm:$0xff]
  %v138 = vld [vmem:[%s1 + $0x3c8] sm:$0xff]
  %v139 = vld [vmem:[%s1 + $0x3d0] sm:$0xff]
  %v140 = vld [vmem:[%s1 + $0x3d8] sm:$0xff]
  %v141 = vld [vmem:[%s1 + $0x3e0] sm:$0xff]
  %v142 = vld [vmem:[%s1 + $0x3e8] sm:$0xff]
  %v143 = vld [vmem:[%s1 + $0x3f0] sm:$0xff]
  %v144 = vld [vmem:[%s1 + $0x3f8] sm:$0xff]
  %v145 = vld [vmem:[%s1 + $0x400] sm:$0xff]
  %v146 = vld [vmem:[%s1 + $0x408] sm:$0xff]
  %v147 = vld [vmem:[%s1 + $0x410] sm:$0xff]
  %v148 = vld [vmem:[%s1 + $0x418] sm:$0xff]
  %v149 = vld [vmem:[%s1 + $0x420] sm:$0xff]
  %v150 = vld [vmem:[%s1 + $0x428] sm:$0xff]
  %v151 = vld [vmem:[%s1 + $0x430] sm:$0xff]
  %v152 = vld [vmem:[%s1 + $0x438] sm:$0xff]
  %v153 = vld [vmem:[%s1 + $0x440] sm:$0xff]
  %v154 = vld [vmem:[%s1 + $0x448] sm:$0xff]
  %v155 = vld [vmem:[%s1 + $0x450] sm:$0xff]
  %v156 = vld [vmem:[%s1 + $0x458] sm:$0xff]
  %v157 = vld [vmem:[%s1 + $0x460] sm:$0xff]
  %v158 = vld [vmem:[%s1 + $0x468] sm:$0xff]
  %v159 = vld [vmem:[%s1 + $0x470] sm:$0xff]
  %v160 = vld [vmem:[%s1 + $0x478] sm:$0xff]
  %v161 = vpack.c.bf16 %v29, %v17
  %v162 = vpack.c.bf16 %v30, %v18
  %v163 = vpack.c.bf16 %v31, %v19
  %v164 = vpack.c.bf16 %v32, %v20
  %v165 = vpack.c.bf16 %v33, %v21
  %v166 = vpack.c.bf16 %v34, %v22
  %v167 = vpack.c.bf16 %v35, %v23
  %v168 = vpack.c.bf16 %v36, %v24
  %v169 = vpack.c.bf16 %v37, %v25
  %v170 = vpack.c.bf16 %v38, %v26
  %v171 = vpack.c.bf16 %v39, %v27
  %v172 = vpack.c.bf16 %v40, %v28
  %v173 = vpack.c.bf16 %v53, %v41
  %v174 = vpack.c.bf16 %v54, %v42
  %v175 = vpack.c.bf16 %v55, %v43
  %v176 = vpack.c.bf16 %v56, %v44
  %v177 = vpack.c.bf16 %v57, %v45
  %v178 = vpack.c.bf16 %v58, %v46
  %v179 = vpack.c.bf16 %v59, %v47
  %v180 = vpack.c.bf16 %v60, %v48
  %v181 = vpack.c.bf16 %v61, %v49
  %v182 = vpack.c.bf16 %v62, %v50
  %v183 = vpack.c.bf16 %v63, %v51
  %v184 = vpack.c.bf16 %v64, %v52
  %v185 = vpack.c.bf16 %v77, %v65
  %v186 = vpack.c.bf16 %v78, %v66
  %v187 = vpack.c.bf16 %v79, %v67
  %v188 = vpack.c.bf16 %v80, %v68
  %v189 = vpack.c.bf16 %v81, %v69
  %v190 = vpack.c.bf16 %v82, %v70
  %v191 = vpack.c.bf16 %v83, %v71
  %v192 = vpack.c.bf16 %v84, %v72
  %v193 = vpack.c.bf16 %v85, %v73
  %v194 = vpack.c.bf16 %v86, %v74
  %v195 = vpack.c.bf16 %v87, %v75
  %v196 = vpack.c.bf16 %v88, %v76
  %v197 = vpack.c.bf16 %v101, %v89
  %v198 = vpack.c.bf16 %v102, %v90
  %v199 = vpack.c.bf16 %v103, %v91
  %v200 = vpack.c.bf16 %v104, %v92
  %v201 = vpack.c.bf16 %v105, %v93
  %v202 = vpack.c.bf16 %v106, %v94
  %v203 = vpack.c.bf16 %v107, %v95
  %v204 = vpack.c.bf16 %v108, %v96
  %v205 = vpack.c.bf16 %v109, %v97
  %v206 = vpack.c.bf16 %v110, %v98
  %v207 = vpack.c.bf16 %v111, %v99
  %v208 = vpack.c.bf16 %v112, %v100
  %v209 = vpack.c.bf16 %v125, %v113
  %v210 = vpack.c.bf16 %v126, %v114
  %v211 = vpack.c.bf16 %v127, %v115
  %v212 = vpack.c.bf16 %v128, %v116
  %v213 = vpack.c.bf16 %v129, %v117
  %v214 = vpack.c.bf16 %v130, %v118
  %v215 = vpack.c.bf16 %v131, %v119
  %v216 = vpack.c.bf16 %v132, %v120
  %v217 = vpack.c.bf16 %v133, %v121
  %v218 = vpack.c.bf16 %v134, %v122
  %v219 = vpack.c.bf16 %v135, %v123
  %v220 = vpack.c.bf16 %v136, %v124
  %v221 = vpack.c.bf16 %v149, %v137
  %v222 = vpack.c.bf16 %v150, %v138
  %v223 = vpack.c.bf16 %v151, %v139
  %v224 = vpack.c.bf16 %v152, %v140
  %v225 = vpack.c.bf16 %v153, %v141
  %v226 = vpack.c.bf16 %v154, %v142
  %v227 = vpack.c.bf16 %v155, %v143
  %v228 = vpack.c.bf16 %v156, %v144
  %v229 = vpack.c.bf16 %v157, %v145
  %v230 = vpack.c.bf16 %v158, %v146
  %v231 = vpack.c.bf16 %v159, %v147
  %v232 = vpack.c.bf16 %v160, %v148
  %v233 = vld [vmem:[%s2] sm:$0xff]
  %v234 = vld [vmem:[%s2 + $0x8] sm:$0xff]
  %236 = vset.pattern.permute.xlu0 0
  %237 = vperm.xlu0 %236, %v233
  %v238 = vpop.permute.xlu0 %237
  %241 = vset.pattern.permute.xlu0 0
  %242 = vperm.xlu0 %241, %v234
  %v243 = vpop.permute.xlu0 %242
  %v247 = vunpack.c.l.b16 %v15
  %v248 = vunpack.c.l.b16 %v16
  %v249 = vpack.c.b16 %v248, %v247
  %vm250 = vcmask 785408
  %v252 = vsel %vm250, %v249, 0
  %254 = vmatpush.bf16.msra.mxu0 0
  %255 = vmatpush.bf16.msra.mxu0 0
  %256 = vmatpush.bf16.msra.mxu0 %v221
  %257 = vmatpush.bf16.msra.mxu0 %v209
  %258 = vmatpush.bf16.msra.mxu0 %v197
  %259 = vmatpush.bf16.msra.mxu0 %v185
  %260 = vmatpush.bf16.msra.mxu0 %v173
  %261 = vmatpush.bf16.msra.mxu0 %v161
  %262 = vmatmul.bf16.gmra.mxu0 %v252
  %v263 = vpop.f32.mrf.mxu0
  %v264 = vadd.f32 %v238, %v263
  %v265 = vpop.f32.mrf.mxu0
  %v266 = vadd.f32 %v243, %v265
  %267 = vdwg.mxu0
  %268 = vmatpush.bf16.msra.mxu0 0
  %269 = vmatpush.bf16.msra.mxu0 0
  %270 = vmatpush.bf16.msra.mxu0 %v222
  %271 = vmatpush.bf16.msra.mxu0 %v210
  %272 = vmatpush.bf16.msra.mxu0 %v198
  %273 = vmatpush.bf16.msra.mxu0 %v186
  %274 = vmatpush.bf16.msra.mxu0 %v174
  %275 = vmatpush.bf16.msra.mxu0 %v162
  %276 = vmatmul.bf16.gmra.mxu0 %v252
  %v277 = vpop.f32.mrf.mxu0
  %v278 = vadd.f32 %v238, %v277
  %v279 = vpop.f32.mrf.mxu0
  %v280 = vadd.f32 %v243, %v279
  %281 = vdwg.mxu0
  %282 = vmatpush.bf16.msra.mxu0 0
  %283 = vmatpush.bf16.msra.mxu0 0
  %284 = vmatpush.bf16.msra.mxu0 %v223
  %285 = vmatpush.bf16.msra.mxu0 %v211
  %286 = vmatpush.bf16.msra.mxu0 %v199
  %287 = vmatpush.bf16.msra.mxu0 %v187
  %288 = vmatpush.bf16.msra.mxu0 %v175
  %289 = vmatpush.bf16.msra.mxu0 %v163
  %290 = vmatmul.bf16.gmra.mxu0 %v252
  %v291 = vpop.f32.mrf.mxu0
  %v292 = vadd.f32 %v238, %v291
  %v293 = vpop.f32.mrf.mxu0
  %v294 = vadd.f32 %v243, %v293
  %295 = vdwg.mxu0
  %296 = vmatpush.bf16.msra.mxu0 0
  %297 = vmatpush.bf16.msra.mxu0 0
  %298 = vmatpush.bf16.msra.mxu0 %v224
  %299 = vmatpush.bf16.msra.mxu0 %v212
  %300 = vmatpush.bf16.msra.mxu0 %v200
  %301 = vmatpush.bf16.msra.mxu0 %v188
  %302 = vmatpush.bf16.msra.mxu0 %v176
  %303 = vmatpush.bf16.msra.mxu0 %v164
  %304 = vmatmul.bf16.gmra.mxu0 %v252
  %v305 = vpop.f32.mrf.mxu0
  %v306 = vadd.f32 %v238, %v305
  %v307 = vpop.f32.mrf.mxu0
  %v308 = vadd.f32 %v243, %v307
  %309 = vdwg.mxu0
  %310 = vmatpush.bf16.msra.mxu0 0
  %311 = vmatpush.bf16.msra.mxu0 0
  %312 = vmatpush.bf16.msra.mxu0 %v225
  %313 = vmatpush.bf16.msra.mxu0 %v213
  %314 = vmatpush.bf16.msra.mxu0 %v201
  %315 = vmatpush.bf16.msra.mxu0 %v189
  %316 = vmatpush.bf16.msra.mxu0 %v177
  %317 = vmatpush.bf16.msra.mxu0 %v165
  %318 = vmatmul.bf16.gmra.mxu0 %v252
  %v319 = vpop.f32.mrf.mxu0
  %v320 = vadd.f32 %v238, %v319
  %v321 = vpop.f32.mrf.mxu0
  %v322 = vadd.f32 %v243, %v321
  %323 = vdwg.mxu0
  %324 = vmatpush.bf16.msra.mxu0 0
  %325 = vmatpush.bf16.msra.mxu0 0
  %326 = vmatpush.bf16.msra.mxu0 %v226
  %327 = vmatpush.bf16.msra.mxu0 %v214
  %328 = vmatpush.bf16.msra.mxu0 %v202
  %329 = vmatpush.bf16.msra.mxu0 %v190
  %330 = vmatpush.bf16.msra.mxu0 %v178
  %331 = vmatpush.bf16.msra.mxu0 %v166
  %332 = vmatmul.bf16.gmra.mxu0 %v252
  %v333 = vpop.f32.mrf.mxu0
  %v334 = vadd.f32 %v238, %v333
  %v335 = vpop.f32.mrf.mxu0
  %v336 = vadd.f32 %v243, %v335
  %337 = vdwg.mxu0
  %338 = vmatpush.bf16.msra.mxu0 0
  %339 = vmatpush.bf16.msra.mxu0 0
  %340 = vmatpush.bf16.msra.mxu0 %v227
  %341 = vmatpush.bf16.msra.mxu0 %v215
  %342 = vmatpush.bf16.msra.mxu0 %v203
  %343 = vmatpush.bf16.msra.mxu0 %v191
  %344 = vmatpush.bf16.msra.mxu0 %v179
  %345 = vmatpush.bf16.msra.mxu0 %v167
  %346 = vmatmul.bf16.gmra.mxu0 %v252
  %v347 = vpop.f32.mrf.mxu0
  %v348 = vadd.f32 %v238, %v347
  %v349 = vpop.f32.mrf.mxu0
  %v350 = vadd.f32 %v243, %v349
  %351 = vdwg.mxu0
  %352 = vmatpush.bf16.msra.mxu0 0
  %353 = vmatpush.bf16.msra.mxu0 0
  %354 = vmatpush.bf16.msra.mxu0 %v228
  %355 = vmatpush.bf16.msra.mxu0 %v216
  %356 = vmatpush.bf16.msra.mxu0 %v204
  %357 = vmatpush.bf16.msra.mxu0 %v192
  %358 = vmatpush.bf16.msra.mxu0 %v180
  %359 = vmatpush.bf16.msra.mxu0 %v168
  %360 = vmatmul.bf16.gmra.mxu0 %v252
  %v361 = vpop.f32.mrf.mxu0
  %v362 = vadd.f32 %v238, %v361
  %v363 = vpop.f32.mrf.mxu0
  %v364 = vadd.f32 %v243, %v363
  %365 = vdwg.mxu0
  %366 = vmatpush.bf16.msra.mxu0 0
  %367 = vmatpush.bf16.msra.mxu0 0
  %368 = vmatpush.bf16.msra.mxu0 %v229
  %369 = vmatpush.bf16.msra.mxu0 %v217
  %370 = vmatpush.bf16.msra.mxu0 %v205
  %371 = vmatpush.bf16.msra.mxu0 %v193
  %372 = vmatpush.bf16.msra.mxu0 %v181
  %373 = vmatpush.bf16.msra.mxu0 %v169
  %374 = vmatmul.bf16.gmra.mxu0 %v252
  %v375 = vpop.f32.mrf.mxu0
  %v376 = vadd.f32 %v238, %v375
  %v377 = vpop.f32.mrf.mxu0
  %v378 = vadd.f32 %v243, %v377
  %379 = vdwg.mxu0
  %380 = vmatpush.bf16.msra.mxu0 0
  %381 = vmatpush.bf16.msra.mxu0 0
  %382 = vmatpush.bf16.msra.mxu0 %v230
  %383 = vmatpush.bf16.msra.mxu0 %v218
  %384 = vmatpush.bf16.msra.mxu0 %v206
  %385 = vmatpush.bf16.msra.mxu0 %v194
  %386 = vmatpush.bf16.msra.mxu0 %v182
  %387 = vmatpush.bf16.msra.mxu0 %v170
  %388 = vmatmul.bf16.gmra.mxu0 %v252
  %v389 = vpop.f32.mrf.mxu0
  %v390 = vadd.f32 %v238, %v389
  %v391 = vpop.f32.mrf.mxu0
  %v392 = vadd.f32 %v243, %v391
  %393 = vdwg.mxu0
  %394 = vmatpush.bf16.msra.mxu0 0
  %395 = vmatpush.bf16.msra.mxu0 0
  %396 = vmatpush.bf16.msra.mxu0 %v231
  %397 = vmatpush.bf16.msra.mxu0 %v219
  %398 = vmatpush.bf16.msra.mxu0 %v207
  %399 = vmatpush.bf16.msra.mxu0 %v195
  %400 = vmatpush.bf16.msra.mxu0 %v183
  %401 = vmatpush.bf16.msra.mxu0 %v171
  %402 = vmatmul.bf16.gmra.mxu0 %v252
  %v403 = vpop.f32.mrf.mxu0
  %v404 = vadd.f32 %v238, %v403
  %v405 = vpop.f32.mrf.mxu0
  %v406 = vadd.f32 %v243, %v405
  %407 = vdwg.mxu0
  %408 = vmatpush.bf16.msra.mxu0 0
  %409 = vmatpush.bf16.msra.mxu0 0
  %410 = vmatpush.bf16.msra.mxu0 %v232
  %411 = vmatpush.bf16.msra.mxu0 %v220
  %412 = vmatpush.bf16.msra.mxu0 %v208
  %413 = vmatpush.bf16.msra.mxu0 %v196
  %414 = vmatpush.bf16.msra.mxu0 %v184
  %415 = vmatpush.bf16.msra.mxu0 %v172
  %416 = vmatmul.bf16.gmra.mxu0 %v252
  %v417 = vpop.f32.mrf.mxu0
  %v418 = vadd.f32 %v238, %v417
  %v419 = vpop.f32.mrf.mxu0
  %v420 = vadd.f32 %v243, %v419
  %421 = vdwg.mxu0
  %422 = vst [vmem:[%s3] sm:$0xff] %v264
  %423 = vst [vmem:[%s3 + $0x8] sm:$0xff] %v278
  %424 = vst [vmem:[%s3 + $0x10] sm:$0xff] %v292
  %425 = vst [vmem:[%s3 + $0x18] sm:$0xff] %v306
  %426 = vst [vmem:[%s3 + $0x20] sm:$0xff] %v320
  %427 = vst [vmem:[%s3 + $0x28] sm:$0xff] %v334
  %428 = vst [vmem:[%s3 + $0x30] sm:$0xff] %v348
  %429 = vst [vmem:[%s3 + $0x38] sm:$0xff] %v362
  %430 = vst [vmem:[%s3 + $0x40] sm:$0xff] %v376
  %431 = vst [vmem:[%s3 + $0x48] sm:$0xff] %v390
  %432 = vst [vmem:[%s3 + $0x50] sm:$0xff] %v404
  %vm433 = vcmask 506880
  %434 = vst.msk [vmem:[%s3 + $0x58] sm:$0xff] %vm433, %v418
  %435 = vst [vmem:[%s3 + $0x60] sm:$0xff] %v266
  %436 = vst [vmem:[%s3 + $0x68] sm:$0xff] %v280
  %437 = vst [vmem:[%s3 + $0x70] sm:$0xff] %v294
  %438 = vst [vmem:[%s3 + $0x78] sm:$0xff] %v308
  %439 = vst [vmem:[%s3 + $0x80] sm:$0xff] %v322
  %440 = vst [vmem:[%s3 + $0x88] sm:$0xff] %v336
  %441 = vst [vmem:[%s3 + $0x90] sm:$0xff] %v350
  %442 = vst [vmem:[%s3 + $0x98] sm:$0xff] %v364
  %443 = vst [vmem:[%s3 + $0xa0] sm:$0xff] %v378
  %444 = vst [vmem:[%s3 + $0xa8] sm:$0xff] %v392
  %445 = vst [vmem:[%s3 + $0xb0] sm:$0xff] %v406
  %446 = vst.msk [vmem:[%s3 + $0xb8] sm:$0xff] %vm433, %v420
  // Predicated region
  $region14: #{text_vae_forward.16} parent=0 // pred_check
    _
  $region15: #{text_vae_forward.16} parent=0 // pred_check_branch
    %448 = sbr.rel (0) target = $region17
  $region16: #{text_vae_forward.16} parent=0 // pred_region
    _
  $region17: #{text_vae_forward.16} parent=0 // pred_fallthru
    _
  // Predicated region
  $region18: #{text_vae_forward.16} parent=0 // pred_check
    _
  $region19: #{text_vae_forward.16} parent=0 // pred_check_branch
    %450 = sbr.rel (0) target = $region21
  $region20: #{text_vae_forward.16} parent=0 // pred_region
    _
  $region21: #{text_vae_forward.16} parent=0 // pred_fallthru
    _

// kernel: text_vae_forward.17
$region0: #{text_vae_forward.17}
  #allocation0 [shape = 'u32[]', space=smem, size = 0x4, offset = 0x4, fixed_abs, tag = 'smem constant byte address 0x4 - core index']
  #allocation1 [shape = 'u32[72,128]{1,0:T(1,128)}', space=vmem, size = 0x9000, scoped, tag = 'internal scratch']
  %s0 = inlined_call_operand.vmem [shape: f32[30,768], index: 0, kind: input, shape index: {}]
  %s1 = inlined_call_operand.vmem [shape: bf16[768,256], index: 1, kind: input, shape index: {}]
  %s2 = inlined_call_operand.vmem [shape: f32[1,256], index: 2, kind: input, shape index: {}]
  %s3 = inlined_call_operand.hbm [shape: f32[30,256], index: 3, kind: output, shape index: {}]
  %s4 = sld [smem:[#allocation0]]
  $region22: #{text_vae_forward.17} parent=0
    _
  %s6 = ssub.s32 1, %s4
  %s7 = scalar_select 0, %s6, %s4
  $region1: #{text_vae_forward.17} parent=0
    #allocation2 [shape = 'u8[32768]{0}', space=vmem, size = 0x8000, scoped, tag = 'output window, operand 0, single buffered']
    #allocation3 [shape = 's32[1]{0}', space=sflag, size = 0x4, scoped, tag = 'scoped memory for text_vae_forward.17']
    %8 = vsyncpa [#allocation3], 0
    // Predicated region
    $region2: #{text_vae_forward.17} parent=1 // pred_check
      _
    $region3: #{text_vae_forward.17} parent=1 // pred_check_branch
      %10 = sbr.rel (0) target = $region5
    $region4: #{text_vae_forward.17} parent=1 // pred_region
      _
    $region5: #{text_vae_forward.17} parent=1 // pred_fallthru
      _
    // Predicated region
    $region6: #{text_vae_forward.17} parent=1 // pred_check
      _
    $region7: #{text_vae_forward.17} parent=1 // pred_check_branch
      %12 = sbr.rel (0) target = $region9
    $region8: #{text_vae_forward.17} parent=1 // pred_region
      _
    $region9: #{text_vae_forward.17} parent=1 // pred_fallthru
      _
    // Predicated region
    $region10: #{text_vae_forward.17} parent=1 // pred_check
      _
    $region11: #{text_vae_forward.17} parent=1 // pred_check_branch
      %14 = sbr.rel (0) target = $region13
    $region12: #{text_vae_forward.17} parent=1 // pred_region
      _
    $region13: #{text_vae_forward.17} parent=1 // pred_fallthru
      _
    %v15 = vld [vmem:[%s0] sm:$0xff]
    %v16 = vld [vmem:[%s0 + $0x8] sm:$0xff]
    %v17 = vld [vmem:[%s0 + $0x10] sm:$0xff]
    %v18 = vld [vmem:[%s0 + $0x18] sm:$0xff]
    %v19 = vld [vmem:[%s0 + $0x20] sm:$0xff]
    %v20 = vld [vmem:[%s0 + $0x28] sm:$0xff]
    %v21 = vld [vmem:[%s0 + $0x30] sm:$0xff]
    %v22 = vld [vmem:[%s0 + $0x38] sm:$0xff]
    %v23 = vld [vmem:[%s0 + $0x40] sm:$0xff]
    %v24 = vld [vmem:[%s0 + $0x48] sm:$0xff]
    %v25 = vld [vmem:[%s0 + $0x50] sm:$0xff]
    %v26 = vld [vmem:[%s0 + $0x58] sm:$0xff]
    %v27 = vld [vmem:[%s0 + $0x60] sm:$0xff]
    %v28 = vld [vmem:[%s0 + $0x68] sm:$0xff]
    %v29 = vld [vmem:[%s0 + $0x70] sm:$0xff]
    %v30 = vld [vmem:[%s0 + $0x78] sm:$0xff]
    %v31 = vld [vmem:[%s0 + $0x80] sm:$0xff]
    %v32 = vld [vmem:[%s0 + $0x88] sm:$0xff]
    %v33 = vld [vmem:[%s0 + $0x90] sm:$0x3f]
    %v34 = vld [vmem:[%s0 + $0x98] sm:$0x3f]
    %v35 = vld [vmem:[%s0 + $0xa0] sm:$0x3f]
    %v36 = vld [vmem:[%s0 + $0xa8] sm:$0x3f]
    %v37 = vld [vmem:[%s0 + $0xb0] sm:$0x3f]
    %v38 = vld [vmem:[%s0 + $0xb8] sm:$0x3f]
    %v39 = vpack.c.bf16 %v21, %v15
    %v40 = vpack.c.bf16 %v22, %v16
    %v41 = vpack.c.bf16 %v23, %v17
    %v42 = vpack.c.bf16 %v24, %v18
    %v43 = vpack.c.bf16 %v25, %v19
    %v44 = vpack.c.bf16 %v26, %v20
    %v45 = vpack.c.bf16 %v33, %v27
    %v46 = vpack.c.bf16 %v34, %v28
    %v47 = vpack.c.bf16 %v35, %v29
    %v48 = vpack.c.bf16 %v36, %v30
    %v49 = vpack.c.bf16 %v37, %v31
    %v50 = vpack.c.bf16 %v38, %v32
    %v51 = vld [vmem:[%s1] sm:$0xff]
    %v52 = vld [vmem:[%s1 + $0x8] sm:$0xff]
    %v53 = vld [vmem:[%s1 + $0x10] sm:$0xff]
    %v54 = vld [vmem:[%s1 + $0x18] sm:$0xff]
    %v55 = vld [vmem:[%s1 + $0x20] sm:$0xff]
    %v56 = vld [vmem:[%s1 + $0x28] sm:$0xff]
    %v57 = vld [vmem:[%s1 + $0x30] sm:$0xff]
    %v58 = vld [vmem:[%s1 + $0x38] sm:$0xff]
    %v59 = vld [vmem:[%s1 + $0x40] sm:$0xff]
    %v60 = vld [vmem:[%s1 + $0x48] sm:$0xff]
    %v61 = vld [vmem:[%s1 + $0x50] sm:$0xff]
    %v62 = vld [vmem:[%s1 + $0x58] sm:$0xff]
    %v63 = vld [vmem:[%s1 + $0x60] sm:$0xff]
    %v64 = vld [vmem:[%s1 + $0x68] sm:$0xff]
    %v65 = vld [vmem:[%s1 + $0x70] sm:$0xff]
    %v66 = vld [vmem:[%s1 + $0x78] sm:$0xff]
    %v67 = vld [vmem:[%s1 + $0x80] sm:$0xff]
    %v68 = vld [vmem:[%s1 + $0x88] sm:$0xff]
    %v69 = vld [vmem:[%s1 + $0x90] sm:$0xff]
    %v70 = vld [vmem:[%s1 + $0x98] sm:$0xff]
    %v71 = vld [vmem:[%s1 + $0xa0] sm:$0xff]
    %v72 = vld [vmem:[%s1 + $0xa8] sm:$0xff]
    %v73 = vld [vmem:[%s1 + $0xb0] sm:$0xff]
    %v74 = vld [vmem:[%s1 + $0xb8] sm:$0xff]
    %v75 = vld [vmem:[%s1 + $0xc0] sm:$0xff]
    %v76 = vld [vmem:[%s1 + $0xc8] sm:$0xff]
    %v77 = vld [vmem:[%s1 + $0xd0] sm:$0xff]
    %v78 = vld [vmem:[%s1 + $0xd8] sm:$0xff]
    %v79 = vld [vmem:[%s1 + $0xe0] sm:$0xff]
    %v80 = vld [vmem:[%s1 + $0xe8] sm:$0xff]
    %v81 = vld [vmem:[%s1 + $0xf0] sm:$0xff]
    %v82 = vld [vmem:[%s1 + $0xf8] sm:$0xff]
    %v83 = vld [vmem:[%s1 + $0x100] sm:$0xff]
    %v84 = vld [vmem:[%s1 + $0x108] sm:$0xff]
    %v85 = vld [vmem:[%s1 + $0x110] sm:$0xff]
    %v86 = vld [vmem:[%s1 + $0x118] sm:$0xff]
    %v87 = vld [vmem:[%s1 + $0x120] sm:$0xff]
    %v88 = vld [vmem:[%s1 + $0x128] sm:$0xff]
    %v89 = vld [vmem:[%s1 + $0x130] sm:$0xff]
    %v90 = vld [vmem:[%s1 + $0x138] sm:$0xff]
    %v91 = vld [vmem:[%s1 + $0x140] sm:$0xff]
    %v92 = vld [vmem:[%s1 + $0x148] sm:$0xff]
    %v93 = vld [vmem:[%s1 + $0x150] sm:$0xff]
    %v94 = vld [vmem:[%s1 + $0x158] sm:$0xff]
    %v95 = vld [vmem:[%s1 + $0x160] sm:$0xff]
    %v96 = vld [vmem:[%s1 + $0x168] sm:$0xff]
    %v97 = vld [vmem:[%s1 + $0x170] sm:$0xff]
    %v98 = vld [vmem:[%s1 + $0x178] sm:$0xff]
    %v99 = vld [vmem:[%s1 + $0x180] sm:$0xff]
    %v100 = vld [vmem:[%s1 + $0x188] sm:$0xff]
    %v101 = vld [vmem:[%s1 + $0x190] sm:$0xff]
    %v102 = vld [vmem:[%s1 + $0x198] sm:$0xff]
    %v103 = vld [vmem:[%s1 + $0x1a0] sm:$0xff]
    %v104 = vld [vmem:[%s1 + $0x1a8] sm:$0xff]
    %v105 = vld [vmem:[%s1 + $0x1b0] sm:$0xff]
    %v106 = vld [vmem:[%s1 + $0x1b8] sm:$0xff]
    %v107 = vld [vmem:[%s1 + $0x1c0] sm:$0xff]
    %v108 = vld [vmem:[%s1 + $0x1c8] sm:$0xff]
    %v109 = vld [vmem:[%s1 + $0x1d0] sm:$0xff]
    %v110 = vld [vmem:[%s1 + $0x1d8] sm:$0xff]
    %v111 = vld [vmem:[%s1 + $0x1e0] sm:$0xff]
    %v112 = vld [vmem:[%s1 + $0x1e8] sm:$0xff]
    %v113 = vld [vmem:[%s1 + $0x1f0] sm:$0xff]
    %v114 = vld [vmem:[%s1 + $0x1f8] sm:$0xff]
    %v115 = vld [vmem:[%s1 + $0x200] sm:$0xff]
    %v116 = vld [vmem:[%s1 + $0x208] sm:$0xff]
    %v117 = vld [vmem:[%s1 + $0x210] sm:$0xff]
    %v118 = vld [vmem:[%s1 + $0x218] sm:$0xff]
    %v119 = vld [vmem:[%s1 + $0x220] sm:$0xff]
    %v120 = vld [vmem:[%s1 + $0x228] sm:$0xff]
    %v121 = vld [vmem:[%s1 + $0x230] sm:$0xff]
    %v122 = vld [vmem:[%s1 + $0x238] sm:$0xff]
    %v123 = vld [vmem:[%s1 + $0x240] sm:$0xff]
    %v124 = vld [vmem:[%s1 + $0x248] sm:$0xff]
    %v125 = vld [vmem:[%s1 + $0x250] sm:$0xff]
    %v126 = vld [vmem:[%s1 + $0x258] sm:$0xff]
    %v127 = vld [vmem:[%s1 + $0x260] sm:$0xff]
    %v128 = vld [vmem:[%s1 + $0x268] sm:$0xff]
    %v129 = vld [vmem:[%s1 + $0x270] sm:$0xff]
    %v130 = vld [vmem:[%s1 + $0x278] sm:$0xff]
    %v131 = vld [vmem:[%s1 + $0x280] sm:$0xff]
    %v132 = vld [vmem:[%s1 + $0x288] sm:$0xff]
    %v133 = vld [vmem:[%s1 + $0x290] sm:$0xff]
    %v134 = vld [vmem:[%s1 + $0x298] sm:$0xff]
    %v135 = vld [vmem:[%s1 + $0x2a0] sm:$0xff]
    %v136 = vld [vmem:[%s1 + $0x2a8] sm:$0xff]
    %v137 = vld [vmem:[%s1 + $0x2b0] sm:$0xff]
    %v138 = vld [vmem:[%s1 + $0x2b8] sm:$0xff]
    %v139 = vld [vmem:[%s1 + $0x2c0] sm:$0xff]
    %v140 = vld [vmem:[%s1 + $0x2c8] sm:$0xff]
    %v141 = vld [vmem:[%s1 + $0x2d0] sm:$0xff]
    %v142 = vld [vmem:[%s1 + $0x2d8] sm:$0xff]
    %v143 = vld [vmem:[%s1 + $0x2e0] sm:$0xff]
    %v144 = vld [vmem:[%s1 + $0x2e8] sm:$0xff]
    %v145 = vld [vmem:[%s1 + $0x2f0] sm:$0xff]
    %v146 = vld [vmem:[%s1 + $0x2f8] sm:$0xff]
    %v147 = vld [vmem:[%s2] sm:$0x3]
    %v149 = vperm.slane %v147, 0
    %v150 = vperm.slane %v147, 1
    %v249 = vunpack.c.l.b16 %v51
    %v250 = vunpack.c.h.b16 %v51
    %v251 = vunpack.c.l.b16 %v52
    %v252 = vunpack.c.h.b16 %v52
    %v253 = vunpack.c.l.b16 %v53
    %v254 = vunpack.c.h.b16 %v53
    %v255 = vunpack.c.l.b16 %v54
    %v256 = vunpack.c.h.b16 %v54
    %v257 = vunpack.c.l.b16 %v55
    %v258 = vunpack.c.h.b16 %v55
    %v259 = vunpack.c.l.b16 %v56
    %v260 = vunpack.c.h.b16 %v56
    %v261 = vunpack.c.l.b16 %v57
    %v262 = vunpack.c.h.b16 %v57
    %v263 = vunpack.c.l.b16 %v58
    %v264 = vunpack.c.h.b16 %v58
    %v265 = vunpack.c.l.b16 %v59
    %v266 = vunpack.c.h.b16 %v59
    %v267 = vunpack.c.l.b16 %v60
    %v268 = vunpack.c.h.b16 %v60
    %v269 = vunpack.c.l.b16 %v61
    %v270 = vunpack.c.h.b16 %v61
    %v271 = vunpack.c.l.b16 %v62
    %v272 = vunpack.c.h.b16 %v62
    %v273 = vunpack.c.l.b16 %v63
    %v274 = vunpack.c.h.b16 %v63
    %v275 = vunpack.c.l.b16 %v64
    %v276 = vunpack.c.h.b16 %v64
    %v277 = vunpack.c.l.b16 %v65
    %v278 = vunpack.c.h.b16 %v65
    %v279 = vunpack.c.l.b16 %v66
    %v280 = vunpack.c.h.b16 %v66
    %v281 = vunpack.c.l.b16 %v67
    %v282 = vunpack.c.h.b16 %v67
    %v283 = vunpack.c.l.b16 %v68
    %v284 = vunpack.c.h.b16 %v68
    %v285 = vunpack.c.l.b16 %v69
    %v286 = vunpack.c.h.b16 %v69
    %v287 = vunpack.c.l.b16 %v70
    %v288 = vunpack.c.h.b16 %v70
    %v289 = vunpack.c.l.b16 %v71
    %v290 = vunpack.c.h.b16 %v71
    %v291 = vunpack.c.l.b16 %v72
    %v292 = vunpack.c.h.b16 %v72
    %v293 = vunpack.c.l.b16 %v73
    %v294 = vunpack.c.h.b16 %v73
    %v295 = vunpack.c.l.b16 %v74
    %v296 = vunpack.c.h.b16 %v74
    %v297 = vunpack.c.l.b16 %v75
    %v298 = vunpack.c.h.b16 %v75
    %v299 = vunpack.c.l.b16 %v76
    %v300 = vunpack.c.h.b16 %v76
    %v301 = vunpack.c.l.b16 %v77
    %v302 = vunpack.c.h.b16 %v77
    %v303 = vunpack.c.l.b16 %v78
    %v304 = vunpack.c.h.b16 %v78
    %v305 = vunpack.c.l.b16 %v79
    %v306 = vunpack.c.h.b16 %v79
    %v307 = vunpack.c.l.b16 %v80
    %v308 = vunpack.c.h.b16 %v80
    %v309 = vunpack.c.l.b16 %v81
    %v310 = vunpack.c.h.b16 %v81
    %v311 = vunpack.c.l.b16 %v82
    %v312 = vunpack.c.h.b16 %v82
    %v313 = vunpack.c.l.b16 %v83
    %v314 = vunpack.c.h.b16 %v83
    %v315 = vunpack.c.l.b16 %v84
    %v316 = vunpack.c.h.b16 %v84
    %v317 = vunpack.c.l.b16 %v85
    %v318 = vunpack.c.h.b16 %v85
    %v319 = vunpack.c.l.b16 %v86
    %v320 = vunpack.c.h.b16 %v86
    %v321 = vunpack.c.l.b16 %v87
    %v322 = vunpack.c.h.b16 %v87
    %v323 = vunpack.c.l.b16 %v88
    %v324 = vunpack.c.h.b16 %v88
    %v325 = vunpack.c.l.b16 %v89
    %v326 = vunpack.c.h.b16 %v89
    %v327 = vunpack.c.l.b16 %v90
    %v328 = vunpack.c.h.b16 %v90
    %v329 = vunpack.c.l.b16 %v91
    %v330 = vunpack.c.h.b16 %v91
    %v331 = vunpack.c.l.b16 %v92
    %v332 = vunpack.c.h.b16 %v92
    %v333 = vunpack.c.l.b16 %v93
    %v334 = vunpack.c.h.b16 %v93
    %v335 = vunpack.c.l.b16 %v94
    %v336 = vunpack.c.h.b16 %v94
    %v337 = vunpack.c.l.b16 %v95
    %v338 = vunpack.c.h.b16 %v95
    %v339 = vunpack.c.l.b16 %v96
    %v340 = vunpack.c.h.b16 %v96
    %v341 = vunpack.c.l.b16 %v97
    %v342 = vunpack.c.h.b16 %v97
    %v343 = vunpack.c.l.b16 %v98
    %v344 = vunpack.c.h.b16 %v98
    %v345 = vunpack.c.l.b16 %v99
    %v346 = vunpack.c.h.b16 %v99
    %v347 = vunpack.c.l.b16 %v100
    %v348 = vunpack.c.h.b16 %v100
    %v349 = vunpack.c.l.b16 %v101
    %v350 = vunpack.c.h.b16 %v101
    %v351 = vunpack.c.l.b16 %v102
    %v352 = vunpack.c.h.b16 %v102
    %v353 = vunpack.c.l.b16 %v103
    %v354 = vunpack.c.h.b16 %v103
    %v355 = vunpack.c.l.b16 %v104
    %v356 = vunpack.c.h.b16 %v104
    %v357 = vunpack.c.l.b16 %v105
    %v358 = vunpack.c.h.b16 %v105
    %v359 = vunpack.c.l.b16 %v106
    %v360 = vunpack.c.h.b16 %v106
    %v361 = vunpack.c.l.b16 %v107
    %v362 = vunpack.c.h.b16 %v107
    %v363 = vunpack.c.l.b16 %v108
    %v364 = vunpack.c.h.b16 %v108
    %v365 = vunpack.c.l.b16 %v109
    %v366 = vunpack.c.h.b16 %v109
    %v367 = vunpack.c.l.b16 %v110
    %v368 = vunpack.c.h.b16 %v110
    %v369 = vunpack.c.l.b16 %v111
    %v370 = vunpack.c.h.b16 %v111
    %v371 = vunpack.c.l.b16 %v112
    %v372 = vunpack.c.h.b16 %v112
    %v373 = vunpack.c.l.b16 %v113
    %v374 = vunpack.c.h.b16 %v113
    %v375 = vunpack.c.l.b16 %v114
    %v376 = vunpack.c.h.b16 %v114
    %v377 = vunpack.c.l.b16 %v115
    %v378 = vunpack.c.h.b16 %v115
    %v379 = vunpack.c.l.b16 %v116
    %v380 = vunpack.c.h.b16 %v116
    %v381 = vunpack.c.l.b16 %v117
    %v382 = vunpack.c.h.b16 %v117
    %v383 = vunpack.c.l.b16 %v118
    %v384 = vunpack.c.h.b16 %v118
    %v385 = vunpack.c.l.b16 %v119
    %v386 = vunpack.c.h.b16 %v119
    %v387 = vunpack.c.l.b16 %v120
    %v388 = vunpack.c.h.b16 %v120
    %v389 = vunpack.c.l.b16 %v121
    %v390 = vunpack.c.h.b16 %v121
    %v391 = vunpack.c.l.b16 %v122
    %v392 = vunpack.c.h.b16 %v122
    %v393 = vunpack.c.l.b16 %v123
    %v394 = vunpack.c.h.b16 %v123
    %v395 = vunpack.c.l.b16 %v124
    %v396 = vunpack.c.h.b16 %v124
    %v397 = vunpack.c.l.b16 %v125
    %v398 = vunpack.c.h.b16 %v125
    %v399 = vunpack.c.l.b16 %v126
    %v400 = vunpack.c.h.b16 %v126
    %v401 = vunpack.c.l.b16 %v127
    %v402 = vunpack.c.h.b16 %v127
    %v403 = vunpack.c.l.b16 %v128
    %v404 = vunpack.c.h.b16 %v128
    %v405 = vunpack.c.l.b16 %v129
    %v406 = vunpack.c.h.b16 %v129
    %v407 = vunpack.c.l.b16 %v130
    %v408 = vunpack.c.h.b16 %v130
    %v409 = vunpack.c.l.b16 %v131
    %v410 = vunpack.c.h.b16 %v131
    %v411 = vunpack.c.l.b16 %v132
    %v412 = vunpack.c.h.b16 %v132
    %v413 = vunpack.c.l.b16 %v133
    %v414 = vunpack.c.h.b16 %v133
    %v415 = vunpack.c.l.b16 %v134
    %v416 = vunpack.c.h.b16 %v134
    %v417 = vunpack.c.l.b16 %v135
    %v418 = vunpack.c.h.b16 %v135
    %v419 = vunpack.c.l.b16 %v136
    %v420 = vunpack.c.h.b16 %v136
    %v421 = vunpack.c.l.b16 %v137
    %v422 = vunpack.c.h.b16 %v137
    %v423 = vunpack.c.l.b16 %v138
    %v424 = vunpack.c.h.b16 %v138
    %v425 = vunpack.c.l.b16 %v139
    %v426 = vunpack.c.h.b16 %v139
    %v427 = vunpack.c.l.b16 %v140
    %v428 = vunpack.c.h.b16 %v140
    %v429 = vunpack.c.l.b16 %v141
    %v430 = vunpack.c.h.b16 %v141
    %v431 = vunpack.c.l.b16 %v142
    %v432 = vunpack.c.h.b16 %v142
    %v433 = vunpack.c.l.b16 %v143
    %v434 = vunpack.c.h.b16 %v143
    %v435 = vunpack.c.l.b16 %v144
    %v436 = vunpack.c.h.b16 %v144
    %v437 = vunpack.c.l.b16 %v145
    %v438 = vunpack.c.h.b16 %v145
    %v439 = vunpack.c.l.b16 %v146
    %v440 = vunpack.c.h.b16 %v146
    %v441 = vpack.c.b16 %v251, %v249
    %v442 = vpack.c.b16 %v252, %v250
    %v443 = vpack.c.b16 %v255, %v253
    %v444 = vpack.c.b16 %v256, %v254
    %v445 = vpack.c.b16 %v259, %v257
    %v446 = vpack.c.b16 %v260, %v258
    %v447 = vpack.c.b16 %v263, %v261
    %v448 = vpack.c.b16 %v264, %v262
    %v449 = vpack.c.b16 %v267, %v265
    %v450 = vpack.c.b16 %v268, %v266
    %v451 = vpack.c.b16 %v271, %v269
    %v452 = vpack.c.b16 %v272, %v270
    %v453 = vpack.c.b16 %v275, %v273
    %v454 = vpack.c.b16 %v276, %v274
    %v455 = vpack.c.b16 %v279, %v277
    %v456 = vpack.c.b16 %v280, %v278
    %v457 = vpack.c.b16 %v283, %v281
    %v458 = vpack.c.b16 %v284, %v282
    %v459 = vpack.c.b16 %v287, %v285
    %v460 = vpack.c.b16 %v288, %v286
    %v461 = vpack.c.b16 %v291, %v289
    %v462 = vpack.c.b16 %v292, %v290
    %v463 = vpack.c.b16 %v295, %v293
    %v464 = vpack.c.b16 %v296, %v294
    %v465 = vpack.c.b16 %v299, %v297
    %v466 = vpack.c.b16 %v300, %v298
    %v467 = vpack.c.b16 %v303, %v301
    %v468 = vpack.c.b16 %v304, %v302
    %v469 = vpack.c.b16 %v307, %v305
    %v470 = vpack.c.b16 %v308, %v306
    %v471 = vpack.c.b16 %v311, %v309
    %v472 = vpack.c.b16 %v312, %v310
    %v473 = vpack.c.b16 %v315, %v313
    %v474 = vpack.c.b16 %v316, %v314
    %v475 = vpack.c.b16 %v319, %v317
    %v476 = vpack.c.b16 %v320, %v318
    %v477 = vpack.c.b16 %v323, %v321
    %v478 = vpack.c.b16 %v324, %v322
    %v479 = vpack.c.b16 %v327, %v325
    %v480 = vpack.c.b16 %v328, %v326
    %v481 = vpack.c.b16 %v331, %v329
    %v482 = vpack.c.b16 %v332, %v330
    %v483 = vpack.c.b16 %v335, %v333
    %v484 = vpack.c.b16 %v336, %v334
    %v485 = vpack.c.b16 %v339, %v337
    %v486 = vpack.c.b16 %v340, %v338
    %v487 = vpack.c.b16 %v343, %v341
    %v488 = vpack.c.b16 %v344, %v342
    %v489 = vpack.c.b16 %v347, %v345
    %v490 = vpack.c.b16 %v348, %v346
    %v491 = vpack.c.b16 %v351, %v349
    %v492 = vpack.c.b16 %v352, %v350
    %v493 = vpack.c.b16 %v355, %v353
    %v494 = vpack.c.b16 %v356, %v354
    %v495 = vpack.c.b16 %v359, %v357
    %v496 = vpack.c.b16 %v360, %v358
    %v497 = vpack.c.b16 %v363, %v361
    %v498 = vpack.c.b16 %v364, %v362
    %v499 = vpack.c.b16 %v367, %v365
    %v500 = vpack.c.b16 %v368, %v366
    %v501 = vpack.c.b16 %v371, %v369
    %v502 = vpack.c.b16 %v372, %v370
    %v503 = vpack.c.b16 %v375, %v373
    %v504 = vpack.c.b16 %v376, %v374
    %v505 = vpack.c.b16 %v379, %v377
    %v506 = vpack.c.b16 %v380, %v378
    %v507 = vpack.c.b16 %v383, %v381
    %v508 = vpack.c.b16 %v384, %v382
    %v509 = vpack.c.b16 %v387, %v385
    %v510 = vpack.c.b16 %v388, %v386
    %v511 = vpack.c.b16 %v391, %v389
    %v512 = vpack.c.b16 %v392, %v390
    %v513 = vpack.c.b16 %v395, %v393
    %v514 = vpack.c.b16 %v396, %v394
    %v515 = vpack.c.b16 %v399, %v397
    %v516 = vpack.c.b16 %v400, %v398
    %v517 = vpack.c.b16 %v403, %v401
    %v518 = vpack.c.b16 %v404, %v402
    %v519 = vpack.c.b16 %v407, %v405
    %v520 = vpack.c.b16 %v408, %v406
    %v521 = vpack.c.b16 %v411, %v409
    %v522 = vpack.c.b16 %v412, %v410
    %v523 = vpack.c.b16 %v415, %v413
    %v524 = vpack.c.b16 %v416, %v414
    %v525 = vpack.c.b16 %v419, %v417
    %v526 = vpack.c.b16 %v420, %v418
    %v527 = vpack.c.b16 %v423, %v421
    %v528 = vpack.c.b16 %v424, %v422
    %v529 = vpack.c.b16 %v427, %v425
    %v530 = vpack.c.b16 %v428, %v426
    %v531 = vpack.c.b16 %v431, %v429
    %v532 = vpack.c.b16 %v432, %v430
    %v533 = vpack.c.b16 %v435, %v433
    %v534 = vpack.c.b16 %v436, %v434
    %v535 = vpack.c.b16 %v439, %v437
    %v536 = vpack.c.b16 %v440, %v438
    %633 = vmatpush.bf16.msra.mxu0 %v455
    %634 = vmatpush.bf16.msra.mxu0 %v453
    %635 = vmatpush.bf16.msra.mxu0 %v451
    %636 = vmatpush.bf16.msra.mxu0 %v449
    %637 = vmatpush.bf16.msra.mxu0 %v447
    %638 = vmatpush.bf16.msra.mxu0 %v445
    %639 = vmatpush.bf16.msra.mxu0 %v443
    %640 = vmatpush.bf16.msra.mxu0 %v441
    %641 = vmatmul.bf16.gmra.mxu0 %v39
    %v642 = vpop.f32.mrf.mxu0
    %v643 = vadd.f32 %v149, %v642
    %v644 = vpop.f32.mrf.mxu0
    %v645 = vadd.f32 %v149, %v644
    %646 = vmatmul.bf16.gmra.mxu0 %v45
    %v647 = vpop.f32.mrf.mxu0
    %v648 = vadd.f32 %v149, %v647
    %v649 = vpop.f32.mrf.mxu0
    %v650 = vadd.f32 %v149, %v649
    %651 = vdwg.mxu0
    %652 = vmatpush.bf16.msra.mxu0 %v471
    %653 = vmatpush.bf16.msra.mxu0 %v469
    %654 = vmatpush.bf16.msra.mxu0 %v467
    %655 = vmatpush.bf16.msra.mxu0 %v465
    %656 = vmatpush.bf16.msra.mxu0 %v463
    %657 = vmatpush.bf16.msra.mxu0 %v461
    %658 = vmatpush.bf16.msra.mxu0 %v459
    %659 = vmatpush.bf16.msra.mxu0 %v457
    %660 = vmatmul.bf16.gmra.mxu0 %v40
    %v661 = vpop.f32.mrf.mxu0
    %v662 = vadd.f32 %v643, %v661
    %v663 = vpop.f32.mrf.mxu0
    %v664 = vadd.f32 %v645, %v663
    %665 = vmatmul.bf16.gmra.mxu0 %v46
    %v666 = vpop.f32.mrf.mxu0
    %v667 = vadd.f32 %v648, %v666
    %v668 = vpop.f32.mrf.mxu0
    %v669 = vadd.f32 %v650, %v668
    %670 = vdwg.mxu0
    %671 = vmatpush.bf16.msra.mxu0 %v487
    %672 = vmatpush.bf16.msra.mxu0 %v485
    %673 = vmatpush.bf16.msra.mxu0 %v483
    %674 = vmatpush.bf16.msra.mxu0 %v481
    %675 = vmatpush.bf16.msra.mxu0 %v479
    %676 = vmatpush.bf16.msra.mxu0 %v477
    %677 = vmatpush.bf16.msra.mxu0 %v475
    %678 = vmatpush.bf16.msra.mxu0 %v473
    %679 = vmatmul.bf16.gmra.mxu0 %v41
    %v680 = vpop.f32.mrf.mxu0
    %v681 = vadd.f32 %v662, %v680
    %v682 = vpop.f32.mrf.mxu0
    %v683 = vadd.f32 %v664, %v682
    %684 = vmatmul.bf16.gmra.mxu0 %v47
    %v685 = vpop.f32.mrf.mxu0
    %v686 = vadd.f32 %v667, %v685
    %v687 = vpop.f32.mrf.mxu0
    %v688 = vadd.f32 %v669, %v687
    %689 = vdwg.mxu0
    %690 = vmatpush.bf16.msra.mxu0 %v503
    %691 = vmatpush.bf16.msra.mxu0 %v501
    %692 = vmatpush.bf16.msra.mxu0 %v499
    %693 = vmatpush.bf16.msra.mxu0 %v497
    %694 = vmatpush.bf16.msra.mxu0 %v495
    %695 = vmatpush.bf16.msra.mxu0 %v493
    %696 = vmatpush.bf16.msra.mxu0 %v491
    %697 = vmatpush.bf16.msra.mxu0 %v489
    %698 = vmatmul.bf16.gmra.mxu0 %v42
    %v699 = vpop.f32.mrf.mxu0
    %v700 = vadd.f32 %v681, %v699
    %v701 = vpop.f32.mrf.mxu0
    %v702 = vadd.f32 %v683, %v701
    %703 = vmatmul.bf16.gmra.mxu0 %v48
    %v704 = vpop.f32.mrf.mxu0
    %v705 = vadd.f32 %v686, %v704
    %v706 = vpop.f32.mrf.mxu0
    %v707 = vadd.f32 %v688, %v706
    %708 = vdwg.mxu0
    %709 = vmatpush.bf16.msra.mxu0 %v519
    %710 = vmatpush.bf16.msra.mxu0 %v517
    %711 = vmatpush.bf16.msra.mxu0 %v515
    %712 = vmatpush.bf16.msra.mxu0 %v513
    %713 = vmatpush.bf16.msra.mxu0 %v511
    %714 = vmatpush.bf16.msra.mxu0 %v509
    %715 = vmatpush.bf16.msra.mxu0 %v507
    %716 = vmatpush.bf16.msra.mxu0 %v505
    %717 = vmatmul.bf16.gmra.mxu0 %v43
    %v718 = vpop.f32.mrf.mxu0
    %v719 = vadd.f32 %v700, %v718
    %v720 = vpop.f32.mrf.mxu0
    %v721 = vadd.f32 %v702, %v720
    %722 = vmatmul.bf16.gmra.mxu0 %v49
    %v723 = vpop.f32.mrf.mxu0
    %v724 = vadd.f32 %v705, %v723
    %v725 = vpop.f32.mrf.mxu0
    %v726 = vadd.f32 %v707, %v725
    %727 = vdwg.mxu0
    %728 = vmatpush.bf16.msra.mxu0 %v535
    %729 = vmatpush.bf16.msra.mxu0 %v533
    %730 = vmatpush.bf16.msra.mxu0 %v531
    %731 = vmatpush.bf16.msra.mxu0 %v529
    %732 = vmatpush.bf16.msra.mxu0 %v527
    %733 = vmatpush.bf16.msra.mxu0 %v525
    %734 = vmatpush.bf16.msra.mxu0 %v523
    %735 = vmatpush.bf16.msra.mxu0 %v521
    %736 = vmatmul.bf16.gmra.mxu0 %v44
    %v737 = vpop.f32.mrf.mxu0
    %v738 = vadd.f32 %v719, %v737
    %v739 = vpop.f32.mrf.mxu0
    %v740 = vadd.f32 %v721, %v739
    %741 = vmatmul.bf16.gmra.mxu0 %v50
    %v742 = vpop.f32.mrf.mxu0
    %v743 = vadd.f32 %v724, %v742
    %v744 = vpop.f32.mrf.mxu0
    %v745 = vadd.f32 %v726, %v744
    %746 = vdwg.mxu0
    %747 = vmatpush.bf16.msra.mxu0 %v456
    %748 = vmatpush.bf16.msra.mxu0 %v454
    %749 = vmatpush.bf16.msra.mxu0 %v452
    %750 = vmatpush.bf16.msra.mxu0 %v450
    %751 = vmatpush.bf16.msra.mxu0 %v448
    %752 = vmatpush.bf16.msra.mxu0 %v446
    %753 = vmatpush.bf16.msra.mxu0 %v444
    %754 = vmatpush.bf16.msra.mxu0 %v442
    %755 = vmatmul.bf16.gmra.mxu0 %v39
    %v756 = vpop.f32.mrf.mxu0
    %v757 = vadd.f32 %v150, %v756
    %v758 = vpop.f32.mrf.mxu0
    %v759 = vadd.f32 %v150, %v758
    %760 = vmatmul.bf16.gmra.mxu0 %v45
    %v761 = vpop.f32.mrf.mxu0
    %v762 = vadd.f32 %v150, %v761
    %v763 = vpop.f32.mrf.mxu0
    %v764 = vadd.f32 %v150, %v763
    %765 = vdwg.mxu0
    %766 = vmatpush.bf16.msra.mxu0 %v472
    %767 = vmatpush.bf16.msra.mxu0 %v470
    %768 = vmatpush.bf16.msra.mxu0 %v468
    %769 = vmatpush.bf16.msra.mxu0 %v466
    %770 = vmatpush.bf16.msra.mxu0 %v464
    %771 = vmatpush.bf16.msra.mxu0 %v462
    %772 = vmatpush.bf16.msra.mxu0 %v460
    %773 = vmatpush.bf16.msra.mxu0 %v458
    %774 = vmatmul.bf16.gmra.mxu0 %v40
    %v775 = vpop.f32.mrf.mxu0
    %v776 = vadd.f32 %v757, %v775
    %v777 = vpop.f32.mrf.mxu0
    %v778 = vadd.f32 %v759, %v777
    %779 = vmatmul.bf16.gmra.mxu0 %v46
    %v780 = vpop.f32.mrf.mxu0
    %v781 = vadd.f32 %v762, %v780
    %v782 = vpop.f32.mrf.mxu0
    %v783 = vadd.f32 %v764, %v782
    %784 = vdwg.mxu0
    %785 = vmatpush.bf16.msra.mxu0 %v488
    %786 = vmatpush.bf16.msra.mxu0 %v486
    %787 = vmatpush.bf16.msra.mxu0 %v484
    %788 = vmatpush.bf16.msra.mxu0 %v482
    %789 = vmatpush.bf16.msra.mxu0 %v480
    %790 = vmatpush.bf16.msra.mxu0 %v478
    %791 = vmatpush.bf16.msra.mxu0 %v476
    %792 = vmatpush.bf16.msra.mxu0 %v474
    %793 = vmatmul.bf16.gmra.mxu0 %v41
    %v794 = vpop.f32.mrf.mxu0
    %v795 = vadd.f32 %v776, %v794
    %v796 = vpop.f32.mrf.mxu0
    %v797 = vadd.f32 %v778, %v796
    %798 = vmatmul.bf16.gmra.mxu0 %v47
    %v799 = vpop.f32.mrf.mxu0
    %v800 = vadd.f32 %v781, %v799
    %v801 = vpop.f32.mrf.mxu0
    %v802 = vadd.f32 %v783, %v801
    %803 = vdwg.mxu0
    %804 = vmatpush.bf16.msra.mxu0 %v504
    %805 = vmatpush.bf16.msra.mxu0 %v502
    %806 = vmatpush.bf16.msra.mxu0 %v500
    %807 = vmatpush.bf16.msra.mxu0 %v498
    %808 = vmatpush.bf16.msra.mxu0 %v496
    %809 = vmatpush.bf16.msra.mxu0 %v494
    %810 = vmatpush.bf16.msra.mxu0 %v492
    %811 = vmatpush.bf16.msra.mxu0 %v490
    %812 = vmatmul.bf16.gmra.mxu0 %v42
    %v813 = vpop.f32.mrf.mxu0
    %v814 = vadd.f32 %v795, %v813
    %v815 = vpop.f32.mrf.mxu0
    %v816 = vadd.f32 %v797, %v815
    %817 = vmatmul.bf16.gmra.mxu0 %v48
    %v818 = vpop.f32.mrf.mxu0
    %v819 = vadd.f32 %v800, %v818
    %v820 = vpop.f32.mrf.mxu0
    %v821 = vadd.f32 %v802, %v820
    %822 = vdwg.mxu0
    %823 = vmatpush.bf16.msra.mxu0 %v520
    %824 = vmatpush.bf16.msra.mxu0 %v518
    %825 = vmatpush.bf16.msra.mxu0 %v516
    %826 = vmatpush.bf16.msra.mxu0 %v514
    %827 = vmatpush.bf16.msra.mxu0 %v512
    %828 = vmatpush.bf16.msra.mxu0 %v510
    %829 = vmatpush.bf16.msra.mxu0 %v508
    %830 = vmatpush.bf16.msra.mxu0 %v506
    %831 = vmatmul.bf16.gmra.mxu0 %v43
    %v832 = vpop.f32.mrf.mxu0
    %v833 = vadd.f32 %v814, %v832
    %v834 = vpop.f32.mrf.mxu0
    %v835 = vadd.f32 %v816, %v834
    %836 = vmatmul.bf16.gmra.mxu0 %v49
    %v837 = vpop.f32.mrf.mxu0
    %v838 = vadd.f32 %v819, %v837
    %v839 = vpop.f32.mrf.mxu0
    %v840 = vadd.f32 %v821, %v839
    %841 = vdwg.mxu0
    %842 = vmatpush.bf16.msra.mxu0 %v536
    %843 = vmatpush.bf16.msra.mxu0 %v534
    %844 = vmatpush.bf16.msra.mxu0 %v532
    %845 = vmatpush.bf16.msra.mxu0 %v530
    %846 = vmatpush.bf16.msra.mxu0 %v528
    %847 = vmatpush.bf16.msra.mxu0 %v526
    %848 = vmatpush.bf16.msra.mxu0 %v524
    %849 = vmatpush.bf16.msra.mxu0 %v522
    %850 = vmatmul.bf16.gmra.mxu0 %v44
    %v851 = vpop.f32.mrf.mxu0
    %v852 = vadd.f32 %v833, %v851
    %v853 = vpop.f32.mrf.mxu0
    %v854 = vadd.f32 %v835, %v853
    %855 = vmatmul.bf16.gmra.mxu0 %v50
    %v856 = vpop.f32.mrf.mxu0
    %v857 = vadd.f32 %v838, %v856
    %v858 = vpop.f32.mrf.mxu0
    %v859 = vadd.f32 %v840, %v858
    %860 = vdwg.mxu0
    %861 = vst [vmem:[#allocation2] sm:$0xff] %v738
    %862 = vst [vmem:[#allocation2 + $0x8] sm:$0xff] %v852
    %863 = vst [vmem:[#allocation2 + $0x10] sm:$0xff] %v740
    %864 = vst [vmem:[#allocation2 + $0x18] sm:$0xff] %v854
    %865 = vst [vmem:[#allocation2 + $0x20] sm:$0xff] %v743
    %866 = vst [vmem:[#allocation2 + $0x28] sm:$0xff] %v857
    %867 = vst [vmem:[#allocation2 + $0x30] sm:$0x3f] %v745
    %868 = vst [vmem:[#allocation2 + $0x38] sm:$0x3f] %v859
    // Predicated region
    $region14: #{text_vae_forward.17} parent=1 // pred_check
      _
    $region15: #{text_vae_forward.17} parent=1 // pred_check_branch
      %870 = sbr.rel (0) target = $region17
    $region16: #{text_vae_forward.17} parent=1 // pred_region
      %872 = vsyncadd [#allocation3], 0
      %s873 = sshll.u32 [#allocation2], 4
      %s874 = int_to_ptr.vmem [resolvable:$true] %s873
      %s875 = sshll.u32 %s3, 4
      %s876 = int_to_ptr.hbm [resolvable:$true] %s875
      %881 = dma.vmem_to_hbm [thread:$0]  %s874, 1024, %s876, [#allocation3], 256, 256, 16
    $region17: #{text_vae_forward.17} parent=1 // pred_fallthru
      _
    // Predicated region
    $region18: #{text_vae_forward.17} parent=1 // pred_check
      _
    $region19: #{text_vae_forward.17} parent=1 // pred_check_branch
      %883 = sbr.rel (0) target = $region21
    $region20: #{text_vae_forward.17} parent=1 // pred_region
      %885 = dma.done [#allocation3], 1024
    $region21: #{text_vae_forward.17} parent=1 // pred_fallthru
      _
    %886 = vsyncpa [#allocation3], 1

</llo_original>
